<compile_context>
chip_gen: v7x
topology: tpu7x:2x2x1
jax: 0.10.0
libtpu: 0.0.40
codegen_flags: <defaults>
</compile_context>

<pallas_src>
import functools
import math

import jax
import jax.numpy as jnp
from jax.experimental import pallas as pl
from jax.experimental.pallas import tpu as pltpu


# ----------------------------- kernel helpers -------------------------------

def _layer_norm(v, w, b, eps=1e-5):
    # f32 VPU math on all generations (v5e has no bf16 VALU/EUP).
    mu = jnp.mean(v, axis=-1, keepdims=True)
    var = jnp.mean((v - mu) ** 2, axis=-1, keepdims=True)
    return (v - mu) * jax.lax.rsqrt(var + eps) * w + b


def _attention(q, k, v, *, nhead, causal):
    """Head-batched attention. q: (T,E) f32, k/v: (S,E) f32 -> (T,E) f32."""
    T, E = q.shape
    S = k.shape[0]
    hd = E // nhead
    scale = 1.0 / math.sqrt(hd)
    bf = jnp.bfloat16

    # (L, E) -> (H, L, hd): one minor-dim split + major-dim permute per tensor
    # instead of nhead lane slices and a concatenate.
    qh = jnp.transpose(q.reshape(T, nhead, hd), (1, 0, 2))
    kh = jnp.transpose(k.reshape(S, nhead, hd), (1, 0, 2))
    vh = jnp.transpose(v.reshape(S, nhead, hd), (1, 0, 2))

    # All heads in a single batched MXU call; bf16 inputs, f32 accumulation.
    s = jnp.einsum("hqd,hkd->hqk", qh.astype(bf), kh.astype(bf),
                   preferred_element_type=jnp.float32) * scale

    if causal:
        row = jax.lax.broadcasted_iota(jnp.int32, (T, S), 0)
        col = jax.lax.broadcasted_iota(jnp.int32, (T, S), 1)
        s = jnp.where(col > row, -1e9, s)   # broadcasts over the head axis

    s = s - jnp.max(s, axis=-1, keepdims=True)
    p = jnp.exp(s)
    p = p * pl.reciprocal(jnp.sum(p, axis=-1, keepdims=True), approx=True)

    o = jnp.einsum("hqk,hkd->hqd", p.astype(bf), vh.astype(bf),
                   preferred_element_type=jnp.float32)
    return jnp.transpose(o, (1, 0, 2)).reshape(T, E)


# ------------------------------ Pallas kernels -------------------------------

def decoder_layer_kernel(x_ref, mem_ref,
                         wqkv_sa, bqkv_sa, wo_sa, bo_sa,
                         wq_ca, bq_ca, wkv_ca, bkv_ca, wo_ca, bo_ca,
                         w1, b1, w2, b2,
                         ln1w, ln1b, ln2w, ln2b, ln3w, ln3b,
                         out_ref, *, nhead):
    E = x_ref.shape[-1]
    bf = jnp.bfloat16

    x = x_ref[...].astype(jnp.float32)       # (T, E)
    mem = mem_ref[...].astype(jnp.float32)   # (S, E)

    # ---- self attention: fused QKV projection, causal mask in-kernel ----
    qkv = jnp.dot(x.astype(bf), wqkv_sa[...],
                  preferred_element_type=jnp.float32) + bqkv_sa[...]   # (T, 3E)
    sa = _attention(qkv[:, 0:E], qkv[:, E:2 * E], qkv[:, 2 * E:3 * E],
                    nhead=nhead, causal=True)
    sa = jnp.dot(sa.astype(bf), wo_sa[...],
                 preferred_element_type=jnp.float32) + bo_sa[...]
    x1 = _layer_norm(x + sa, ln1w[...], ln1b[...])

    # ---- cross attention: q from x1, fused KV projection of memory ----
    q = jnp.dot(x1.astype(bf), wq_ca[...],
                preferred_element_type=jnp.float32) + bq_ca[...]        # (T, E)
    kv = jnp.dot(mem.astype(bf), wkv_ca[...],
                 preferred_element_type=jnp.float32) + bkv_ca[...]      # (S, 2E)
    ca = _attention(q, kv[:, 0:E], kv[:, E:2 * E], nhead=nhead, causal=False)
    ca = jnp.dot(ca.astype(bf), wo_ca[...],
                 preferred_element_type=jnp.float32) + bo_ca[...]
    x2 = _layer_norm(x1 + ca, ln2w[...], ln2b[...])

    # ---- feed-forward (ReLU) ----
    h = jnp.maximum(jnp.dot(x2.astype(bf), w1[...],
                            preferred_element_type=jnp.float32) + b1[...], 0.0)
    ff = jnp.dot(h.astype(bf), w2[...],
                 preferred_element_type=jnp.float32) + b2[...]
    x3 = _layer_norm(x2 + ff, ln3w[...], ln3b[...])

    out_ref[...] = x3.astype(out_ref.dtype)


def final_norm_kernel(x_ref, w_ref, b_ref, out_ref):
    v = x_ref[...].astype(jnp.float32)
    out_ref[...] = _layer_norm(v, w_ref[...], b_ref[...]).astype(out_ref.dtype)


# -------------------------------- wrappers -----------------------------------

_WEIGHT_ORDER = ("wqkv_sa", "bqkv_sa", "wo_sa", "bo_sa",
                 "wq_ca", "bq_ca", "wkv_ca", "bkv_ca", "wo_ca", "bo_ca",
                 "w1", "b1", "w2", "b2",
                 "ln1w", "ln1b", "ln2w", "ln2b", "ln3w", "ln3b")


def _full_spec(shape):
    n = len(shape)
    return pl.BlockSpec(shape, lambda b, _n=n: (0,) * _n)


def run_decoder_layer(x, mem, p, nhead):
    """x: (B,T,E), mem: (B,S,E). Returns (B,T,E)."""
    B, T, E = x.shape
    S = mem.shape[1]
    weights = [p[k] for k in _WEIGHT_ORDER]

    in_specs = ([pl.BlockSpec((None, T, E), lambda b: (b, 0, 0)),   # x, batch squeezed
                 pl.BlockSpec((None, S, E), lambda b: (b, 0, 0))]   # memory
                + [_full_spec(w.shape) for w in weights])
    out_spec = pl.BlockSpec((None, T, E), lambda b: (b, 0, 0))

    return pl.pallas_call(
        functools.partial(decoder_layer_kernel, nhead=nhead),
        out_shape=jax.ShapeDtypeStruct((B, T, E), x.dtype),
        grid_spec=pltpu.PrefetchScalarGridSpec(
            num_scalar_prefetch=0,
            grid=(B,),
            in_specs=in_specs,
            out_specs=out_spec,
        ),
        compiler_params=pltpu.CompilerParams(
            dimension_semantics=("parallel",),
            vmem_limit_bytes=64 * 1024 * 1024),
    )(x, mem, *weights)


def run_final_norm(x, w, b):
    B, T, E = x.shape
    return pl.pallas_call(
        final_norm_kernel,
        out_shape=jax.ShapeDtypeStruct((B, T, E), x.dtype),
        grid_spec=pltpu.PrefetchScalarGridSpec(
            num_scalar_prefetch=0,
            grid=(B,),
            in_specs=[pl.BlockSpec((None, T, E), lambda i: (i, 0, 0)),
                      _full_spec(w.shape),
                      _full_spec(b.shape)],
            out_specs=pl.BlockSpec((None, T, E), lambda i: (i, 0, 0)),
        ),
        compiler_params=pltpu.CompilerParams(
            dimension_semantics=("parallel",),
            vmem_limit_bytes=64 * 1024 * 1024),
    )(x, w, b)


def my_transformer_decoder(tgt, memory, params, nhead):
    """Pallas equivalent of MyTransformerDecoder.forward (eval mode).

    tgt:    [tgt_len, batch, embed_dim]
    memory: [src_len, batch, embed_dim]
    The causal tgt_mask is generated inside the kernel.
    """
    x = jnp.transpose(tgt, (1, 0, 2))       # -> (B, T, E)
    mem = jnp.transpose(memory, (1, 0, 2))  # -> (B, S, E)
    for layer_p in params["layers"]:
        x = run_decoder_layer(x, mem, layer_p, nhead)
    if params.get("norm_w") is not None:
        x = run_final_norm(x, params["norm_w"], params["norm_b"])
    return jnp.transpose(x, (1, 0, 2))      # -> (T, B, E)


# --------------------------- parameter construction -------------------------

def init_params(key, num_layers, embed_dim, dim_ff):
    E, F = embed_dim, dim_ff

    def rnd(k, shape, scale, dtype=jnp.bfloat16):
        # Matmul weights stored in bf16 (MXU input dtype); accumulation is f32.
        return (scale * jax.random.normal(k, shape, jnp.float32)).astype(dtype)

    layers = []
    for _ in range(num_layers):
        key, *ks = jax.random.split(key, 8)
        layers.append({
            # self-attention: fused in_proj (E,3E), out_proj (E,E)
            "wqkv_sa": rnd(ks[0], (E, 3 * E), 1.0 / math.sqrt(E)),
            "bqkv_sa": jnp.zeros((1, 3 * E), jnp.float32),
            "wo_sa":   rnd(ks[1], (E, E), 1.0 / math.sqrt(E)),
            "bo_sa":   jnp.zeros((1, E), jnp.float32),
            # cross-attention: q proj (E,E), fused kv proj (E,2E), out proj
            "wq_ca":   rnd(ks[2], (E, E), 1.0 / math.sqrt(E)),
            "bq_ca":   jnp.zeros((1, E), jnp.float32),
            "wkv_ca":  rnd(ks[3], (E, 2 * E), 1.0 / math.sqrt(E)),
            "bkv_ca":  jnp.zeros((1, 2 * E), jnp.float32),
            "wo_ca":   rnd(ks[4], (E, E), 1.0 / math.sqrt(E)),
            "bo_ca":   jnp.zeros((1, E), jnp.float32),
            # feed-forward (weights stored as (in, out))
            "w1": rnd(ks[5], (E, F), 1.0 / math.sqrt(E)),
            "b1": jnp.zeros((1, F), jnp.float32),
            "w2": rnd(ks[6], (F, E), 1.0 / math.sqrt(F)),
            "b2": jnp.zeros((1, E), jnp.float32),
            # layer norms (f32)
            "ln1w": jnp.ones((1, E), jnp.float32), "ln1b": jnp.zeros((1, E), jnp.float32),
            "ln2w": jnp.ones((1, E), jnp.float32), "ln2b": jnp.zeros((1, E), jnp.float32),
            "ln3w": jnp.ones((1, E), jnp.float32), "ln3b": jnp.zeros((1, E), jnp.float32),
        })
    return {
        "layers": layers,
        "norm_w": jnp.ones((1, E), jnp.float32),   # final LayerNorm (self.norm)
        "norm_b": jnp.zeros((1, E), jnp.float32),
    }


# ----------------------------------- main ------------------------------------

if __name__ == "__main__":
    # E=128 keeps the lane dim full and head_dim=32 MXU/lane friendly.
    TGT_LEN, SRC_LEN, BATCH, EMBED, NHEAD, DIM_FF, NUM_LAYERS = 16, 16, 2, 128, 4, 256, 2

    key = jax.random.PRNGKey(0)
    k_tgt, k_mem, k_par = jax.random.split(key, 3)

    tgt = jax.random.normal(k_tgt, (TGT_LEN, BATCH, EMBED), jnp.float32)
    memory = jax.random.normal(k_mem, (SRC_LEN, BATCH, EMBED), jnp.float32)
    params = init_params(k_par, NUM_LAYERS, EMBED, DIM_FF)

    fwd = jax.jit(my_transformer_decoder, static_argnames=("nhead",))
    out = fwd(tgt, memory, params, nhead=NHEAD)
    out = jax.block_until_ready(out)

    assert out.shape == (TGT_LEN, BATCH, EMBED)
    assert bool(jnp.all(jnp.isfinite(out)))
    print("KERNEL_OK")
</pallas_src>

<mosaic_0001>
module attributes {stable_mosaic.version = 11 : i64} {
  func.func @final_norm_kernel(%arg0: i32, %arg1: memref<1x16x128xf32, #tpu.memory_space<vmem>>, %arg2: memref<1x128xf32, #tpu.memory_space<vmem>>, %arg3: memref<1x128xf32, #tpu.memory_space<vmem>>, %arg4: memref<1x16x128xf32, #tpu.memory_space<vmem>>) attributes {dimension_semantics = [#tpu.dimension_semantics<parallel>], iteration_bounds = array<i64: 2>, scalar_prefetch = 0 : i64, scratch_operands = 0 : i64, tpu.core_type = #tpu.core_type<tc>, window_params = [{transform_indices = @transform_0, window_bounds = array<i64: 1, 16, 128>}, {pipeline_mode = #tpu.pipeline_mode<synchronous>, transform_indices = @transform_1, window_bounds = array<i64: 1, 128>}, {pipeline_mode = #tpu.pipeline_mode<synchronous>, transform_indices = @transform_2, window_bounds = array<i64: 1, 128>}, {transform_indices = @transform_3, window_bounds = array<i64: 1, 16, 128>}]} {
    %c0 = arith.constant 0 : index
    %c0_0 = arith.constant 0 : index
    %c0_1 = arith.constant 0 : index
    %0 = vector.load %arg1[%c0, %c0_0, %c0_1] : memref<1x16x128xf32, #tpu.memory_space<vmem>>, vector<1x16x128xf32>
    %1 = vector.shape_cast %0 : vector<1x16x128xf32> to vector<16x128xf32>
    %c0_2 = arith.constant 0 : index
    %c0_3 = arith.constant 0 : index
    %2 = vector.load %arg2[%c0_2, %c0_3] : memref<1x128xf32, #tpu.memory_space<vmem>>, vector<1x128xf32>
    %c0_4 = arith.constant 0 : index
    %c0_5 = arith.constant 0 : index
    %3 = vector.load %arg3[%c0_4, %c0_5] : memref<1x128xf32, #tpu.memory_space<vmem>>, vector<1x128xf32>
    %cst = arith.constant dense<0.000000e+00> : vector<16xf32>
    %4 = vector.multi_reduction <add>, %1, %cst [1] : vector<16x128xf32> to vector<16xf32>
    %5 = vector.shape_cast %4 : vector<16xf32> to vector<16x1xf32>
    %cst_6 = arith.constant 1.280000e+02 : f32
    %6 = vector.broadcast %cst_6 : f32 to vector<16x1xf32>
    %7 = arith.divf %5, %6 : vector<16x1xf32>
    %8 = vector.broadcast %7 : vector<16x1xf32> to vector<16x128xf32>
    %9 = arith.subf %1, %8 : vector<16x128xf32>
    %10 = arith.mulf %9, %9 : vector<16x128xf32>
    %cst_7 = arith.constant dense<0.000000e+00> : vector<16xf32>
    %11 = vector.multi_reduction <add>, %10, %cst_7 [1] : vector<16x128xf32> to vector<16xf32>
    %12 = vector.shape_cast %11 : vector<16xf32> to vector<16x1xf32>
    %cst_8 = arith.constant 1.280000e+02 : f32
    %13 = vector.broadcast %cst_8 : f32 to vector<16x1xf32>
    %14 = arith.divf %12, %13 : vector<16x1xf32>
    %15 = vector.broadcast %7 : vector<16x1xf32> to vector<16x128xf32>
    %16 = arith.subf %1, %15 : vector<16x128xf32>
    %cst_9 = arith.constant 9.99999974E-6 : f32
    %17 = vector.broadcast %cst_9 : f32 to vector<16x1xf32>
    %18 = arith.addf %14, %17 : vector<16x1xf32>
    %19 = math.rsqrt %18 : vector<16x1xf32>
    %20 = vector.broadcast %19 : vector<16x1xf32> to vector<16x128xf32>
    %21 = arith.mulf %16, %20 : vector<16x128xf32>
    %22 = vector.broadcast %2 : vector<1x128xf32> to vector<16x128xf32>
    %23 = arith.mulf %21, %22 : vector<16x128xf32>
    %24 = vector.broadcast %3 : vector<1x128xf32> to vector<16x128xf32>
    %25 = arith.addf %23, %24 : vector<16x128xf32>
    %c0_10 = arith.constant 0 : index
    %c0_11 = arith.constant 0 : index
    %c0_12 = arith.constant 0 : index
    %26 = vector.load %arg4[%c0_10, %c0_11, %c0_12] : memref<1x16x128xf32, #tpu.memory_space<vmem>>, vector<1x16x128xf32>
    %27 = vector.shape_cast %26 : vector<1x16x128xf32> to vector<16x128xf32>
    %28 = vector.shape_cast %25 : vector<16x128xf32> to vector<1x16x128xf32>
    tpu.vector_store %arg4[%c0_10, %c0_11, %c0_12], %28 {strides = array<i32>} : memref<1x16x128xf32, #tpu.memory_space<vmem>>, vector<1x16x128xf32>,
    return
  }
  func.func @transform_0(%arg0: i32) -> (i32, i32, i32) {
    %c0_i32 = arith.constant 0 : i32
    %c0_i32_0 = arith.constant 0 : i32
    %c0_i32_1 = arith.constant 0 : i32
    return %arg0, %c0_i32, %c0_i32_0 : i32, i32, i32
  }
  func.func @transform_1(%arg0: i32) -> (i32, i32) {
    %c0_i32 = arith.constant 0 : i32
    %c0_i32_0 = arith.constant 0 : i32
    %c0_i32_1 = arith.constant 0 : i32
    return %c0_i32, %c0_i32_0 : i32, i32
  }
  func.func @transform_2(%arg0: i32) -> (i32, i32) {
    %c0_i32 = arith.constant 0 : i32
    %c0_i32_0 = arith.constant 0 : i32
    %c0_i32_1 = arith.constant 0 : i32
    return %c0_i32, %c0_i32_0 : i32, i32
  }
  func.func @transform_3(%arg0: i32) -> (i32, i32, i32) {
    %c0_i32 = arith.constant 0 : i32
    %c0_i32_0 = arith.constant 0 : i32
    %c0_i32_1 = arith.constant 0 : i32
    return %arg0, %c0_i32, %c0_i32_0 : i32, i32, i32
  }
}

module attributes {stable_mosaic.version = 11 : i64} {
  func.func @decoder_layer_kernel(%arg0: i32, %arg1: memref<1x16x128xf32, #tpu.memory_space<vmem>>, %arg2: memref<1x16x128xf32, #tpu.memory_space<vmem>>, %arg3: memref<128x384xbf16, #tpu.memory_space<vmem>>, %arg4: memref<1x384xf32, #tpu.memory_space<vmem>>, %arg5: memref<128x128xbf16, #tpu.memory_space<vmem>>, %arg6: memref<1x128xf32, #tpu.memory_space<vmem>>, %arg7: memref<128x128xbf16, #tpu.memory_space<vmem>>, %arg8: memref<1x128xf32, #tpu.memory_space<vmem>>, %arg9: memref<128x256xbf16, #tpu.memory_space<vmem>>, %arg10: memref<1x256xf32, #tpu.memory_space<vmem>>, %arg11: memref<128x128xbf16, #tpu.memory_space<vmem>>, %arg12: memref<1x128xf32, #tpu.memory_space<vmem>>, %arg13: memref<128x256xbf16, #tpu.memory_space<vmem>>, %arg14: memref<1x256xf32, #tpu.memory_space<vmem>>, %arg15: memref<256x128xbf16, #tpu.memory_space<vmem>>, %arg16: memref<1x128xf32, #tpu.memory_space<vmem>>, %arg17: memref<1x128xf32, #tpu.memory_space<vmem>>, %arg18: memref<1x128xf32, #tpu.memory_space<vmem>>, %arg19: memref<1x128xf32, #tpu.memory_space<vmem>>, %arg20: memref<1x128xf32, #tpu.memory_space<vmem>>, %arg21: memref<1x128xf32, #tpu.memory_space<vmem>>, %arg22: memref<1x128xf32, #tpu.memory_space<vmem>>, %arg23: memref<1x16x128xf32, #tpu.memory_space<vmem>>) attributes {dimension_semantics = [#tpu.dimension_semantics<parallel>], iteration_bounds = array<i64: 2>, scalar_prefetch = 0 : i64, scratch_operands = 0 : i64, tpu.core_type = #tpu.core_type<tc>, window_params = [{transform_indices = @transform_0, window_bounds = array<i64: 1, 16, 128>}, {transform_indices = @transform_1, window_bounds = array<i64: 1, 16, 128>}, {pipeline_mode = #tpu.pipeline_mode<synchronous>, transform_indices = @transform_2, window_bounds = array<i64: 128, 384>}, {pipeline_mode = #tpu.pipeline_mode<synchronous>, transform_indices = @transform_3, window_bounds = array<i64: 1, 384>}, {pipeline_mode = #tpu.pipeline_mode<synchronous>, transform_indices = @transform_4, window_bounds = array<i64: 128, 128>}, {pipeline_mode = #tpu.pipeline_mode<synchronous>, transform_indices = @transform_5, window_bounds = array<i64: 1, 128>}, {pipeline_mode = #tpu.pipeline_mode<synchronous>, transform_indices = @transform_6, window_bounds = array<i64: 128, 128>}, {pipeline_mode = #tpu.pipeline_mode<synchronous>, transform_indices = @transform_7, window_bounds = array<i64: 1, 128>}, {pipeline_mode = #tpu.pipeline_mode<synchronous>, transform_indices = @transform_8, window_bounds = array<i64: 128, 256>}, {pipeline_mode = #tpu.pipeline_mode<synchronous>, transform_indices = @transform_9, window_bounds = array<i64: 1, 256>}, {pipeline_mode = #tpu.pipeline_mode<synchronous>, transform_indices = @transform_10, window_bounds = array<i64: 128, 128>}, {pipeline_mode = #tpu.pipeline_mode<synchronous>, transform_indices = @transform_11, window_bounds = array<i64: 1, 128>}, {pipeline_mode = #tpu.pipeline_mode<synchronous>, transform_indices = @transform_12, window_bounds = array<i64: 128, 256>}, {pipeline_mode = #tpu.pipeline_mode<synchronous>, transform_indices = @transform_13, window_bounds = array<i64: 1, 256>}, {pipeline_mode = #tpu.pipeline_mode<synchronous>, transform_indices = @transform_14, window_bounds = array<i64: 256, 128>}, {pipeline_mode = #tpu.pipeline_mode<synchronous>, transform_indices = @transform_15, window_bounds = array<i64: 1, 128>}, {pipeline_mode = #tpu.pipeline_mode<synchronous>, transform_indices = @transform_16, window_bounds = array<i64: 1, 128>}, {pipeline_mode = #tpu.pipeline_mode<synchronous>, transform_indices = @transform_17, window_bounds = array<i64: 1, 128>}, {pipeline_mode = #tpu.pipeline_mode<synchronous>, transform_indices = @transform_18, window_bounds = array<i64: 1, 128>}, {pipeline_mode = #tpu.pipeline_mode<synchronous>, transform_indices = @transform_19, window_bounds = array<i64: 1, 128>}, {pipeline_mode = #tpu.pipeline_mode<synchronous>, transform_indices = @transform_20, window_bounds = array<i64: 1, 128>}, {pipeline_mode = #tpu.pipeline_mode<synchronous>, transform_indices = @transform_21, window_bounds = array<i64: 1, 128>}, {transform_indices = @transform_22, window_bounds = array<i64: 1, 16, 128>}]} {
    %c0 = arith.constant 0 : index
    %c0_0 = arith.constant 0 : index
    %c0_1 = arith.constant 0 : index
    %0 = vector.load %arg1[%c0, %c0_0, %c0_1] : memref<1x16x128xf32, #tpu.memory_space<vmem>>, vector<1x16x128xf32>
    %1 = vector.shape_cast %0 : vector<1x16x128xf32> to vector<16x128xf32>
    %c0_2 = arith.constant 0 : index
    %c0_3 = arith.constant 0 : index
    %c0_4 = arith.constant 0 : index
    %2 = vector.load %arg2[%c0_2, %c0_3, %c0_4] : memref<1x16x128xf32, #tpu.memory_space<vmem>>, vector<1x16x128xf32>
    %3 = vector.shape_cast %2 : vector<1x16x128xf32> to vector<16x128xf32>
    %4 = arith.truncf %1 : vector<16x128xf32> to vector<16x128xbf16>
    %c0_5 = arith.constant 0 : index
    %c0_6 = arith.constant 0 : index
    %5 = vector.load %arg3[%c0_5, %c0_6] : memref<128x384xbf16, #tpu.memory_space<vmem>>, vector<128x384xbf16>
    %cst = arith.constant dense<0.000000e+00> : vector<16x384xf32>
    %6 = tpu.matmul %4, %5, %cst {dimension_numbers = #tpu.dot_dimension_numbers<[1], [0], [0], [1], [0, 0, 1, 1], [], []>} : vector<16x128xbf16>, vector<128x384xbf16>, vector<16x384xf32> -> vector<16x384xf32>
    %c0_7 = arith.constant 0 : index
    %c0_8 = arith.constant 0 : index
    %7 = vector.load %arg4[%c0_7, %c0_8] : memref<1x384xf32, #tpu.memory_space<vmem>>, vector<1x384xf32>
    %8 = vector.broadcast %7 : vector<1x384xf32> to vector<16x384xf32>
    %9 = arith.addf %6, %8 : vector<16x384xf32>
    %10 = vector.extract_strided_slice %9 {offsets = [0, 0], sizes = [16, 128], strides = [1, 1]} : vector<16x384xf32> to vector<16x128xf32>
    %11 = vector.extract_strided_slice %9 {offsets = [0, 128], sizes = [16, 128], strides = [1, 1]} : vector<16x384xf32> to vector<16x128xf32>
    %12 = vector.extract_strided_slice %9 {offsets = [0, 256], sizes = [16, 128], strides = [1, 1]} : vector<16x384xf32> to vector<16x128xf32>
    %13 = vector.shape_cast %10 : vector<16x128xf32> to vector<16x4x32xf32>
    %14 = tpu.transpose %13, [1, 0, 2] : vector<16x4x32xf32> -> vector<4x16x32xf32>
    %15 = vector.shape_cast %11 : vector<16x128xf32> to vector<16x4x32xf32>
    %16 = tpu.transpose %15, [1, 0, 2] : vector<16x4x32xf32> -> vector<4x16x32xf32>
    %17 = vector.shape_cast %12 : vector<16x128xf32> to vector<16x4x32xf32>
    %18 = tpu.transpose %17, [1, 0, 2] : vector<16x4x32xf32> -> vector<4x16x32xf32>
    %19 = arith.truncf %14 : vector<4x16x32xf32> to vector<4x16x32xbf16>
    %20 = arith.truncf %16 : vector<4x16x32xf32> to vector<4x16x32xbf16>
    "tpu.trace_start"() <{level = 10 : i32, message = "hqd,hkd->hqk"}> : () -> ()
    %cst_9 = arith.constant dense<0.000000e+00> : vector<4x16x16xf32>
    %21 = tpu.matmul %19, %20, %cst_9 {dimension_numbers = #tpu.dot_dimension_numbers<[2], [2], [1], [1], [0, 0, 0, 1, 1, 1], [0], [0]>} : vector<4x16x32xbf16>, vector<4x16x32xbf16>, vector<4x16x16xf32> -> vector<4x16x16xf32>
    "tpu.trace_stop"() : () -> ()
    %cst_10 = arith.constant 0.176776692 : f32
    %22 = vector.broadcast %cst_10 : f32 to vector<4x16x16xf32>
    %23 = arith.mulf %21, %22 : vector<4x16x16xf32>
    %24 = tpu.iota {dimensions = array<i32: 0>} : vector<16x16xi32>
    %25 = tpu.iota {dimensions = array<i32: 1>} : vector<16x16xi32>
    %26 = arith.cmpi sgt, %25, %24 : vector<16x16xi32>
    %cst_11 = arith.constant -1.000000e+09 : f32
    %27 = vector.shape_cast %26 : vector<16x16xi1> to vector<1x16x16xi1>
    %28 = vector.broadcast %27 : vector<1x16x16xi1> to vector<4x16x16xi1>
    %29 = vector.broadcast %cst_11 : f32 to vector<4x16x16xf32>
    %30 = arith.select %28, %29, %23 : vector<4x16x16xi1>, vector<4x16x16xf32>
    %cst_12 = arith.constant dense<0xFF800000> : vector<4x16xf32>
    %31 = vector.multi_reduction <maximumf>, %30, %cst_12 [2] : vector<4x16x16xf32> to vector<4x16xf32>
    %32 = vector.shape_cast %31 : vector<4x16xf32> to vector<4x16x1xf32>
    %33 = vector.broadcast %32 : vector<4x16x1xf32> to vector<4x16x16xf32>
    %34 = arith.subf %30, %33 : vector<4x16x16xf32>
    %35 = math.exp %34 : vector<4x16x16xf32>
    %cst_13 = arith.constant dense<0.000000e+00> : vector<4x16xf32>
    %36 = vector.multi_reduction <add>, %35, %cst_13 [2] : vector<4x16x16xf32> to vector<4x16xf32>
    %37 = vector.shape_cast %36 : vector<4x16xf32> to vector<4x16x1xf32>
    %38 = tpu.reciprocal %37 {approx = true} : vector<4x16x1xf32> -> vector<4x16x1xf32>
    %39 = vector.broadcast %38 : vector<4x16x1xf32> to vector<4x16x16xf32>
    %40 = arith.mulf %35, %39 : vector<4x16x16xf32>
    %41 = arith.truncf %40 : vector<4x16x16xf32> to vector<4x16x16xbf16>
    %42 = arith.truncf %18 : vector<4x16x32xf32> to vector<4x16x32xbf16>
    "tpu.trace_start"() <{level = 10 : i32, message = "hqk,hkd->hqd"}> : () -> ()
    %cst_14 = arith.constant dense<0.000000e+00> : vector<4x16x32xf32>
    %43 = tpu.matmul %41, %42, %cst_14 {dimension_numbers = #tpu.dot_dimension_numbers<[2], [1], [1], [2], [0, 0, 0, 1, 1, 2], [0], [0]>} : vector<4x16x16xbf16>, vector<4x16x32xbf16>, vector<4x16x32xf32> -> vector<4x16x32xf32>
    "tpu.trace_stop"() : () -> ()
    %44 = tpu.transpose %43, [1, 0, 2] : vector<4x16x32xf32> -> vector<16x4x32xf32>
    %45 = vector.shape_cast %44 : vector<16x4x32xf32> to vector<16x128xf32>
    %46 = arith.truncf %45 : vector<16x128xf32> to vector<16x128xbf16>
    %c0_15 = arith.constant 0 : index
    %c0_16 = arith.constant 0 : index
    %47 = vector.load %arg5[%c0_15, %c0_16] : memref<128x128xbf16, #tpu.memory_space<vmem>>, vector<128x128xbf16>
    %cst_17 = arith.constant dense<0.000000e+00> : vector<16x128xf32>
    %48 = tpu.matmul %46, %47, %cst_17 {dimension_numbers = #tpu.dot_dimension_numbers<[1], [0], [0], [1], [0, 0, 1, 1], [], []>} : vector<16x128xbf16>, vector<128x128xbf16>, vector<16x128xf32> -> vector<16x128xf32>
    %c0_18 = arith.constant 0 : index
    %c0_19 = arith.constant 0 : index
    %49 = vector.load %arg6[%c0_18, %c0_19] : memref<1x128xf32, #tpu.memory_space<vmem>>, vector<1x128xf32>
    %50 = vector.broadcast %49 : vector<1x128xf32> to vector<16x128xf32>
    %51 = arith.addf %48, %50 : vector<16x128xf32>
    %52 = arith.addf %1, %51 : vector<16x128xf32>
    %c0_20 = arith.constant 0 : index
    %c0_21 = arith.constant 0 : index
    %53 = vector.load %arg17[%c0_20, %c0_21] : memref<1x128xf32, #tpu.memory_space<vmem>>, vector<1x128xf32>
    %c0_22 = arith.constant 0 : index
    %c0_23 = arith.constant 0 : index
    %54 = vector.load %arg18[%c0_22, %c0_23] : memref<1x128xf32, #tpu.memory_space<vmem>>, vector<1x128xf32>
    %cst_24 = arith.constant dense<0.000000e+00> : vector<16xf32>
    %55 = vector.multi_reduction <add>, %52, %cst_24 [1] : vector<16x128xf32> to vector<16xf32>
    %56 = vector.shape_cast %55 : vector<16xf32> to vector<16x1xf32>
    %cst_25 = arith.constant 1.280000e+02 : f32
    %57 = vector.broadcast %cst_25 : f32 to vector<16x1xf32>
    %58 = arith.divf %56, %57 : vector<16x1xf32>
    %59 = vector.broadcast %58 : vector<16x1xf32> to vector<16x128xf32>
    %60 = arith.subf %52, %59 : vector<16x128xf32>
    %61 = arith.mulf %60, %60 : vector<16x128xf32>
    %cst_26 = arith.constant dense<0.000000e+00> : vector<16xf32>
    %62 = vector.multi_reduction <add>, %61, %cst_26 [1] : vector<16x128xf32> to vector<16xf32>
    %63 = vector.shape_cast %62 : vector<16xf32> to vector<16x1xf32>
    %cst_27 = arith.constant 1.280000e+02 : f32
    %64 = vector.broadcast %cst_27 : f32 to vector<16x1xf32>
    %65 = arith.divf %63, %64 : vector<16x1xf32>
    %66 = vector.broadcast %58 : vector<16x1xf32> to vector<16x128xf32>
    %67 = arith.subf %52, %66 : vector<16x128xf32>
    %cst_28 = arith.constant 9.99999974E-6 : f32
    %68 = vector.broadcast %cst_28 : f32 to vector<16x1xf32>
    %69 = arith.addf %65, %68 : vector<16x1xf32>
    %70 = math.rsqrt %69 : vector<16x1xf32>
    %71 = vector.broadcast %70 : vector<16x1xf32> to vector<16x128xf32>
    %72 = arith.mulf %67, %71 : vector<16x128xf32>
    %73 = vector.broadcast %53 : vector<1x128xf32> to vector<16x128xf32>
    %74 = arith.mulf %72, %73 : vector<16x128xf32>
    %75 = vector.broadcast %54 : vector<1x128xf32> to vector<16x128xf32>
    %76 = arith.addf %74, %75 : vector<16x128xf32>
    %77 = arith.truncf %76 : vector<16x128xf32> to vector<16x128xbf16>
    %c0_29 = arith.constant 0 : index
    %c0_30 = arith.constant 0 : index
    %78 = vector.load %arg7[%c0_29, %c0_30] : memref<128x128xbf16, #tpu.memory_space<vmem>>, vector<128x128xbf16>
    %cst_31 = arith.constant dense<0.000000e+00> : vector<16x128xf32>
    %79 = tpu.matmul %77, %78, %cst_31 {dimension_numbers = #tpu.dot_dimension_numbers<[1], [0], [0], [1], [0, 0, 1, 1], [], []>} : vector<16x128xbf16>, vector<128x128xbf16>, vector<16x128xf32> -> vector<16x128xf32>
    %c0_32 = arith.constant 0 : index
    %c0_33 = arith.constant 0 : index
    %80 = vector.load %arg8[%c0_32, %c0_33] : memref<1x128xf32, #tpu.memory_space<vmem>>, vector<1x128xf32>
    %81 = vector.broadcast %80 : vector<1x128xf32> to vector<16x128xf32>
    %82 = arith.addf %79, %81 : vector<16x128xf32>
    %83 = arith.truncf %3 : vector<16x128xf32> to vector<16x128xbf16>
    %c0_34 = arith.constant 0 : index
    %c0_35 = arith.constant 0 : index
    %84 = vector.load %arg9[%c0_34, %c0_35] : memref<128x256xbf16, #tpu.memory_space<vmem>>, vector<128x256xbf16>
    %cst_36 = arith.constant dense<0.000000e+00> : vector<16x256xf32>
    %85 = tpu.matmul %83, %84, %cst_36 {dimension_numbers = #tpu.dot_dimension_numbers<[1], [0], [0], [1], [0, 0, 1, 1], [], []>} : vector<16x128xbf16>, vector<128x256xbf16>, vector<16x256xf32> -> vector<16x256xf32>
    %c0_37 = arith.constant 0 : index
    %c0_38 = arith.constant 0 : index
    %86 = vector.load %arg10[%c0_37, %c0_38] : memref<1x256xf32, #tpu.memory_space<vmem>>, vector<1x256xf32>
    %87 = vector.broadcast %86 : vector<1x256xf32> to vector<16x256xf32>
    %88 = arith.addf %85, %87 : vector<16x256xf32>
    %89 = vector.extract_strided_slice %88 {offsets = [0, 0], sizes = [16, 128], strides = [1, 1]} : vector<16x256xf32> to vector<16x128xf32>
    %90 = vector.extract_strided_slice %88 {offsets = [0, 128], sizes = [16, 128], strides = [1, 1]} : vector<16x256xf32> to vector<16x128xf32>
    %91 = vector.shape_cast %82 : vector<16x128xf32> to vector<16x4x32xf32>
    %92 = tpu.transpose %91, [1, 0, 2] : vector<16x4x32xf32> -> vector<4x16x32xf32>
    %93 = vector.shape_cast %89 : vector<16x128xf32> to vector<16x4x32xf32>
    %94 = tpu.transpose %93, [1, 0, 2] : vector<16x4x32xf32> -> vector<4x16x32xf32>
    %95 = vector.shape_cast %90 : vector<16x128xf32> to vector<16x4x32xf32>
    %96 = tpu.transpose %95, [1, 0, 2] : vector<16x4x32xf32> -> vector<4x16x32xf32>
    %97 = arith.truncf %92 : vector<4x16x32xf32> to vector<4x16x32xbf16>
    %98 = arith.truncf %94 : vector<4x16x32xf32> to vector<4x16x32xbf16>
    "tpu.trace_start"() <{level = 10 : i32, message = "hqd,hkd->hqk"}> : () -> ()
    %cst_39 = arith.constant dense<0.000000e+00> : vector<4x16x16xf32>
    %99 = tpu.matmul %97, %98, %cst_39 {dimension_numbers = #tpu.dot_dimension_numbers<[2], [2], [1], [1], [0, 0, 0, 1, 1, 1], [0], [0]>} : vector<4x16x32xbf16>, vector<4x16x32xbf16>, vector<4x16x16xf32> -> vector<4x16x16xf32>
    "tpu.trace_stop"() : () -> ()
    %cst_40 = arith.constant 0.176776692 : f32
    %100 = vector.broadcast %cst_40 : f32 to vector<4x16x16xf32>
    %101 = arith.mulf %99, %100 : vector<4x16x16xf32>
    %cst_41 = arith.constant dense<0xFF800000> : vector<4x16xf32>
    %102 = vector.multi_reduction <maximumf>, %101, %cst_41 [2] : vector<4x16x16xf32> to vector<4x16xf32>
    %103 = vector.shape_cast %102 : vector<4x16xf32> to vector<4x16x1xf32>
    %104 = vector.broadcast %103 : vector<4x16x1xf32> to vector<4x16x16xf32>
    %105 = arith.subf %101, %104 : vector<4x16x16xf32>
    %106 = math.exp %105 : vector<4x16x16xf32>
    %cst_42 = arith.constant dense<0.000000e+00> : vector<4x16xf32>
    %107 = vector.multi_reduction <add>, %106, %cst_42 [2] : vector<4x16x16xf32> to vector<4x16xf32>
    %108 = vector.shape_cast %107 : vector<4x16xf32> to vector<4x16x1xf32>
    %109 = tpu.reciprocal %108 {approx = true} : vector<4x16x1xf32> -> vector<4x16x1xf32>
    %110 = vector.broadcast %109 : vector<4x16x1xf32> to vector<4x16x16xf32>
    %111 = arith.mulf %106, %110 : vector<4x16x16xf32>
    %112 = arith.truncf %111 : vector<4x16x16xf32> to vector<4x16x16xbf16>
    %113 = arith.truncf %96 : vector<4x16x32xf32> to vector<4x16x32xbf16>
    "tpu.trace_start"() <{level = 10 : i32, message = "hqk,hkd->hqd"}> : () -> ()
    %cst_43 = arith.constant dense<0.000000e+00> : vector<4x16x32xf32>
    %114 = tpu.matmul %112, %113, %cst_43 {dimension_numbers = #tpu.dot_dimension_numbers<[2], [1], [1], [2], [0, 0, 0, 1, 1, 2], [0], [0]>} : vector<4x16x16xbf16>, vector<4x16x32xbf16>, vector<4x16x32xf32> -> vector<4x16x32xf32>
    "tpu.trace_stop"() : () -> ()
    %115 = tpu.transpose %114, [1, 0, 2] : vector<4x16x32xf32> -> vector<16x4x32xf32>
    %116 = vector.shape_cast %115 : vector<16x4x32xf32> to vector<16x128xf32>
    %117 = arith.truncf %116 : vector<16x128xf32> to vector<16x128xbf16>
    %c0_44 = arith.constant 0 : index
    %c0_45 = arith.constant 0 : index
    %118 = vector.load %arg11[%c0_44, %c0_45] : memref<128x128xbf16, #tpu.memory_space<vmem>>, vector<128x128xbf16>
    %cst_46 = arith.constant dense<0.000000e+00> : vector<16x128xf32>
    %119 = tpu.matmul %117, %118, %cst_46 {dimension_numbers = #tpu.dot_dimension_numbers<[1], [0], [0], [1], [0, 0, 1, 1], [], []>} : vector<16x128xbf16>, vector<128x128xbf16>, vector<16x128xf32> -> vector<16x128xf32>
    %c0_47 = arith.constant 0 : index
    %c0_48 = arith.constant 0 : index
    %120 = vector.load %arg12[%c0_47, %c0_48] : memref<1x128xf32, #tpu.memory_space<vmem>>, vector<1x128xf32>
    %121 = vector.broadcast %120 : vector<1x128xf32> to vector<16x128xf32>
    %122 = arith.addf %119, %121 : vector<16x128xf32>
    %123 = arith.addf %76, %122 : vector<16x128xf32>
    %c0_49 = arith.constant 0 : index
    %c0_50 = arith.constant 0 : index
    %124 = vector.load %arg19[%c0_49, %c0_50] : memref<1x128xf32, #tpu.memory_space<vmem>>, vector<1x128xf32>
    %c0_51 = arith.constant 0 : index
    %c0_52 = arith.constant 0 : index
    %125 = vector.load %arg20[%c0_51, %c0_52] : memref<1x128xf32, #tpu.memory_space<vmem>>, vector<1x128xf32>
    %cst_53 = arith.constant dense<0.000000e+00> : vector<16xf32>
    %126 = vector.multi_reduction <add>, %123, %cst_53 [1] : vector<16x128xf32> to vector<16xf32>
    %127 = vector.shape_cast %126 : vector<16xf32> to vector<16x1xf32>
    %cst_54 = arith.constant 1.280000e+02 : f32
    %128 = vector.broadcast %cst_54 : f32 to vector<16x1xf32>
    %129 = arith.divf %127, %128 : vector<16x1xf32>
    %130 = vector.broadcast %129 : vector<16x1xf32> to vector<16x128xf32>
    %131 = arith.subf %123, %130 : vector<16x128xf32>
    %132 = arith.mulf %131, %131 : vector<16x128xf32>
    %cst_55 = arith.constant dense<0.000000e+00> : vector<16xf32>
    %133 = vector.multi_reduction <add>, %132, %cst_55 [1] : vector<16x128xf32> to vector<16xf32>
    %134 = vector.shape_cast %133 : vector<16xf32> to vector<16x1xf32>
    %cst_56 = arith.constant 1.280000e+02 : f32
    %135 = vector.broadcast %cst_56 : f32 to vector<16x1xf32>
    %136 = arith.divf %134, %135 : vector<16x1xf32>
    %137 = vector.broadcast %129 : vector<16x1xf32> to vector<16x128xf32>
    %138 = arith.subf %123, %137 : vector<16x128xf32>
    %cst_57 = arith.constant 9.99999974E-6 : f32
    %139 = vector.broadcast %cst_57 : f32 to vector<16x1xf32>
    %140 = arith.addf %136, %139 : vector<16x1xf32>
    %141 = math.rsqrt %140 : vector<16x1xf32>
    %142 = vector.broadcast %141 : vector<16x1xf32> to vector<16x128xf32>
    %143 = arith.mulf %138, %142 : vector<16x128xf32>
    %144 = vector.broadcast %124 : vector<1x128xf32> to vector<16x128xf32>
    %145 = arith.mulf %143, %144 : vector<16x128xf32>
    %146 = vector.broadcast %125 : vector<1x128xf32> to vector<16x128xf32>
    %147 = arith.addf %145, %146 : vector<16x128xf32>
    %148 = arith.truncf %147 : vector<16x128xf32> to vector<16x128xbf16>
    %c0_58 = arith.constant 0 : index
    %c0_59 = arith.constant 0 : index
    %149 = vector.load %arg13[%c0_58, %c0_59] : memref<128x256xbf16, #tpu.memory_space<vmem>>, vector<128x256xbf16>
    %cst_60 = arith.constant dense<0.000000e+00> : vector<16x256xf32>
    %150 = tpu.matmul %148, %149, %cst_60 {dimension_numbers = #tpu.dot_dimension_numbers<[1], [0], [0], [1], [0, 0, 1, 1], [], []>} : vector<16x128xbf16>, vector<128x256xbf16>, vector<16x256xf32> -> vector<16x256xf32>
    %c0_61 = arith.constant 0 : index
    %c0_62 = arith.constant 0 : index
    %151 = vector.load %arg14[%c0_61, %c0_62] : memref<1x256xf32, #tpu.memory_space<vmem>>, vector<1x256xf32>
    %152 = vector.broadcast %151 : vector<1x256xf32> to vector<16x256xf32>
    %153 = arith.addf %150, %152 : vector<16x256xf32>
    %cst_63 = arith.constant 0.000000e+00 : f32
    %154 = vector.broadcast %cst_63 : f32 to vector<16x256xf32>
    %155 = arith.maximumf %153, %154 : vector<16x256xf32>
    %156 = arith.truncf %155 : vector<16x256xf32> to vector<16x256xbf16>
    %c0_64 = arith.constant 0 : index
    %c0_65 = arith.constant 0 : index
    %157 = vector.load %arg15[%c0_64, %c0_65] : memref<256x128xbf16, #tpu.memory_space<vmem>>, vector<256x128xbf16>
    %cst_66 = arith.constant dense<0.000000e+00> : vector<16x128xf32>
    %158 = tpu.matmul %156, %157, %cst_66 {dimension_numbers = #tpu.dot_dimension_numbers<[1], [0], [0], [1], [0, 0, 1, 1], [], []>} : vector<16x256xbf16>, vector<256x128xbf16>, vector<16x128xf32> -> vector<16x128xf32>
    %c0_67 = arith.constant 0 : index
    %c0_68 = arith.constant 0 : index
    %159 = vector.load %arg16[%c0_67, %c0_68] : memref<1x128xf32, #tpu.memory_space<vmem>>, vector<1x128xf32>
    %160 = vector.broadcast %159 : vector<1x128xf32> to vector<16x128xf32>
    %161 = arith.addf %158, %160 : vector<16x128xf32>
    %162 = arith.addf %147, %161 : vector<16x128xf32>
    %c0_69 = arith.constant 0 : index
    %c0_70 = arith.constant 0 : index
    %163 = vector.load %arg21[%c0_69, %c0_70] : memref<1x128xf32, #tpu.memory_space<vmem>>, vector<1x128xf32>
    %c0_71 = arith.constant 0 : index
    %c0_72 = arith.constant 0 : index
    %164 = vector.load %arg22[%c0_71, %c0_72] : memref<1x128xf32, #tpu.memory_space<vmem>>, vector<1x128xf32>
    %cst_73 = arith.constant dense<0.000000e+00> : vector<16xf32>
    %165 = vector.multi_reduction <add>, %162, %cst_73 [1] : vector<16x128xf32> to vector<16xf32>
    %166 = vector.shape_cast %165 : vector<16xf32> to vector<16x1xf32>
    %cst_74 = arith.constant 1.280000e+02 : f32
    %167 = vector.broadcast %cst_74 : f32 to vector<16x1xf32>
    %168 = arith.divf %166, %167 : vector<16x1xf32>
    %169 = vector.broadcast %168 : vector<16x1xf32> to vector<16x128xf32>
    %170 = arith.subf %162, %169 : vector<16x128xf32>
    %171 = arith.mulf %170, %170 : vector<16x128xf32>
    %cst_75 = arith.constant dense<0.000000e+00> : vector<16xf32>
    %172 = vector.multi_reduction <add>, %171, %cst_75 [1] : vector<16x128xf32> to vector<16xf32>
    %173 = vector.shape_cast %172 : vector<16xf32> to vector<16x1xf32>
    %cst_76 = arith.constant 1.280000e+02 : f32
    %174 = vector.broadcast %cst_76 : f32 to vector<16x1xf32>
    %175 = arith.divf %173, %174 : vector<16x1xf32>
    %176 = vector.broadcast %168 : vector<16x1xf32> to vector<16x128xf32>
    %177 = arith.subf %162, %176 : vector<16x128xf32>
    %cst_77 = arith.constant 9.99999974E-6 : f32
    %178 = vector.broadcast %cst_77 : f32 to vector<16x1xf32>
    %179 = arith.addf %175, %178 : vector<16x1xf32>
    %180 = math.rsqrt %179 : vector<16x1xf32>
    %181 = vector.broadcast %180 : vector<16x1xf32> to vector<16x128xf32>
    %182 = arith.mulf %177, %181 : vector<16x128xf32>
    %183 = vector.broadcast %163 : vector<1x128xf32> to vector<16x128xf32>
    %184 = arith.mulf %182, %183 : vector<16x128xf32>
    %185 = vector.broadcast %164 : vector<1x128xf32> to vector<16x128xf32>
    %186 = arith.addf %184, %185 : vector<16x128xf32>
    %c0_78 = arith.constant 0 : index
    %c0_79 = arith.constant 0 : index
    %c0_80 = arith.constant 0 : index
    %187 = vector.load %arg23[%c0_78, %c0_79, %c0_80] : memref<1x16x128xf32, #tpu.memory_space<vmem>>, vector<1x16x128xf32>
    %188 = vector.shape_cast %187 : vector<1x16x128xf32> to vector<16x128xf32>
    %189 = vector.shape_cast %186 : vector<16x128xf32> to vector<1x16x128xf32>
    tpu.vector_store %arg23[%c0_78, %c0_79, %c0_80], %189 {strides = array<i32>} : memref<1x16x128xf32, #tpu.memory_space<vmem>>, vector<1x16x128xf32>,
    return
  }
  func.func @transform_0(%arg0: i32) -> (i32, i32, i32) {
    %c0_i32 = arith.constant 0 : i32
    %c0_i32_0 = arith.constant 0 : i32
    %c0_i32_1 = arith.constant 0 : i32
    return %arg0, %c0_i32, %c0_i32_0 : i32, i32, i32
  }
  func.func @transform_1(%arg0: i32) -> (i32, i32, i32) {
    %c0_i32 = arith.constant 0 : i32
    %c0_i32_0 = arith.constant 0 : i32
    %c0_i32_1 = arith.constant 0 : i32
    return %arg0, %c0_i32, %c0_i32_0 : i32, i32, i32
  }
  func.func @transform_2(%arg0: i32) -> (i32, i32) {
    %c0_i32 = arith.constant 0 : i32
    %c0_i32_0 = arith.constant 0 : i32
    %c0_i32_1 = arith.constant 0 : i32
    return %c0_i32, %c0_i32_0 : i32, i32
  }
  func.func @transform_3(%arg0: i32) -> (i32, i32) {
    %c0_i32 = arith.constant 0 : i32
    %c0_i32_0 = arith.constant 0 : i32
    %c0_i32_1 = arith.constant 0 : i32
    return %c0_i32, %c0_i32_0 : i32, i32
  }
  func.func @transform_4(%arg0: i32) -> (i32, i32) {
    %c0_i32 = arith.constant 0 : i32
    %c0_i32_0 = arith.constant 0 : i32
    %c0_i32_1 = arith.constant 0 : i32
    return %c0_i32, %c0_i32_0 : i32, i32
  }
  func.func @transform_5(%arg0: i32) -> (i32, i32) {
    %c0_i32 = arith.constant 0 : i32
    %c0_i32_0 = arith.constant 0 : i32
    %c0_i32_1 = arith.constant 0 : i32
    return %c0_i32, %c0_i32_0 : i32, i32
  }
  func.func @transform_6(%arg0: i32) -> (i32, i32) {
    %c0_i32 = arith.constant 0 : i32
    %c0_i32_0 = arith.constant 0 : i32
    %c0_i32_1 = arith.constant 0 : i32
    return %c0_i32, %c0_i32_0 : i32, i32
  }
  func.func @transform_7(%arg0: i32) -> (i32, i32) {
    %c0_i32 = arith.constant 0 : i32
    %c0_i32_0 = arith.constant 0 : i32
    %c0_i32_1 = arith.constant 0 : i32
    return %c0_i32, %c0_i32_0 : i32, i32
  }
  func.func @transform_8(%arg0: i32) -> (i32, i32) {
    %c0_i32 = arith.constant 0 : i32
    %c0_i32_0 = arith.constant 0 : i32
    %c0_i32_1 = arith.constant 0 : i32
    return %c0_i32, %c0_i32_0 : i32, i32
  }
  func.func @transform_9(%arg0: i32) -> (i32, i32) {
    %c0_i32 = arith.constant 0 : i32
    %c0_i32_0 = arith.constant 0 : i32
    %c0_i32_1 = arith.constant 0 : i32
    return %c0_i32, %c0_i32_0 : i32, i32
  }
  func.func @transform_10(%arg0: i32) -> (i32, i32) {
    %c0_i32 = arith.constant 0 : i32
    %c0_i32_0 = arith.constant 0 : i32
    %c0_i32_1 = arith.constant 0 : i32
    return %c0_i32, %c0_i32_0 : i32, i32
  }
  func.func @transform_11(%arg0: i32) -> (i32, i32) {
    %c0_i32 = arith.constant 0 : i32
    %c0_i32_0 = arith.constant 0 : i32
    %c0_i32_1 = arith.constant 0 : i32
    return %c0_i32, %c0_i32_0 : i32, i32
  }
  func.func @transform_12(%arg0: i32) -> (i32, i32) {
    %c0_i32 = arith.constant 0 : i32
    %c0_i32_0 = arith.constant 0 : i32
    %c0_i32_1 = arith.constant 0 : i32
    return %c0_i32, %c0_i32_0 : i32, i32
  }
  func.func @transform_13(%arg0: i32) -> (i32, i32) {
    %c0_i32 = arith.constant 0 : i32
    %c0_i32_0 = arith.constant 0 : i32
    %c0_i32_1 = arith.constant 0 : i32
    return %c0_i32, %c0_i32_0 : i32, i32
  }
  func.func @transform_14(%arg0: i32) -> (i32, i32) {
    %c0_i32 = arith.constant 0 : i32
    %c0_i32_0 = arith.constant 0 : i32
    %c0_i32_1 = arith.constant 0 : i32
    return %c0_i32, %c0_i32_0 : i32, i32
  }
  func.func @transform_15(%arg0: i32) -> (i32, i32) {
    %c0_i32 = arith.constant 0 : i32
    %c0_i32_0 = arith.constant 0 : i32
    %c0_i32_1 = arith.constant 0 : i32
    return %c0_i32, %c0_i32_0 : i32, i32
  }
  func.func @transform_16(%arg0: i32) -> (i32, i32) {
    %c0_i32 = arith.constant 0 : i32
    %c0_i32_0 = arith.constant 0 : i32
    %c0_i32_1 = arith.constant 0 : i32
    return %c0_i32, %c0_i32_0 : i32, i32
  }
  func.func @transform_17(%arg0: i32) -> (i32, i32) {
    %c0_i32 = arith.constant 0 : i32
    %c0_i32_0 = arith.constant 0 : i32
    %c0_i32_1 = arith.constant 0 : i32
    return %c0_i32, %c0_i32_0 : i32, i32
  }
  func.func @transform_18(%arg0: i32) -> (i32, i32) {
    %c0_i32 = arith.constant 0 : i32
    %c0_i32_0 = arith.constant 0 : i32
    %c0_i32_1 = arith.constant 0 : i32
    return %c0_i32, %c0_i32_0 : i32, i32
  }
  func.func @transform_19(%arg0: i32) -> (i32, i32) {
    %c0_i32 = arith.constant 0 : i32
    %c0_i32_0 = arith.constant 0 : i32
    %c0_i32_1 = arith.constant 0 : i32
    return %c0_i32, %c0_i32_0 : i32, i32
  }
  func.func @transform_20(%arg0: i32) -> (i32, i32) {
    %c0_i32 = arith.constant 0 : i32
    %c0_i32_0 = arith.constant 0 : i32
    %c0_i32_1 = arith.constant 0 : i32
    return %c0_i32, %c0_i32_0 : i32, i32
  }
  func.func @transform_21(%arg0: i32) -> (i32, i32) {
    %c0_i32 = arith.constant 0 : i32
    %c0_i32_0 = arith.constant 0 : i32
    %c0_i32_1 = arith.constant 0 : i32
    return %c0_i32, %c0_i32_0 : i32, i32
  }
  func.func @transform_22(%arg0: i32) -> (i32, i32, i32) {
    %c0_i32 = arith.constant 0 : i32
    %c0_i32_0 = arith.constant 0 : i32
    %c0_i32_1 = arith.constant 0 : i32
    return %arg0, %c0_i32, %c0_i32_0 : i32, i32, i32
  }
}

</mosaic_0001>

<llo_original>
// kernel: my_transformer_decoder.5
$region0: #{my_transformer_decoder.5}
  #allocation0 [shape = 'u32[]', space=smem, size = 0x4, offset = 0x4, fixed_abs, tag = 'smem constant byte address 0x4 - core index']
  #allocation1 [shape = 'u32[144,128]{1,0:T(1,128)}', space=vmem, size = 0x12000, scoped, tag = 'internal scratch']
  %s0 = inlined_call_operand.hbm [shape: f32[2,16,128], index: 0, kind: input, shape index: {}]
  %s1 = inlined_call_operand.hbm [shape: f32[1,128], index: 1, kind: input, shape index: {}]
  %s2 = inlined_call_operand.hbm [shape: f32[1,128], index: 2, kind: input, shape index: {}]
  %s3 = inlined_call_operand.hbm [shape: f32[2,16,128], index: 3, kind: output, shape index: {}]
  %s4 = sld [smem:[#allocation0]]
  $region57: #{my_transformer_decoder.5} parent=0
    _
  %s6 = ssub.s32 1, %s4
  %s7 = scalar_select 0, %s6, %s4
  $region1: #{my_transformer_decoder.5} parent=0
    #allocation2 [shape = 'u8[16384]{0}', space=vmem, size = 0x4000, scoped, tag = 'input window, operand 0']
    #allocation3 [shape = 's32[2]{0}', space=sflag, size = 0x8, scoped, tag = 'scoped memory for my_transformer_decoder.5']
    #allocation4 [shape = 's32[2]{0}', space=sflag, size = 0x8, scoped, tag = 'scoped memory for my_transformer_decoder.5']
    #allocation5 [shape = 'u8[512]{0}', space=vmem, size = 0x400, scoped, tag = 'input window, operand 1, single buffered']
    #allocation6 [shape = 's32[1]{0}', space=sflag, size = 0x4, scoped, tag = 'scoped memory for my_transformer_decoder.5']
    #allocation7 [shape = 'u8[512]{0}', space=vmem, size = 0x400, scoped, tag = 'input window, operand 2, single buffered']
    #allocation8 [shape = 'u8[16384]{0}', space=vmem, size = 0x4000, scoped, tag = 'output window, operand 0']
    %8 = vsyncpa [#allocation3], 0
    %s9 = scalar_lea.sflag [#allocation3], 1
    %10 = vsyncpa %s9, 0
    %11 = vsyncpa [#allocation6], 0
    %12 = vsyncpa [#allocation4], 0
    %s13 = scalar_lea.sflag [#allocation4], 1
    %14 = vsyncpa %s13, 0
    loop: start=0, step=1, limit=4
    $region2: #{my_transformer_decoder.5} parent=1 // loop_pre_header
      _
    $region3: #{my_transformer_decoder.5} parent=1 // loop_header
      %s16 = sphi 0, %s20
      %p17 = scmp.ge.s32.totalorder %s16, 4
      %s26 = sphi 0, %s28
      %s29 = sphi 0, %s26
      %s30 = sphi 0, %s29
      %s46 = sphi 0, %s30
      %s50 = sphi 0, %s50
      %s52 = sphi 0, %s50
      %s53 = sphi 0, %s52
      %s67 = sphi 0, %s53
      %s71 = sphi 0, %s71
      %s73 = sphi 0, %s71
      %s74 = sphi 0, %s73
      %s88 = sphi 0, %s74
      %s94 = sphi 0, %s96
      %s97 = sphi 0, %s94
      %s98 = sphi 0, %s97
      %s114 = sphi 0, %s98
    $region4: #{my_transformer_decoder.5} parent=1 // loop_header_branch
      %19 = sbr.rel (%p17) target = $region8
    $region5: #{my_transformer_decoder.5} parent=1 // loop_body
      %s21 = ssub.s32 %s16, 1
      %s22 = ssub.s32 %s16, 2
      %s23 = sadd.s32 %s16, 1
      %s24 = ssub.s32 %s16, %s23
      %p25 = scmp.eq.s32.totalorder %s24, 0
      %s27 = sadd.s32 %s26, 1
      %s28 = scalar_select %p25, %s26, %s27
      %p31 = pneg %p25
      %p32 = scmp.eq.s32.totalorder %s16, 1
      %p33 = por %p31, %p32
      %p34 = scmp.ne.s32.totalorder %s26, %s29
      %p35 = scmp.eq.s32.totalorder %s16, 0
      %p36 = por %p34, %p35
      %p37 = scmp.ne.s32.totalorder %s26, %s29
      %p38 = scmp.eq.s32.totalorder %s21, 1
      %p39 = por %p37, %p38
      %p40 = scmp.ne.s32.totalorder %s29, %s30
      %p41 = scmp.eq.s32.totalorder %s21, 0
      %p42 = por %p40, %p41
      %p43 = scmp.ne.s32.totalorder %s29, %s30
      %p44 = scmp.eq.s32.totalorder %s22, 1
      %p45 = por %p43, %p44
      %p47 = scmp.ne.s32.totalorder %s30, %s46
      %p48 = scmp.eq.s32.totalorder %s22, 0
      %p49 = por %p47, %p48
      %s51 = sadd.s32 %s50, 1
      %p54 = scmp.eq.s32.totalorder %s16, 1
      %p55 = scmp.ne.s32.totalorder %s50, %s52
      %p56 = scmp.eq.s32.totalorder %s16, 0
      %p57 = por %p55, %p56
      %p58 = scmp.ne.s32.totalorder %s50, %s52
      %p59 = scmp.eq.s32.totalorder %s21, 1
      %p60 = por %p58, %p59
      %p61 = scmp.ne.s32.totalorder %s52, %s53
      %p62 = scmp.eq.s32.totalorder %s21, 0
      %p63 = por %p61, %p62
      %p64 = scmp.ne.s32.totalorder %s52, %s53
      %p65 = scmp.eq.s32.totalorder %s22, 1
      %p66 = por %p64, %p65
      %p68 = scmp.ne.s32.totalorder %s53, %s67
      %p69 = scmp.eq.s32.totalorder %s22, 0
      %p70 = por %p68, %p69
      %s72 = sadd.s32 %s71, 1
      %p75 = scmp.eq.s32.totalorder %s16, 1
      %p76 = scmp.ne.s32.totalorder %s71, %s73
      %p77 = scmp.eq.s32.totalorder %s16, 0
      %p78 = por %p76, %p77
      %p79 = scmp.ne.s32.totalorder %s71, %s73
      %p80 = scmp.eq.s32.totalorder %s21, 1
      %p81 = por %p79, %p80
      %p82 = scmp.ne.s32.totalorder %s73, %s74
      %p83 = scmp.eq.s32.totalorder %s21, 0
      %p84 = por %p82, %p83
      %p85 = scmp.ne.s32.totalorder %s73, %s74
      %p86 = scmp.eq.s32.totalorder %s22, 1
      %p87 = por %p85, %p86
      %p89 = scmp.ne.s32.totalorder %s74, %s88
      %p90 = scmp.eq.s32.totalorder %s22, 0
      %p91 = por %p89, %p90
      %s92 = ssub.s32 %s16, %s23
      %p93 = scmp.eq.s32.totalorder %s92, 0
      %s95 = sadd.s32 %s94, 1
      %s96 = scalar_select %p93, %s94, %s95
      %p99 = pneg %p93
      %p100 = scmp.eq.s32.totalorder %s16, 1
      %p101 = por %p99, %p100
      %p102 = scmp.ne.s32.totalorder %s94, %s97
      %p103 = scmp.eq.s32.totalorder %s16, 0
      %p104 = por %p102, %p103
      %p105 = scmp.ne.s32.totalorder %s94, %s97
      %p106 = scmp.eq.s32.totalorder %s21, 1
      %p107 = por %p105, %p106
      %p108 = scmp.ne.s32.totalorder %s97, %s98
      %p109 = scmp.eq.s32.totalorder %s21, 0
      %p110 = por %p108, %p109
      %p111 = scmp.ne.s32.totalorder %s97, %s98
      %p112 = scmp.eq.s32.totalorder %s22, 1
      %p113 = por %p111, %p112
      %p115 = scmp.ne.s32.totalorder %s98, %s114
      %p116 = scmp.eq.s32.totalorder %s22, 0
      %p117 = por %p115, %p116
      %p118 = scmp.le.s32.totalorder 1, %s16
      %p119 = scmp.lt.s32.totalorder %s16, 3
      %p120 = pnand %p118, %p119
      %p121 = pneg %p120
      // Predicated region
      $region9: #{my_transformer_decoder.5} parent=5 // pred_check
        _
      $region10: #{my_transformer_decoder.5} parent=5 // pred_check_branch
        %123 = sbr.rel (%p120) target = $region12
      $region11: #{my_transformer_decoder.5} parent=5 // pred_region
        %s124 = ssub.s32 %s16, 1
        // Predicated region
        $region13: #{my_transformer_decoder.5} parent=11 // pred_check
          %p125 = pneg %p63
        $region14: #{my_transformer_decoder.5} parent=11 // pred_check_branch
          %127 = sbr.rel (%p125) target = $region16
        $region15: #{my_transformer_decoder.5} parent=11 // pred_region
          %s129 = ssub.s32 16, 16
          %130 = vsyncadd [#allocation6], %s129
          %s132 = sshll.u32 [#allocation5], 4
          %s133 = int_to_ptr.vmem [resolvable:$true] %s132
          %135 = dma.hbm_to_vmem [thread:$0]  %s1, 16, %s133, [#allocation6]
        $region16: #{my_transformer_decoder.5} parent=11 // pred_fallthru
          _
        // Predicated region
        $region17: #{my_transformer_decoder.5} parent=11 // pred_check
          %p136 = pneg %p84
        $region18: #{my_transformer_decoder.5} parent=11 // pred_check_branch
          %138 = sbr.rel (%p136) target = $region20
        $region19: #{my_transformer_decoder.5} parent=11 // pred_region
          %s140 = ssub.s32 16, 16
          %141 = vsyncadd [#allocation6], %s140
          %s143 = sshll.u32 [#allocation7], 4
          %s144 = int_to_ptr.vmem [resolvable:$true] %s143
          %146 = dma.hbm_to_vmem [thread:$0]  %s2, 16, %s144, [#allocation6]
        $region20: #{my_transformer_decoder.5} parent=11 // pred_fallthru
          _
      $region12: #{my_transformer_decoder.5} parent=5 // pred_fallthru
        _
      %p147 = scmp.lt.s32.totalorder %s16, 2
      // Predicated region
      $region21: #{my_transformer_decoder.5} parent=5 // pred_check
        %p148 = pneg %p147
      $region22: #{my_transformer_decoder.5} parent=5 // pred_check_branch
        %150 = sbr.rel (%p148) target = $region24
      $region23: #{my_transformer_decoder.5} parent=5 // pred_region
        // Predicated region
        $region25: #{my_transformer_decoder.5} parent=23 // pred_check
          %p151 = pneg %p36
        $region26: #{my_transformer_decoder.5} parent=23 // pred_check_branch
          %153 = sbr.rel (%p151) target = $region28
        $region27: #{my_transformer_decoder.5} parent=23 // pred_region
          %s154 = sand.u32 %s26, 1
          %s155 = scalar_lea.sflag [#allocation3], %s154
          %s156 = sand.u32 %s26, 1
          %s157 = smul.addr %s156, 16
          %s158 = scalar_lea.vmem [#allocation2], %s157
          %s160 = ssub.s32 256, 256
          %161 = vsyncadd %s155, %s160
          %s162 = smul.addr %s16, 2
          %s163 = smul.addr %s162, 128
          %s164 = scalar_lea.hbm %s0, %s163
          %s165 = sshll.u32 %s158, 4
          %s166 = int_to_ptr.vmem [resolvable:$true] %s165
          %171 = dma.hbm_to_vmem [thread:$0]  %s164, 256, %s166, %s155, 128, 128, 8
        $region28: #{my_transformer_decoder.5} parent=23 // pred_fallthru
          _
      $region24: #{my_transformer_decoder.5} parent=5 // pred_fallthru
        _
      %p172 = scmp.le.s32.totalorder 1, %s16
      %p173 = scmp.lt.s32.totalorder %s16, 3
      %p174 = pnand %p172, %p173
      %p175 = pneg %p174
      // Predicated region
      $region29: #{my_transformer_decoder.5} parent=5 // pred_check
        _
      $region30: #{my_transformer_decoder.5} parent=5 // pred_check_branch
        %177 = sbr.rel (%p174) target = $region32
      $region31: #{my_transformer_decoder.5} parent=5 // pred_region
        %s178 = ssub.s32 %s16, 1
        %s179 = sand.u32 %s29, 1
        %s180 = scalar_lea.sflag [#allocation3], %s179
        %s181 = sand.u32 %s29, 1
        %s182 = smul.addr %s181, 16
        %s183 = scalar_lea.vmem [#allocation2], %s182
        // Predicated region
        $region33: #{my_transformer_decoder.5} parent=31 // pred_check
          %p184 = pneg %p42
        $region34: #{my_transformer_decoder.5} parent=31 // pred_check_branch
          %186 = sbr.rel (%p184) target = $region36
        $region35: #{my_transformer_decoder.5} parent=31 // pred_region
          %187 = dma.done %s180, 256
        $region36: #{my_transformer_decoder.5} parent=31 // pred_fallthru
          _
        // Predicated region
        $region37: #{my_transformer_decoder.5} parent=31 // pred_check
          %p188 = pneg %p63
        $region38: #{my_transformer_decoder.5} parent=31 // pred_check_branch
          %190 = sbr.rel (%p188) target = $region40
        $region39: #{my_transformer_decoder.5} parent=31 // pred_region
          %191 = dma.done [#allocation6], 16
        $region40: #{my_transformer_decoder.5} parent=31 // pred_fallthru
          _
        // Predicated region
        $region41: #{my_transformer_decoder.5} parent=31 // pred_check
          %p192 = pneg %p84
        $region42: #{my_transformer_decoder.5} parent=31 // pred_check_branch
          %194 = sbr.rel (%p192) target = $region44
        $region43: #{my_transformer_decoder.5} parent=31 // pred_region
          %195 = dma.done [#allocation6], 16
        $region44: #{my_transformer_decoder.5} parent=31 // pred_fallthru
          _
        %s196 = sand.u32 %s29, 1
        %s197 = scalar_lea.sflag [#allocation3], %s196
        %s198 = sand.u32 %s29, 1
        %s199 = smul.addr %s198, 16
        %s200 = scalar_lea.vmem [#allocation2], %s199
        %p201 = pneg %p42
        %p202 = pneg %p39
        %p203 = pneg %p63
        %p204 = pneg %p60
        %p205 = pneg %p84
        %p206 = pneg %p81
        %p207 = pneg %p110
        %p208 = pneg %p107
        %s209 = sand.u32 %s97, 1
        %s210 = scalar_lea.sflag [#allocation4], %s209
        %s211 = sand.u32 %s97, 1
        %s212 = smul.addr %s211, 16
        %s213 = scalar_lea.vmem [#allocation8], %s212
        %v214 = vld [vmem:[%s183] sm:$0xff]
        %v215 = vld [vmem:[%s183 + $0x8] sm:$0xff]
        %v216 = vld [vmem:[#allocation5] sm:$0x1]
        %v217 = vld [vmem:[#allocation7] sm:$0x1]
        %218 = vadd.xlane.f32.xlu0 %v214
        %v219 = vpop.xlane.xlu0 %218
        %220 = vadd.xlane.f32.xlu0 %v215
        %v221 = vpop.xlane.xlu0 %220
        %v222 = vrcp.pop 128.0
        %v223 = vmul.f32 %v219, %v222
        %v224 = vmul.f32 %v221, %v222
        %v225 = vsub.f32 %v214, %v223
        %v226 = vsub.f32 %v215, %v224
        %v227 = vmul.f32 %v225, %v225
        %v228 = vmul.f32 %v226, %v226
        %229 = vadd.xlane.f32.xlu0 %v227
        %v230 = vpop.xlane.xlu0 %229
        %231 = vadd.xlane.f32.xlu0 %v228
        %v232 = vpop.xlane.xlu0 %231
        %v233 = vmul.f32 %v230, %v222
        %v234 = vmul.f32 %v232, %v222
        %v235 = vadd.f32 %v233, 1e-05
        %v236 = vadd.f32 %v234, 1e-05
        %v237 = vrsqrt.pop %v235
        %v238 = vrsqrt.pop %v236
        %v239 = vmul.f32 %v225, %v237
        %v240 = vmul.f32 %v226, %v238
        %v242 = vlaneseq
        %v243 = vshrl.u32 %v242, 7
        %v244 = vsub.s32 0, %v243
        %v245 = vrot.slane %v216, %v244
        %v247 = vmul.f32 %v239, %v245
        %v248 = vmul.f32 %v240, %v245
        %v250 = vlaneseq
        %v251 = vshrl.u32 %v250, 7
        %v252 = vsub.s32 0, %v251
        %v253 = vrot.slane %v217, %v252
        %v255 = vadd.f32 %v247, %v253
        %v256 = vadd.f32 %v248, %v253
        %257 = vst [vmem:[%s213] sm:$0xff] %v255
        %258 = vst [vmem:[%s213 + $0x8] sm:$0xff] %v256
        %s259 = sand.u32 %s97, 1
        %s260 = scalar_lea.sflag [#allocation4], %s259
        %s261 = sand.u32 %s97, 1
        %s262 = smul.addr %s261, 16
        %s263 = scalar_lea.vmem [#allocation8], %s262
        // Predicated region
        $region45: #{my_transformer_decoder.5} parent=31 // pred_check
          %p264 = pneg %p107
        $region46: #{my_transformer_decoder.5} parent=31 // pred_check_branch
          %266 = sbr.rel (%p264) target = $region48
        $region47: #{my_transformer_decoder.5} parent=31 // pred_region
          %s268 = ssub.s32 256, 256
          %269 = vsyncadd %s260, %s268
          %s270 = smul.addr %s21, 2
          %s271 = smul.addr %s270, 128
          %s272 = scalar_lea.hbm %s3, %s271
          %s273 = sshll.u32 %s263, 4
          %s274 = int_to_ptr.vmem [resolvable:$true] %s273
          %279 = dma.vmem_to_hbm [thread:$0]  %s274, 256, %s272, %s260, 128, 128, 8
        $region48: #{my_transformer_decoder.5} parent=31 // pred_fallthru
          _
      $region32: #{my_transformer_decoder.5} parent=5 // pred_fallthru
        _
      %p280 = scmp.le.s32.totalorder 2, %s16
      // Predicated region
      $region49: #{my_transformer_decoder.5} parent=5 // pred_check
        %p281 = pneg %p280
      $region50: #{my_transformer_decoder.5} parent=5 // pred_check_branch
        %283 = sbr.rel (%p281) target = $region52
      $region51: #{my_transformer_decoder.5} parent=5 // pred_region
        %s284 = ssub.s32 %s16, 2
        // Predicated region
        $region53: #{my_transformer_decoder.5} parent=51 // pred_check
          %p285 = pneg %p113
        $region54: #{my_transformer_decoder.5} parent=51 // pred_check_branch
          %287 = sbr.rel (%p285) target = $region56
        $region55: #{my_transformer_decoder.5} parent=51 // pred_region
          %s288 = sand.u32 %s98, 1
          %s289 = scalar_lea.sflag [#allocation4], %s288
          %s290 = sand.u32 %s98, 1
          %s291 = smul.addr %s290, 16
          %s292 = scalar_lea.vmem [#allocation8], %s291
          %293 = dma.done %s289, 256
        $region56: #{my_transformer_decoder.5} parent=51 // pred_fallthru
          _
      $region52: #{my_transformer_decoder.5} parent=5 // pred_fallthru
        _
    $region6: #{my_transformer_decoder.5} parent=1 // loop_footer
      %s20 = sadd.s32 1, %s16
    $region7: #{my_transformer_decoder.5} parent=1 // loop_footer_branch
      %15 = sbr.rel target = $region3
    $region8: #{my_transformer_decoder.5} parent=1 // loop_exit
      _
    %294 = vsyncpa [#allocation3], 1
    %s295 = scalar_lea.sflag [#allocation3], 1
    %296 = vsyncpa %s295, 1
    %297 = vsyncpa [#allocation6], 1
    %298 = vsyncpa [#allocation4], 1
    %s299 = scalar_lea.sflag [#allocation4], 1
    %300 = vsyncpa %s299, 1

// kernel: my_transformer_decoder.3
$region0: #{my_transformer_decoder.3}
  #allocation0 [shape = 'u32[]', space=smem, size = 0x4, offset = 0x4, fixed_abs, tag = 'smem constant byte address 0x4 - core index']
  #allocation1 [shape = 'u32[144,128]{1,0:T(1,128)}', space=vmem, size = 0x12000, scoped, tag = 'internal scratch']
  %s0 = inlined_call_operand.hbm [shape: f32[2,16,128], index: 0, kind: input, shape index: {}]
  %s1 = inlined_call_operand.hbm [shape: f32[2,16,128], index: 1, kind: input, shape index: {}]
  %s2 = inlined_call_operand.hbm [shape: bf16[128,384], index: 2, kind: input, shape index: {}]
  %s3 = inlined_call_operand.hbm [shape: f32[1,384], index: 3, kind: input, shape index: {}]
  %s4 = inlined_call_operand.hbm [shape: bf16[128,128], index: 4, kind: input, shape index: {}]
  %s5 = inlined_call_operand.hbm [shape: f32[1,128], index: 5, kind: input, shape index: {}]
  %s6 = inlined_call_operand.hbm [shape: bf16[128,128], index: 6, kind: input, shape index: {}]
  %s7 = inlined_call_operand.hbm [shape: f32[1,128], index: 7, kind: input, shape index: {}]
  %s8 = inlined_call_operand.hbm [shape: bf16[128,256], index: 8, kind: input, shape index: {}]
  %s9 = inlined_call_operand.hbm [shape: f32[1,256], index: 9, kind: input, shape index: {}]
  %s10 = inlined_call_operand.hbm [shape: bf16[128,128], index: 10, kind: input, shape index: {}]
  %s11 = inlined_call_operand.hbm [shape: f32[1,128], index: 11, kind: input, shape index: {}]
  %s12 = inlined_call_operand.hbm [shape: bf16[128,256], index: 12, kind: input, shape index: {}]
  %s13 = inlined_call_operand.hbm [shape: f32[1,256], index: 13, kind: input, shape index: {}]
  %s14 = inlined_call_operand.hbm [shape: bf16[256,128], index: 14, kind: input, shape index: {}]
  %s15 = inlined_call_operand.hbm [shape: f32[1,128], index: 15, kind: input, shape index: {}]
  %s16 = inlined_call_operand.hbm [shape: f32[1,128], index: 16, kind: input, shape index: {}]
  %s17 = inlined_call_operand.hbm [shape: f32[1,128], index: 17, kind: input, shape index: {}]
  %s18 = inlined_call_operand.hbm [shape: f32[1,128], index: 18, kind: input, shape index: {}]
  %s19 = inlined_call_operand.hbm [shape: f32[1,128], index: 19, kind: input, shape index: {}]
  %s20 = inlined_call_operand.hbm [shape: f32[1,128], index: 20, kind: input, shape index: {}]
  %s21 = inlined_call_operand.hbm [shape: f32[1,128], index: 21, kind: input, shape index: {}]
  %s22 = inlined_call_operand.hbm [shape: f32[2,16,128], index: 22, kind: output, shape index: {}]
  %s23 = sld [smem:[#allocation0]]
  $region209: #{my_transformer_decoder.3} parent=0
    _
  %s25 = ssub.s32 1, %s23
  %s26 = scalar_select 0, %s25, %s23
  $region1: #{my_transformer_decoder.3} parent=0
    #allocation2 [shape = 'u8[16384]{0}', space=vmem, size = 0x4000, scoped, tag = 'input window, operand 0']
    #allocation3 [shape = 's32[2]{0}', space=sflag, size = 0x8, scoped, tag = 'scoped memory for my_transformer_decoder.3']
    #allocation4 [shape = 's32[2]{0}', space=sflag, size = 0x8, scoped, tag = 'scoped memory for my_transformer_decoder.3']
    #allocation5 [shape = 'u8[16384]{0}', space=vmem, size = 0x4000, scoped, tag = 'input window, operand 1']
    #allocation6 [shape = 's32[2]{0}', space=sflag, size = 0x8, scoped, tag = 'scoped memory for my_transformer_decoder.3']
    #allocation7 [shape = 'u8[98304]{0}', space=vmem, size = 0x18000, scoped, tag = 'input window, operand 2, single buffered']
    #allocation8 [shape = 'u8[1536]{0}', space=vmem, size = 0x800, scoped, tag = 'input window, operand 3, single buffered']
    #allocation9 [shape = 's32[1]{0}', space=sflag, size = 0x4, scoped, tag = 'scoped memory for my_transformer_decoder.3']
    #allocation10 [shape = 'u8[32768]{0}', space=vmem, size = 0x8000, scoped, tag = 'input window, operand 4, single buffered']
    #allocation11 [shape = 'u8[512]{0}', space=vmem, size = 0x400, scoped, tag = 'input window, operand 5, single buffered']
    #allocation12 [shape = 's32[1]{0}', space=sflag, size = 0x4, scoped, tag = 'scoped memory for my_transformer_decoder.3']
    #allocation13 [shape = 'u8[32768]{0}', space=vmem, size = 0x8000, scoped, tag = 'input window, operand 6, single buffered']
    #allocation14 [shape = 'u8[512]{0}', space=vmem, size = 0x400, scoped, tag = 'input window, operand 7, single buffered']
    #allocation15 [shape = 's32[1]{0}', space=sflag, size = 0x4, scoped, tag = 'scoped memory for my_transformer_decoder.3']
    #allocation16 [shape = 'u8[65536]{0}', space=vmem, size = 0x10000, scoped, tag = 'input window, operand 8, single buffered']
    #allocation17 [shape = 'u8[1024]{0}', space=vmem, size = 0x400, scoped, tag = 'input window, operand 9, single buffered']
    #allocation18 [shape = 's32[1]{0}', space=sflag, size = 0x4, scoped, tag = 'scoped memory for my_transformer_decoder.3']
    #allocation19 [shape = 'u8[32768]{0}', space=vmem, size = 0x8000, scoped, tag = 'input window, operand 10, single buffered']
    #allocation20 [shape = 'u8[512]{0}', space=vmem, size = 0x400, scoped, tag = 'input window, operand 11, single buffered']
    #allocation21 [shape = 's32[1]{0}', space=sflag, size = 0x4, scoped, tag = 'scoped memory for my_transformer_decoder.3']
    #allocation22 [shape = 'u8[65536]{0}', space=vmem, size = 0x10000, scoped, tag = 'input window, operand 12, single buffered']
    #allocation23 [shape = 'u8[1024]{0}', space=vmem, size = 0x400, scoped, tag = 'input window, operand 13, single buffered']
    #allocation24 [shape = 's32[1]{0}', space=sflag, size = 0x4, scoped, tag = 'scoped memory for my_transformer_decoder.3']
    #allocation25 [shape = 'u8[65536]{0}', space=vmem, size = 0x10000, scoped, tag = 'input window, operand 14, single buffered']
    #allocation26 [shape = 'u8[512]{0}', space=vmem, size = 0x400, scoped, tag = 'input window, operand 15, single buffered']
    #allocation27 [shape = 's32[1]{0}', space=sflag, size = 0x4, scoped, tag = 'scoped memory for my_transformer_decoder.3']
    #allocation28 [shape = 'u8[512]{0}', space=vmem, size = 0x400, scoped, tag = 'input window, operand 16, single buffered']
    #allocation29 [shape = 'u8[512]{0}', space=vmem, size = 0x400, scoped, tag = 'input window, operand 17, single buffered']
    #allocation30 [shape = 's32[1]{0}', space=sflag, size = 0x4, scoped, tag = 'scoped memory for my_transformer_decoder.3']
    #allocation31 [shape = 'u8[512]{0}', space=vmem, size = 0x400, scoped, tag = 'input window, operand 18, single buffered']
    #allocation32 [shape = 'u8[512]{0}', space=vmem, size = 0x400, scoped, tag = 'input window, operand 19, single buffered']
    #allocation33 [shape = 's32[1]{0}', space=sflag, size = 0x4, scoped, tag = 'scoped memory for my_transformer_decoder.3']
    #allocation34 [shape = 'u8[512]{0}', space=vmem, size = 0x400, scoped, tag = 'input window, operand 20, single buffered']
    #allocation35 [shape = 'u8[512]{0}', space=vmem, size = 0x400, scoped, tag = 'input window, operand 21, single buffered']
    #allocation36 [shape = 's32[1]{0}', space=sflag, size = 0x4, scoped, tag = 'scoped memory for my_transformer_decoder.3']
    #allocation37 [shape = 'u8[16384]{0}', space=vmem, size = 0x4000, scoped, tag = 'output window, operand 0']
    %27 = vsyncpa [#allocation3], 0
    %s28 = scalar_lea.sflag [#allocation3], 1
    %29 = vsyncpa %s28, 0
    %30 = vsyncpa [#allocation6], 0
    %s31 = scalar_lea.sflag [#allocation6], 1
    %32 = vsyncpa %s31, 0
    %33 = vsyncpa [#allocation9], 0
    %34 = vsyncpa [#allocation12], 0
    %35 = vsyncpa [#allocation15], 0
    %36 = vsyncpa [#allocation18], 0
    %37 = vsyncpa [#allocation21], 0
    %38 = vsyncpa [#allocation24], 0
    %39 = vsyncpa [#allocation27], 0
    %40 = vsyncpa [#allocation30], 0
    %41 = vsyncpa [#allocation33], 0
    %42 = vsyncpa [#allocation36], 0
    %43 = vsyncpa [#allocation4], 0
    %s44 = scalar_lea.sflag [#allocation4], 1
    %45 = vsyncpa %s44, 0
    loop: start=0, step=1, limit=4
    $region2: #{my_transformer_decoder.3} parent=1 // loop_pre_header
      _
    $region3: #{my_transformer_decoder.3} parent=1 // loop_header
      %s47 = sphi 0, %s51
      %p48 = scmp.ge.s32.totalorder %s47, 4
      %s57 = sphi 0, %s59
      %s60 = sphi 0, %s57
      %s61 = sphi 0, %s60
      %s77 = sphi 0, %s61
      %s83 = sphi 0, %s85
      %s86 = sphi 0, %s83
      %s87 = sphi 0, %s86
      %s103 = sphi 0, %s87
      %s107 = sphi 0, %s107
      %s109 = sphi 0, %s107
      %s110 = sphi 0, %s109
      %s124 = sphi 0, %s110
      %s128 = sphi 0, %s128
      %s130 = sphi 0, %s128
      %s131 = sphi 0, %s130
      %s145 = sphi 0, %s131
      %s149 = sphi 0, %s149
      %s151 = sphi 0, %s149
      %s152 = sphi 0, %s151
      %s166 = sphi 0, %s152
      %s170 = sphi 0, %s170
      %s172 = sphi 0, %s170
      %s173 = sphi 0, %s172
      %s187 = sphi 0, %s173
      %s191 = sphi 0, %s191
      %s193 = sphi 0, %s191
      %s194 = sphi 0, %s193
      %s208 = sphi 0, %s194
      %s212 = sphi 0, %s212
      %s214 = sphi 0, %s212
      %s215 = sphi 0, %s214
      %s229 = sphi 0, %s215
      %s233 = sphi 0, %s233
      %s235 = sphi 0, %s233
      %s236 = sphi 0, %s235
      %s250 = sphi 0, %s236
      %s254 = sphi 0, %s254
      %s256 = sphi 0, %s254
      %s257 = sphi 0, %s256
      %s271 = sphi 0, %s257
      %s275 = sphi 0, %s275
      %s277 = sphi 0, %s275
      %s278 = sphi 0, %s277
      %s292 = sphi 0, %s278
      %s296 = sphi 0, %s296
      %s298 = sphi 0, %s296
      %s299 = sphi 0, %s298
      %s313 = sphi 0, %s299
      %s317 = sphi 0, %s317
      %s319 = sphi 0, %s317
      %s320 = sphi 0, %s319
      %s334 = sphi 0, %s320
      %s338 = sphi 0, %s338
      %s340 = sphi 0, %s338
      %s341 = sphi 0, %s340
      %s355 = sphi 0, %s341
      %s359 = sphi 0, %s359
      %s361 = sphi 0, %s359
      %s362 = sphi 0, %s361
      %s376 = sphi 0, %s362
      %s380 = sphi 0, %s380
      %s382 = sphi 0, %s380
      %s383 = sphi 0, %s382
      %s397 = sphi 0, %s383
      %s401 = sphi 0, %s401
      %s403 = sphi 0, %s401
      %s404 = sphi 0, %s403
      %s418 = sphi 0, %s404
      %s422 = sphi 0, %s422
      %s424 = sphi 0, %s422
      %s425 = sphi 0, %s424
      %s439 = sphi 0, %s425
      %s443 = sphi 0, %s443
      %s445 = sphi 0, %s443
      %s446 = sphi 0, %s445
      %s460 = sphi 0, %s446
      %s464 = sphi 0, %s464
      %s466 = sphi 0, %s464
      %s467 = sphi 0, %s466
      %s481 = sphi 0, %s467
      %s485 = sphi 0, %s485
      %s487 = sphi 0, %s485
      %s488 = sphi 0, %s487
      %s502 = sphi 0, %s488
      %s506 = sphi 0, %s506
      %s508 = sphi 0, %s506
      %s509 = sphi 0, %s508
      %s523 = sphi 0, %s509
      %s529 = sphi 0, %s531
      %s532 = sphi 0, %s529
      %s533 = sphi 0, %s532
      %s549 = sphi 0, %s533
    $region4: #{my_transformer_decoder.3} parent=1 // loop_header_branch
      %50 = sbr.rel (%p48) target = $region8
    $region5: #{my_transformer_decoder.3} parent=1 // loop_body
      %s52 = ssub.s32 %s47, 1
      %s53 = ssub.s32 %s47, 2
      %s54 = sadd.s32 %s47, 1
      %s55 = ssub.s32 %s47, %s54
      %p56 = scmp.eq.s32.totalorder %s55, 0
      %s58 = sadd.s32 %s57, 1
      %s59 = scalar_select %p56, %s57, %s58
      %p62 = pneg %p56
      %p63 = scmp.eq.s32.totalorder %s47, 1
      %p64 = por %p62, %p63
      %p65 = scmp.ne.s32.totalorder %s57, %s60
      %p66 = scmp.eq.s32.totalorder %s47, 0
      %p67 = por %p65, %p66
      %p68 = scmp.ne.s32.totalorder %s57, %s60
      %p69 = scmp.eq.s32.totalorder %s52, 1
      %p70 = por %p68, %p69
      %p71 = scmp.ne.s32.totalorder %s60, %s61
      %p72 = scmp.eq.s32.totalorder %s52, 0
      %p73 = por %p71, %p72
      %p74 = scmp.ne.s32.totalorder %s60, %s61
      %p75 = scmp.eq.s32.totalorder %s53, 1
      %p76 = por %p74, %p75
      %p78 = scmp.ne.s32.totalorder %s61, %s77
      %p79 = scmp.eq.s32.totalorder %s53, 0
      %p80 = por %p78, %p79
      %s81 = ssub.s32 %s47, %s54
      %p82 = scmp.eq.s32.totalorder %s81, 0
      %s84 = sadd.s32 %s83, 1
      %s85 = scalar_select %p82, %s83, %s84
      %p88 = pneg %p82
      %p89 = scmp.eq.s32.totalorder %s47, 1
      %p90 = por %p88, %p89
      %p91 = scmp.ne.s32.totalorder %s83, %s86
      %p92 = scmp.eq.s32.totalorder %s47, 0
      %p93 = por %p91, %p92
      %p94 = scmp.ne.s32.totalorder %s83, %s86
      %p95 = scmp.eq.s32.totalorder %s52, 1
      %p96 = por %p94, %p95
      %p97 = scmp.ne.s32.totalorder %s86, %s87
      %p98 = scmp.eq.s32.totalorder %s52, 0
      %p99 = por %p97, %p98
      %p100 = scmp.ne.s32.totalorder %s86, %s87
      %p101 = scmp.eq.s32.totalorder %s53, 1
      %p102 = por %p100, %p101
      %p104 = scmp.ne.s32.totalorder %s87, %s103
      %p105 = scmp.eq.s32.totalorder %s53, 0
      %p106 = por %p104, %p105
      %s108 = sadd.s32 %s107, 1
      %p111 = scmp.eq.s32.totalorder %s47, 1
      %p112 = scmp.ne.s32.totalorder %s107, %s109
      %p113 = scmp.eq.s32.totalorder %s47, 0
      %p114 = por %p112, %p113
      %p115 = scmp.ne.s32.totalorder %s107, %s109
      %p116 = scmp.eq.s32.totalorder %s52, 1
      %p117 = por %p115, %p116
      %p118 = scmp.ne.s32.totalorder %s109, %s110
      %p119 = scmp.eq.s32.totalorder %s52, 0
      %p120 = por %p118, %p119
      %p121 = scmp.ne.s32.totalorder %s109, %s110
      %p122 = scmp.eq.s32.totalorder %s53, 1
      %p123 = por %p121, %p122
      %p125 = scmp.ne.s32.totalorder %s110, %s124
      %p126 = scmp.eq.s32.totalorder %s53, 0
      %p127 = por %p125, %p126
      %s129 = sadd.s32 %s128, 1
      %p132 = scmp.eq.s32.totalorder %s47, 1
      %p133 = scmp.ne.s32.totalorder %s128, %s130
      %p134 = scmp.eq.s32.totalorder %s47, 0
      %p135 = por %p133, %p134
      %p136 = scmp.ne.s32.totalorder %s128, %s130
      %p137 = scmp.eq.s32.totalorder %s52, 1
      %p138 = por %p136, %p137
      %p139 = scmp.ne.s32.totalorder %s130, %s131
      %p140 = scmp.eq.s32.totalorder %s52, 0
      %p141 = por %p139, %p140
      %p142 = scmp.ne.s32.totalorder %s130, %s131
      %p143 = scmp.eq.s32.totalorder %s53, 1
      %p144 = por %p142, %p143
      %p146 = scmp.ne.s32.totalorder %s131, %s145
      %p147 = scmp.eq.s32.totalorder %s53, 0
      %p148 = por %p146, %p147
      %s150 = sadd.s32 %s149, 1
      %p153 = scmp.eq.s32.totalorder %s47, 1
      %p154 = scmp.ne.s32.totalorder %s149, %s151
      %p155 = scmp.eq.s32.totalorder %s47, 0
      %p156 = por %p154, %p155
      %p157 = scmp.ne.s32.totalorder %s149, %s151
      %p158 = scmp.eq.s32.totalorder %s52, 1
      %p159 = por %p157, %p158
      %p160 = scmp.ne.s32.totalorder %s151, %s152
      %p161 = scmp.eq.s32.totalorder %s52, 0
      %p162 = por %p160, %p161
      %p163 = scmp.ne.s32.totalorder %s151, %s152
      %p164 = scmp.eq.s32.totalorder %s53, 1
      %p165 = por %p163, %p164
      %p167 = scmp.ne.s32.totalorder %s152, %s166
      %p168 = scmp.eq.s32.totalorder %s53, 0
      %p169 = por %p167, %p168
      %s171 = sadd.s32 %s170, 1
      %p174 = scmp.eq.s32.totalorder %s47, 1
      %p175 = scmp.ne.s32.totalorder %s170, %s172
      %p176 = scmp.eq.s32.totalorder %s47, 0
      %p177 = por %p175, %p176
      %p178 = scmp.ne.s32.totalorder %s170, %s172
      %p179 = scmp.eq.s32.totalorder %s52, 1
      %p180 = por %p178, %p179
      %p181 = scmp.ne.s32.totalorder %s172, %s173
      %p182 = scmp.eq.s32.totalorder %s52, 0
      %p183 = por %p181, %p182
      %p184 = scmp.ne.s32.totalorder %s172, %s173
      %p185 = scmp.eq.s32.totalorder %s53, 1
      %p186 = por %p184, %p185
      %p188 = scmp.ne.s32.totalorder %s173, %s187
      %p189 = scmp.eq.s32.totalorder %s53, 0
      %p190 = por %p188, %p189
      %s192 = sadd.s32 %s191, 1
      %p195 = scmp.eq.s32.totalorder %s47, 1
      %p196 = scmp.ne.s32.totalorder %s191, %s193
      %p197 = scmp.eq.s32.totalorder %s47, 0
      %p198 = por %p196, %p197
      %p199 = scmp.ne.s32.totalorder %s191, %s193
      %p200 = scmp.eq.s32.totalorder %s52, 1
      %p201 = por %p199, %p200
      %p202 = scmp.ne.s32.totalorder %s193, %s194
      %p203 = scmp.eq.s32.totalorder %s52, 0
      %p204 = por %p202, %p203
      %p205 = scmp.ne.s32.totalorder %s193, %s194
      %p206 = scmp.eq.s32.totalorder %s53, 1
      %p207 = por %p205, %p206
      %p209 = scmp.ne.s32.totalorder %s194, %s208
      %p210 = scmp.eq.s32.totalorder %s53, 0
      %p211 = por %p209, %p210
      %s213 = sadd.s32 %s212, 1
      %p216 = scmp.eq.s32.totalorder %s47, 1
      %p217 = scmp.ne.s32.totalorder %s212, %s214
      %p218 = scmp.eq.s32.totalorder %s47, 0
      %p219 = por %p217, %p218
      %p220 = scmp.ne.s32.totalorder %s212, %s214
      %p221 = scmp.eq.s32.totalorder %s52, 1
      %p222 = por %p220, %p221
      %p223 = scmp.ne.s32.totalorder %s214, %s215
      %p224 = scmp.eq.s32.totalorder %s52, 0
      %p225 = por %p223, %p224
      %p226 = scmp.ne.s32.totalorder %s214, %s215
      %p227 = scmp.eq.s32.totalorder %s53, 1
      %p228 = por %p226, %p227
      %p230 = scmp.ne.s32.totalorder %s215, %s229
      %p231 = scmp.eq.s32.totalorder %s53, 0
      %p232 = por %p230, %p231
      %s234 = sadd.s32 %s233, 1
      %p237 = scmp.eq.s32.totalorder %s47, 1
      %p238 = scmp.ne.s32.totalorder %s233, %s235
      %p239 = scmp.eq.s32.totalorder %s47, 0
      %p240 = por %p238, %p239
      %p241 = scmp.ne.s32.totalorder %s233, %s235
      %p242 = scmp.eq.s32.totalorder %s52, 1
      %p243 = por %p241, %p242
      %p244 = scmp.ne.s32.totalorder %s235, %s236
      %p245 = scmp.eq.s32.totalorder %s52, 0
      %p246 = por %p244, %p245
      %p247 = scmp.ne.s32.totalorder %s235, %s236
      %p248 = scmp.eq.s32.totalorder %s53, 1
      %p249 = por %p247, %p248
      %p251 = scmp.ne.s32.totalorder %s236, %s250
      %p252 = scmp.eq.s32.totalorder %s53, 0
      %p253 = por %p251, %p252
      %s255 = sadd.s32 %s254, 1
      %p258 = scmp.eq.s32.totalorder %s47, 1
      %p259 = scmp.ne.s32.totalorder %s254, %s256
      %p260 = scmp.eq.s32.totalorder %s47, 0
      %p261 = por %p259, %p260
      %p262 = scmp.ne.s32.totalorder %s254, %s256
      %p263 = scmp.eq.s32.totalorder %s52, 1
      %p264 = por %p262, %p263
      %p265 = scmp.ne.s32.totalorder %s256, %s257
      %p266 = scmp.eq.s32.totalorder %s52, 0
      %p267 = por %p265, %p266
      %p268 = scmp.ne.s32.totalorder %s256, %s257
      %p269 = scmp.eq.s32.totalorder %s53, 1
      %p270 = por %p268, %p269
      %p272 = scmp.ne.s32.totalorder %s257, %s271
      %p273 = scmp.eq.s32.totalorder %s53, 0
      %p274 = por %p272, %p273
      %s276 = sadd.s32 %s275, 1
      %p279 = scmp.eq.s32.totalorder %s47, 1
      %p280 = scmp.ne.s32.totalorder %s275, %s277
      %p281 = scmp.eq.s32.totalorder %s47, 0
      %p282 = por %p280, %p281
      %p283 = scmp.ne.s32.totalorder %s275, %s277
      %p284 = scmp.eq.s32.totalorder %s52, 1
      %p285 = por %p283, %p284
      %p286 = scmp.ne.s32.totalorder %s277, %s278
      %p287 = scmp.eq.s32.totalorder %s52, 0
      %p288 = por %p286, %p287
      %p289 = scmp.ne.s32.totalorder %s277, %s278
      %p290 = scmp.eq.s32.totalorder %s53, 1
      %p291 = por %p289, %p290
      %p293 = scmp.ne.s32.totalorder %s278, %s292
      %p294 = scmp.eq.s32.totalorder %s53, 0
      %p295 = por %p293, %p294
      %s297 = sadd.s32 %s296, 1
      %p300 = scmp.eq.s32.totalorder %s47, 1
      %p301 = scmp.ne.s32.totalorder %s296, %s298
      %p302 = scmp.eq.s32.totalorder %s47, 0
      %p303 = por %p301, %p302
      %p304 = scmp.ne.s32.totalorder %s296, %s298
      %p305 = scmp.eq.s32.totalorder %s52, 1
      %p306 = por %p304, %p305
      %p307 = scmp.ne.s32.totalorder %s298, %s299
      %p308 = scmp.eq.s32.totalorder %s52, 0
      %p309 = por %p307, %p308
      %p310 = scmp.ne.s32.totalorder %s298, %s299
      %p311 = scmp.eq.s32.totalorder %s53, 1
      %p312 = por %p310, %p311
      %p314 = scmp.ne.s32.totalorder %s299, %s313
      %p315 = scmp.eq.s32.totalorder %s53, 0
      %p316 = por %p314, %p315
      %s318 = sadd.s32 %s317, 1
      %p321 = scmp.eq.s32.totalorder %s47, 1
      %p322 = scmp.ne.s32.totalorder %s317, %s319
      %p323 = scmp.eq.s32.totalorder %s47, 0
      %p324 = por %p322, %p323
      %p325 = scmp.ne.s32.totalorder %s317, %s319
      %p326 = scmp.eq.s32.totalorder %s52, 1
      %p327 = por %p325, %p326
      %p328 = scmp.ne.s32.totalorder %s319, %s320
      %p329 = scmp.eq.s32.totalorder %s52, 0
      %p330 = por %p328, %p329
      %p331 = scmp.ne.s32.totalorder %s319, %s320
      %p332 = scmp.eq.s32.totalorder %s53, 1
      %p333 = por %p331, %p332
      %p335 = scmp.ne.s32.totalorder %s320, %s334
      %p336 = scmp.eq.s32.totalorder %s53, 0
      %p337 = por %p335, %p336
      %s339 = sadd.s32 %s338, 1
      %p342 = scmp.eq.s32.totalorder %s47, 1
      %p343 = scmp.ne.s32.totalorder %s338, %s340
      %p344 = scmp.eq.s32.totalorder %s47, 0
      %p345 = por %p343, %p344
      %p346 = scmp.ne.s32.totalorder %s338, %s340
      %p347 = scmp.eq.s32.totalorder %s52, 1
      %p348 = por %p346, %p347
      %p349 = scmp.ne.s32.totalorder %s340, %s341
      %p350 = scmp.eq.s32.totalorder %s52, 0
      %p351 = por %p349, %p350
      %p352 = scmp.ne.s32.totalorder %s340, %s341
      %p353 = scmp.eq.s32.totalorder %s53, 1
      %p354 = por %p352, %p353
      %p356 = scmp.ne.s32.totalorder %s341, %s355
      %p357 = scmp.eq.s32.totalorder %s53, 0
      %p358 = por %p356, %p357
      %s360 = sadd.s32 %s359, 1
      %p363 = scmp.eq.s32.totalorder %s47, 1
      %p364 = scmp.ne.s32.totalorder %s359, %s361
      %p365 = scmp.eq.s32.totalorder %s47, 0
      %p366 = por %p364, %p365
      %p367 = scmp.ne.s32.totalorder %s359, %s361
      %p368 = scmp.eq.s32.totalorder %s52, 1
      %p369 = por %p367, %p368
      %p370 = scmp.ne.s32.totalorder %s361, %s362
      %p371 = scmp.eq.s32.totalorder %s52, 0
      %p372 = por %p370, %p371
      %p373 = scmp.ne.s32.totalorder %s361, %s362
      %p374 = scmp.eq.s32.totalorder %s53, 1
      %p375 = por %p373, %p374
      %p377 = scmp.ne.s32.totalorder %s362, %s376
      %p378 = scmp.eq.s32.totalorder %s53, 0
      %p379 = por %p377, %p378
      %s381 = sadd.s32 %s380, 1
      %p384 = scmp.eq.s32.totalorder %s47, 1
      %p385 = scmp.ne.s32.totalorder %s380, %s382
      %p386 = scmp.eq.s32.totalorder %s47, 0
      %p387 = por %p385, %p386
      %p388 = scmp.ne.s32.totalorder %s380, %s382
      %p389 = scmp.eq.s32.totalorder %s52, 1
      %p390 = por %p388, %p389
      %p391 = scmp.ne.s32.totalorder %s382, %s383
      %p392 = scmp.eq.s32.totalorder %s52, 0
      %p393 = por %p391, %p392
      %p394 = scmp.ne.s32.totalorder %s382, %s383
      %p395 = scmp.eq.s32.totalorder %s53, 1
      %p396 = por %p394, %p395
      %p398 = scmp.ne.s32.totalorder %s383, %s397
      %p399 = scmp.eq.s32.totalorder %s53, 0
      %p400 = por %p398, %p399
      %s402 = sadd.s32 %s401, 1
      %p405 = scmp.eq.s32.totalorder %s47, 1
      %p406 = scmp.ne.s32.totalorder %s401, %s403
      %p407 = scmp.eq.s32.totalorder %s47, 0
      %p408 = por %p406, %p407
      %p409 = scmp.ne.s32.totalorder %s401, %s403
      %p410 = scmp.eq.s32.totalorder %s52, 1
      %p411 = por %p409, %p410
      %p412 = scmp.ne.s32.totalorder %s403, %s404
      %p413 = scmp.eq.s32.totalorder %s52, 0
      %p414 = por %p412, %p413
      %p415 = scmp.ne.s32.totalorder %s403, %s404
      %p416 = scmp.eq.s32.totalorder %s53, 1
      %p417 = por %p415, %p416
      %p419 = scmp.ne.s32.totalorder %s404, %s418
      %p420 = scmp.eq.s32.totalorder %s53, 0
      %p421 = por %p419, %p420
      %s423 = sadd.s32 %s422, 1
      %p426 = scmp.eq.s32.totalorder %s47, 1
      %p427 = scmp.ne.s32.totalorder %s422, %s424
      %p428 = scmp.eq.s32.totalorder %s47, 0
      %p429 = por %p427, %p428
      %p430 = scmp.ne.s32.totalorder %s422, %s424
      %p431 = scmp.eq.s32.totalorder %s52, 1
      %p432 = por %p430, %p431
      %p433 = scmp.ne.s32.totalorder %s424, %s425
      %p434 = scmp.eq.s32.totalorder %s52, 0
      %p435 = por %p433, %p434
      %p436 = scmp.ne.s32.totalorder %s424, %s425
      %p437 = scmp.eq.s32.totalorder %s53, 1
      %p438 = por %p436, %p437
      %p440 = scmp.ne.s32.totalorder %s425, %s439
      %p441 = scmp.eq.s32.totalorder %s53, 0
      %p442 = por %p440, %p441
      %s444 = sadd.s32 %s443, 1
      %p447 = scmp.eq.s32.totalorder %s47, 1
      %p448 = scmp.ne.s32.totalorder %s443, %s445
      %p449 = scmp.eq.s32.totalorder %s47, 0
      %p450 = por %p448, %p449
      %p451 = scmp.ne.s32.totalorder %s443, %s445
      %p452 = scmp.eq.s32.totalorder %s52, 1
      %p453 = por %p451, %p452
      %p454 = scmp.ne.s32.totalorder %s445, %s446
      %p455 = scmp.eq.s32.totalorder %s52, 0
      %p456 = por %p454, %p455
      %p457 = scmp.ne.s32.totalorder %s445, %s446
      %p458 = scmp.eq.s32.totalorder %s53, 1
      %p459 = por %p457, %p458
      %p461 = scmp.ne.s32.totalorder %s446, %s460
      %p462 = scmp.eq.s32.totalorder %s53, 0
      %p463 = por %p461, %p462
      %s465 = sadd.s32 %s464, 1
      %p468 = scmp.eq.s32.totalorder %s47, 1
      %p469 = scmp.ne.s32.totalorder %s464, %s466
      %p470 = scmp.eq.s32.totalorder %s47, 0
      %p471 = por %p469, %p470
      %p472 = scmp.ne.s32.totalorder %s464, %s466
      %p473 = scmp.eq.s32.totalorder %s52, 1
      %p474 = por %p472, %p473
      %p475 = scmp.ne.s32.totalorder %s466, %s467
      %p476 = scmp.eq.s32.totalorder %s52, 0
      %p477 = por %p475, %p476
      %p478 = scmp.ne.s32.totalorder %s466, %s467
      %p479 = scmp.eq.s32.totalorder %s53, 1
      %p480 = por %p478, %p479
      %p482 = scmp.ne.s32.totalorder %s467, %s481
      %p483 = scmp.eq.s32.totalorder %s53, 0
      %p484 = por %p482, %p483
      %s486 = sadd.s32 %s485, 1
      %p489 = scmp.eq.s32.totalorder %s47, 1
      %p490 = scmp.ne.s32.totalorder %s485, %s487
      %p491 = scmp.eq.s32.totalorder %s47, 0
      %p492 = por %p490, %p491
      %p493 = scmp.ne.s32.totalorder %s485, %s487
      %p494 = scmp.eq.s32.totalorder %s52, 1
      %p495 = por %p493, %p494
      %p496 = scmp.ne.s32.totalorder %s487, %s488
      %p497 = scmp.eq.s32.totalorder %s52, 0
      %p498 = por %p496, %p497
      %p499 = scmp.ne.s32.totalorder %s487, %s488
      %p500 = scmp.eq.s32.totalorder %s53, 1
      %p501 = por %p499, %p500
      %p503 = scmp.ne.s32.totalorder %s488, %s502
      %p504 = scmp.eq.s32.totalorder %s53, 0
      %p505 = por %p503, %p504
      %s507 = sadd.s32 %s506, 1
      %p510 = scmp.eq.s32.totalorder %s47, 1
      %p511 = scmp.ne.s32.totalorder %s506, %s508
      %p512 = scmp.eq.s32.totalorder %s47, 0
      %p513 = por %p511, %p512
      %p514 = scmp.ne.s32.totalorder %s506, %s508
      %p515 = scmp.eq.s32.totalorder %s52, 1
      %p516 = por %p514, %p515
      %p517 = scmp.ne.s32.totalorder %s508, %s509
      %p518 = scmp.eq.s32.totalorder %s52, 0
      %p519 = por %p517, %p518
      %p520 = scmp.ne.s32.totalorder %s508, %s509
      %p521 = scmp.eq.s32.totalorder %s53, 1
      %p522 = por %p520, %p521
      %p524 = scmp.ne.s32.totalorder %s509, %s523
      %p525 = scmp.eq.s32.totalorder %s53, 0
      %p526 = por %p524, %p525
      %s527 = ssub.s32 %s47, %s54
      %p528 = scmp.eq.s32.totalorder %s527, 0
      %s530 = sadd.s32 %s529, 1
      %s531 = scalar_select %p528, %s529, %s530
      %p534 = pneg %p528
      %p535 = scmp.eq.s32.totalorder %s47, 1
      %p536 = por %p534, %p535
      %p537 = scmp.ne.s32.totalorder %s529, %s532
      %p538 = scmp.eq.s32.totalorder %s47, 0
      %p539 = por %p537, %p538
      %p540 = scmp.ne.s32.totalorder %s529, %s532
      %p541 = scmp.eq.s32.totalorder %s52, 1
      %p542 = por %p540, %p541
      %p543 = scmp.ne.s32.totalorder %s532, %s533
      %p544 = scmp.eq.s32.totalorder %s52, 0
      %p545 = por %p543, %p544
      %p546 = scmp.ne.s32.totalorder %s532, %s533
      %p547 = scmp.eq.s32.totalorder %s53, 1
      %p548 = por %p546, %p547
      %p550 = scmp.ne.s32.totalorder %s533, %s549
      %p551 = scmp.eq.s32.totalorder %s53, 0
      %p552 = por %p550, %p551
      %p553 = scmp.le.s32.totalorder 1, %s47
      %p554 = scmp.lt.s32.totalorder %s47, 3
      %p555 = pnand %p553, %p554
      %p556 = pneg %p555
      // Predicated region
      $region9: #{my_transformer_decoder.3} parent=5 // pred_check
        _
      $region10: #{my_transformer_decoder.3} parent=5 // pred_check_branch
        %558 = sbr.rel (%p555) target = $region12
      $region11: #{my_transformer_decoder.3} parent=5 // pred_region
        %s559 = ssub.s32 %s47, 1
        // Predicated region
        $region13: #{my_transformer_decoder.3} parent=11 // pred_check
          %p560 = pneg %p120
        $region14: #{my_transformer_decoder.3} parent=11 // pred_check_branch
          %562 = sbr.rel (%p560) target = $region16
        $region15: #{my_transformer_decoder.3} parent=11 // pred_region
          %s564 = ssub.s32 3072, 3072
          %565 = vsyncadd [#allocation6], %s564
          %s566 = sshll.u32 [#allocation7], 4
          %s567 = int_to_ptr.vmem [resolvable:$true] %s566
          %572 = dma.hbm_to_vmem [thread:$0]  %s2, 3072, %s567, [#allocation6], 192, 192, 12
        $region16: #{my_transformer_decoder.3} parent=11 // pred_fallthru
          _
        // Predicated region
        $region17: #{my_transformer_decoder.3} parent=11 // pred_check
          %p573 = pneg %p141
        $region18: #{my_transformer_decoder.3} parent=11 // pred_check_branch
          %575 = sbr.rel (%p573) target = $region20
        $region19: #{my_transformer_decoder.3} parent=11 // pred_region
          %s577 = ssub.s32 48, 48
          %578 = vsyncadd [#allocation9], %s577
          %s580 = sshll.u32 [#allocation8], 4
          %s581 = int_to_ptr.vmem [resolvable:$true] %s580
          %583 = dma.hbm_to_vmem [thread:$0]  %s3, 48, %s581, [#allocation9]
        $region20: #{my_transformer_decoder.3} parent=11 // pred_fallthru
          _
        // Predicated region
        $region21: #{my_transformer_decoder.3} parent=11 // pred_check
          %p584 = pneg %p162
        $region22: #{my_transformer_decoder.3} parent=11 // pred_check_branch
          %586 = sbr.rel (%p584) target = $region24
        $region23: #{my_transformer_decoder.3} parent=11 // pred_region
          %s588 = ssub.s32 1024, 1024
          %589 = vsyncadd [#allocation9], %s588
          %s590 = sshll.u32 [#allocation10], 4
          %s591 = int_to_ptr.vmem [resolvable:$true] %s590
          %596 = dma.hbm_to_vmem [thread:$0]  %s4, 1024, %s591, [#allocation9], 64, 64, 4
        $region24: #{my_transformer_decoder.3} parent=11 // pred_fallthru
          _
        // Predicated region
        $region25: #{my_transformer_decoder.3} parent=11 // pred_check
          %p597 = pneg %p183
        $region26: #{my_transformer_decoder.3} parent=11 // pred_check_branch
          %599 = sbr.rel (%p597) target = $region28
        $region27: #{my_transformer_decoder.3} parent=11 // pred_region
          %s601 = ssub.s32 16, 16
          %602 = vsyncadd [#allocation12], %s601
          %s604 = sshll.u32 [#allocation11], 4
          %s605 = int_to_ptr.vmem [resolvable:$true] %s604
          %607 = dma.hbm_to_vmem [thread:$0]  %s5, 16, %s605, [#allocation12]
        $region28: #{my_transformer_decoder.3} parent=11 // pred_fallthru
          _
        // Predicated region
        $region29: #{my_transformer_decoder.3} parent=11 // pred_check
          %p608 = pneg %p204
        $region30: #{my_transformer_decoder.3} parent=11 // pred_check_branch
          %610 = sbr.rel (%p608) target = $region32
        $region31: #{my_transformer_decoder.3} parent=11 // pred_region
          %s612 = ssub.s32 1024, 1024
          %613 = vsyncadd [#allocation12], %s612
          %s614 = sshll.u32 [#allocation13], 4
          %s615 = int_to_ptr.vmem [resolvable:$true] %s614
          %620 = dma.hbm_to_vmem [thread:$0]  %s6, 1024, %s615, [#allocation12], 64, 64, 4
        $region32: #{my_transformer_decoder.3} parent=11 // pred_fallthru
          _
        // Predicated region
        $region33: #{my_transformer_decoder.3} parent=11 // pred_check
          %p621 = pneg %p225
        $region34: #{my_transformer_decoder.3} parent=11 // pred_check_branch
          %623 = sbr.rel (%p621) target = $region36
        $region35: #{my_transformer_decoder.3} parent=11 // pred_region
          %s625 = ssub.s32 16, 16
          %626 = vsyncadd [#allocation15], %s625
          %s628 = sshll.u32 [#allocation14], 4
          %s629 = int_to_ptr.vmem [resolvable:$true] %s628
          %631 = dma.hbm_to_vmem [thread:$0]  %s7, 16, %s629, [#allocation15]
        $region36: #{my_transformer_decoder.3} parent=11 // pred_fallthru
          _
        // Predicated region
        $region37: #{my_transformer_decoder.3} parent=11 // pred_check
          %p632 = pneg %p246
        $region38: #{my_transformer_decoder.3} parent=11 // pred_check_branch
          %634 = sbr.rel (%p632) target = $region40
        $region39: #{my_transformer_decoder.3} parent=11 // pred_region
          %s636 = ssub.s32 2048, 2048
          %637 = vsyncadd [#allocation15], %s636
          %s638 = sshll.u32 [#allocation16], 4
          %s639 = int_to_ptr.vmem [resolvable:$true] %s638
          %644 = dma.hbm_to_vmem [thread:$0]  %s8, 2048, %s639, [#allocation15], 128, 128, 8
        $region40: #{my_transformer_decoder.3} parent=11 // pred_fallthru
          _
        // Predicated region
        $region41: #{my_transformer_decoder.3} parent=11 // pred_check
          %p645 = pneg %p267
        $region42: #{my_transformer_decoder.3} parent=11 // pred_check_branch
          %647 = sbr.rel (%p645) target = $region44
        $region43: #{my_transformer_decoder.3} parent=11 // pred_region
          %s649 = ssub.s32 32, 32
          %650 = vsyncadd [#allocation18], %s649
          %s652 = sshll.u32 [#allocation17], 4
          %s653 = int_to_ptr.vmem [resolvable:$true] %s652
          %655 = dma.hbm_to_vmem [thread:$0]  %s9, 32, %s653, [#allocation18]
        $region44: #{my_transformer_decoder.3} parent=11 // pred_fallthru
          _
        // Predicated region
        $region45: #{my_transformer_decoder.3} parent=11 // pred_check
          %p656 = pneg %p288
        $region46: #{my_transformer_decoder.3} parent=11 // pred_check_branch
          %658 = sbr.rel (%p656) target = $region48
        $region47: #{my_transformer_decoder.3} parent=11 // pred_region
          %s660 = ssub.s32 1024, 1024
          %661 = vsyncadd [#allocation18], %s660
          %s662 = sshll.u32 [#allocation19], 4
          %s663 = int_to_ptr.vmem [resolvable:$true] %s662
          %668 = dma.hbm_to_vmem [thread:$0]  %s10, 1024, %s663, [#allocation18], 64, 64, 4
        $region48: #{my_transformer_decoder.3} parent=11 // pred_fallthru
          _
        // Predicated region
        $region49: #{my_transformer_decoder.3} parent=11 // pred_check
          %p669 = pneg %p309
        $region50: #{my_transformer_decoder.3} parent=11 // pred_check_branch
          %671 = sbr.rel (%p669) target = $region52
        $region51: #{my_transformer_decoder.3} parent=11 // pred_region
          %s673 = ssub.s32 16, 16
          %674 = vsyncadd [#allocation21], %s673
          %s676 = sshll.u32 [#allocation20], 4
          %s677 = int_to_ptr.vmem [resolvable:$true] %s676
          %679 = dma.hbm_to_vmem [thread:$0]  %s11, 16, %s677, [#allocation21]
        $region52: #{my_transformer_decoder.3} parent=11 // pred_fallthru
          _
        // Predicated region
        $region53: #{my_transformer_decoder.3} parent=11 // pred_check
          %p680 = pneg %p330
        $region54: #{my_transformer_decoder.3} parent=11 // pred_check_branch
          %682 = sbr.rel (%p680) target = $region56
        $region55: #{my_transformer_decoder.3} parent=11 // pred_region
          %s684 = ssub.s32 2048, 2048
          %685 = vsyncadd [#allocation21], %s684
          %s686 = sshll.u32 [#allocation22], 4
          %s687 = int_to_ptr.vmem [resolvable:$true] %s686
          %692 = dma.hbm_to_vmem [thread:$0]  %s12, 2048, %s687, [#allocation21], 128, 128, 8
        $region56: #{my_transformer_decoder.3} parent=11 // pred_fallthru
          _
        // Predicated region
        $region57: #{my_transformer_decoder.3} parent=11 // pred_check
          %p693 = pneg %p351
        $region58: #{my_transformer_decoder.3} parent=11 // pred_check_branch
          %695 = sbr.rel (%p693) target = $region60
        $region59: #{my_transformer_decoder.3} parent=11 // pred_region
          %s697 = ssub.s32 32, 32
          %698 = vsyncadd [#allocation24], %s697
          %s700 = sshll.u32 [#allocation23], 4
          %s701 = int_to_ptr.vmem [resolvable:$true] %s700
          %703 = dma.hbm_to_vmem [thread:$0]  %s13, 32, %s701, [#allocation24]
        $region60: #{my_transformer_decoder.3} parent=11 // pred_fallthru
          _
        // Predicated region
        $region61: #{my_transformer_decoder.3} parent=11 // pred_check
          %p704 = pneg %p372
        $region62: #{my_transformer_decoder.3} parent=11 // pred_check_branch
          %706 = sbr.rel (%p704) target = $region64
        $region63: #{my_transformer_decoder.3} parent=11 // pred_region
          %s708 = ssub.s32 2048, 2048
          %709 = vsyncadd [#allocation24], %s708
          %s710 = sshll.u32 [#allocation25], 4
          %s711 = int_to_ptr.vmem [resolvable:$true] %s710
          %716 = dma.hbm_to_vmem [thread:$0]  %s14, 2048, %s711, [#allocation24], 64, 64, 4
        $region64: #{my_transformer_decoder.3} parent=11 // pred_fallthru
          _
        // Predicated region
        $region65: #{my_transformer_decoder.3} parent=11 // pred_check
          %p717 = pneg %p393
        $region66: #{my_transformer_decoder.3} parent=11 // pred_check_branch
          %719 = sbr.rel (%p717) target = $region68
        $region67: #{my_transformer_decoder.3} parent=11 // pred_region
          %s721 = ssub.s32 16, 16
          %722 = vsyncadd [#allocation27], %s721
          %s724 = sshll.u32 [#allocation26], 4
          %s725 = int_to_ptr.vmem [resolvable:$true] %s724
          %727 = dma.hbm_to_vmem [thread:$0]  %s15, 16, %s725, [#allocation27]
        $region68: #{my_transformer_decoder.3} parent=11 // pred_fallthru
          _
        // Predicated region
        $region69: #{my_transformer_decoder.3} parent=11 // pred_check
          %p728 = pneg %p414
        $region70: #{my_transformer_decoder.3} parent=11 // pred_check_branch
          %730 = sbr.rel (%p728) target = $region72
        $region71: #{my_transformer_decoder.3} parent=11 // pred_region
          %s732 = ssub.s32 16, 16
          %733 = vsyncadd [#allocation27], %s732
          %s735 = sshll.u32 [#allocation28], 4
          %s736 = int_to_ptr.vmem [resolvable:$true] %s735
          %738 = dma.hbm_to_vmem [thread:$0]  %s16, 16, %s736, [#allocation27]
        $region72: #{my_transformer_decoder.3} parent=11 // pred_fallthru
          _
        // Predicated region
        $region73: #{my_transformer_decoder.3} parent=11 // pred_check
          %p739 = pneg %p435
        $region74: #{my_transformer_decoder.3} parent=11 // pred_check_branch
          %741 = sbr.rel (%p739) target = $region76
        $region75: #{my_transformer_decoder.3} parent=11 // pred_region
          %s743 = ssub.s32 16, 16
          %744 = vsyncadd [#allocation30], %s743
          %s746 = sshll.u32 [#allocation29], 4
          %s747 = int_to_ptr.vmem [resolvable:$true] %s746
          %749 = dma.hbm_to_vmem [thread:$0]  %s17, 16, %s747, [#allocation30]
        $region76: #{my_transformer_decoder.3} parent=11 // pred_fallthru
          _
        // Predicated region
        $region77: #{my_transformer_decoder.3} parent=11 // pred_check
          %p750 = pneg %p456
        $region78: #{my_transformer_decoder.3} parent=11 // pred_check_branch
          %752 = sbr.rel (%p750) target = $region80
        $region79: #{my_transformer_decoder.3} parent=11 // pred_region
          %s754 = ssub.s32 16, 16
          %755 = vsyncadd [#allocation30], %s754
          %s757 = sshll.u32 [#allocation31], 4
          %s758 = int_to_ptr.vmem [resolvable:$true] %s757
          %760 = dma.hbm_to_vmem [thread:$0]  %s18, 16, %s758, [#allocation30]
        $region80: #{my_transformer_decoder.3} parent=11 // pred_fallthru
          _
        // Predicated region
        $region81: #{my_transformer_decoder.3} parent=11 // pred_check
          %p761 = pneg %p477
        $region82: #{my_transformer_decoder.3} parent=11 // pred_check_branch
          %763 = sbr.rel (%p761) target = $region84
        $region83: #{my_transformer_decoder.3} parent=11 // pred_region
          %s765 = ssub.s32 16, 16
          %766 = vsyncadd [#allocation33], %s765
          %s768 = sshll.u32 [#allocation32], 4
          %s769 = int_to_ptr.vmem [resolvable:$true] %s768
          %771 = dma.hbm_to_vmem [thread:$0]  %s19, 16, %s769, [#allocation33]
        $region84: #{my_transformer_decoder.3} parent=11 // pred_fallthru
          _
        // Predicated region
        $region85: #{my_transformer_decoder.3} parent=11 // pred_check
          %p772 = pneg %p498
        $region86: #{my_transformer_decoder.3} parent=11 // pred_check_branch
          %774 = sbr.rel (%p772) target = $region88
        $region87: #{my_transformer_decoder.3} parent=11 // pred_region
          %s776 = ssub.s32 16, 16
          %777 = vsyncadd [#allocation33], %s776
          %s779 = sshll.u32 [#allocation34], 4
          %s780 = int_to_ptr.vmem [resolvable:$true] %s779
          %782 = dma.hbm_to_vmem [thread:$0]  %s20, 16, %s780, [#allocation33]
        $region88: #{my_transformer_decoder.3} parent=11 // pred_fallthru
          _
        // Predicated region
        $region89: #{my_transformer_decoder.3} parent=11 // pred_check
          %p783 = pneg %p519
        $region90: #{my_transformer_decoder.3} parent=11 // pred_check_branch
          %785 = sbr.rel (%p783) target = $region92
        $region91: #{my_transformer_decoder.3} parent=11 // pred_region
          %s787 = ssub.s32 16, 16
          %788 = vsyncadd [#allocation36], %s787
          %s790 = sshll.u32 [#allocation35], 4
          %s791 = int_to_ptr.vmem [resolvable:$true] %s790
          %793 = dma.hbm_to_vmem [thread:$0]  %s21, 16, %s791, [#allocation36]
        $region92: #{my_transformer_decoder.3} parent=11 // pred_fallthru
          _
      $region12: #{my_transformer_decoder.3} parent=5 // pred_fallthru
        _
      %p794 = scmp.lt.s32.totalorder %s47, 2
      // Predicated region
      $region93: #{my_transformer_decoder.3} parent=5 // pred_check
        %p795 = pneg %p794
      $region94: #{my_transformer_decoder.3} parent=5 // pred_check_branch
        %797 = sbr.rel (%p795) target = $region96
      $region95: #{my_transformer_decoder.3} parent=5 // pred_region
        // Predicated region
        $region97: #{my_transformer_decoder.3} parent=95 // pred_check
          %p798 = pneg %p67
        $region98: #{my_transformer_decoder.3} parent=95 // pred_check_branch
          %800 = sbr.rel (%p798) target = $region100
        $region99: #{my_transformer_decoder.3} parent=95 // pred_region
          %s801 = sand.u32 %s57, 1
          %s802 = scalar_lea.sflag [#allocation3], %s801
          %s803 = sand.u32 %s57, 1
          %s804 = smul.addr %s803, 16
          %s805 = scalar_lea.vmem [#allocation2], %s804
          %s807 = ssub.s32 256, 256
          %808 = vsyncadd %s802, %s807
          %s809 = smul.addr %s47, 2
          %s810 = smul.addr %s809, 128
          %s811 = scalar_lea.hbm %s0, %s810
          %s812 = sshll.u32 %s805, 4
          %s813 = int_to_ptr.vmem [resolvable:$true] %s812
          %818 = dma.hbm_to_vmem [thread:$0]  %s811, 256, %s813, %s802, 128, 128, 8
        $region100: #{my_transformer_decoder.3} parent=95 // pred_fallthru
          _
        // Predicated region
        $region101: #{my_transformer_decoder.3} parent=95 // pred_check
          %p819 = pneg %p93
        $region102: #{my_transformer_decoder.3} parent=95 // pred_check_branch
          %821 = sbr.rel (%p819) target = $region104
        $region103: #{my_transformer_decoder.3} parent=95 // pred_region
          %s822 = sand.u32 %s47, 1
          %s823 = scalar_lea.sflag [#allocation6], %s822
          %s824 = sand.u32 %s83, 1
          %s825 = smul.addr %s824, 16
          %s826 = scalar_lea.vmem [#allocation5], %s825
          %s828 = ssub.s32 256, 256
          %829 = vsyncadd %s823, %s828
          %s830 = smul.addr %s47, 2
          %s831 = smul.addr %s830, 128
          %s832 = scalar_lea.hbm %s1, %s831
          %s833 = sshll.u32 %s826, 4
          %s834 = int_to_ptr.vmem [resolvable:$true] %s833
          %839 = dma.hbm_to_vmem [thread:$0]  %s832, 256, %s834, %s823, 128, 128, 8
        $region104: #{my_transformer_decoder.3} parent=95 // pred_fallthru
          _
      $region96: #{my_transformer_decoder.3} parent=5 // pred_fallthru
        _
      %p840 = scmp.le.s32.totalorder 1, %s47
      %p841 = scmp.lt.s32.totalorder %s47, 3
      %p842 = pnand %p840, %p841
      %p843 = pneg %p842
      // Predicated region
      $region105: #{my_transformer_decoder.3} parent=5 // pred_check
        _
      $region106: #{my_transformer_decoder.3} parent=5 // pred_check_branch
        %845 = sbr.rel (%p842) target = $region108
      $region107: #{my_transformer_decoder.3} parent=5 // pred_region
        %s846 = ssub.s32 %s47, 1
        %s847 = sand.u32 %s60, 1
        %s848 = scalar_lea.sflag [#allocation3], %s847
        %s849 = sand.u32 %s60, 1
        %s850 = smul.addr %s849, 16
        %s851 = scalar_lea.vmem [#allocation2], %s850
        // Predicated region
        $region109: #{my_transformer_decoder.3} parent=107 // pred_check
          %p852 = pneg %p73
        $region110: #{my_transformer_decoder.3} parent=107 // pred_check_branch
          %854 = sbr.rel (%p852) target = $region112
        $region111: #{my_transformer_decoder.3} parent=107 // pred_region
          %855 = dma.done %s848, 256
        $region112: #{my_transformer_decoder.3} parent=107 // pred_fallthru
          _
        %s856 = sand.u32 %s52, 1
        %s857 = scalar_lea.sflag [#allocation6], %s856
        %s858 = sand.u32 %s86, 1
        %s859 = smul.addr %s858, 16
        %s860 = scalar_lea.vmem [#allocation5], %s859
        // Predicated region
        $region113: #{my_transformer_decoder.3} parent=107 // pred_check
          %p861 = pneg %p99
        $region114: #{my_transformer_decoder.3} parent=107 // pred_check_branch
          %863 = sbr.rel (%p861) target = $region116
        $region115: #{my_transformer_decoder.3} parent=107 // pred_region
          %864 = dma.done %s857, 256
        $region116: #{my_transformer_decoder.3} parent=107 // pred_fallthru
          _
        // Predicated region
        $region117: #{my_transformer_decoder.3} parent=107 // pred_check
          %p865 = pneg %p120
        $region118: #{my_transformer_decoder.3} parent=107 // pred_check_branch
          %867 = sbr.rel (%p865) target = $region120
        $region119: #{my_transformer_decoder.3} parent=107 // pred_region
          %868 = dma.done [#allocation6], 3072
        $region120: #{my_transformer_decoder.3} parent=107 // pred_fallthru
          _
        // Predicated region
        $region121: #{my_transformer_decoder.3} parent=107 // pred_check
          %p869 = pneg %p141
        $region122: #{my_transformer_decoder.3} parent=107 // pred_check_branch
          %871 = sbr.rel (%p869) target = $region124
        $region123: #{my_transformer_decoder.3} parent=107 // pred_region
          %872 = dma.done [#allocation9], 48
        $region124: #{my_transformer_decoder.3} parent=107 // pred_fallthru
          _
        // Predicated region
        $region125: #{my_transformer_decoder.3} parent=107 // pred_check
          %p873 = pneg %p162
        $region126: #{my_transformer_decoder.3} parent=107 // pred_check_branch
          %875 = sbr.rel (%p873) target = $region128
        $region127: #{my_transformer_decoder.3} parent=107 // pred_region
          %876 = dma.done [#allocation9], 1024
        $region128: #{my_transformer_decoder.3} parent=107 // pred_fallthru
          _
        // Predicated region
        $region129: #{my_transformer_decoder.3} parent=107 // pred_check
          %p877 = pneg %p183
        $region130: #{my_transformer_decoder.3} parent=107 // pred_check_branch
          %879 = sbr.rel (%p877) target = $region132
        $region131: #{my_transformer_decoder.3} parent=107 // pred_region
          %880 = dma.done [#allocation12], 16
        $region132: #{my_transformer_decoder.3} parent=107 // pred_fallthru
          _
        // Predicated region
        $region133: #{my_transformer_decoder.3} parent=107 // pred_check
          %p881 = pneg %p204
        $region134: #{my_transformer_decoder.3} parent=107 // pred_check_branch
          %883 = sbr.rel (%p881) target = $region136
        $region135: #{my_transformer_decoder.3} parent=107 // pred_region
          %884 = dma.done [#allocation12], 1024
        $region136: #{my_transformer_decoder.3} parent=107 // pred_fallthru
          _
        // Predicated region
        $region137: #{my_transformer_decoder.3} parent=107 // pred_check
          %p885 = pneg %p225
        $region138: #{my_transformer_decoder.3} parent=107 // pred_check_branch
          %887 = sbr.rel (%p885) target = $region140
        $region139: #{my_transformer_decoder.3} parent=107 // pred_region
          %888 = dma.done [#allocation15], 16
        $region140: #{my_transformer_decoder.3} parent=107 // pred_fallthru
          _
        // Predicated region
        $region141: #{my_transformer_decoder.3} parent=107 // pred_check
          %p889 = pneg %p246
        $region142: #{my_transformer_decoder.3} parent=107 // pred_check_branch
          %891 = sbr.rel (%p889) target = $region144
        $region143: #{my_transformer_decoder.3} parent=107 // pred_region
          %892 = dma.done [#allocation15], 2048
        $region144: #{my_transformer_decoder.3} parent=107 // pred_fallthru
          _
        // Predicated region
        $region145: #{my_transformer_decoder.3} parent=107 // pred_check
          %p893 = pneg %p267
        $region146: #{my_transformer_decoder.3} parent=107 // pred_check_branch
          %895 = sbr.rel (%p893) target = $region148
        $region147: #{my_transformer_decoder.3} parent=107 // pred_region
          %896 = dma.done [#allocation18], 32
        $region148: #{my_transformer_decoder.3} parent=107 // pred_fallthru
          _
        // Predicated region
        $region149: #{my_transformer_decoder.3} parent=107 // pred_check
          %p897 = pneg %p288
        $region150: #{my_transformer_decoder.3} parent=107 // pred_check_branch
          %899 = sbr.rel (%p897) target = $region152
        $region151: #{my_transformer_decoder.3} parent=107 // pred_region
          %900 = dma.done [#allocation18], 1024
        $region152: #{my_transformer_decoder.3} parent=107 // pred_fallthru
          _
        // Predicated region
        $region153: #{my_transformer_decoder.3} parent=107 // pred_check
          %p901 = pneg %p309
        $region154: #{my_transformer_decoder.3} parent=107 // pred_check_branch
          %903 = sbr.rel (%p901) target = $region156
        $region155: #{my_transformer_decoder.3} parent=107 // pred_region
          %904 = dma.done [#allocation21], 16
        $region156: #{my_transformer_decoder.3} parent=107 // pred_fallthru
          _
        // Predicated region
        $region157: #{my_transformer_decoder.3} parent=107 // pred_check
          %p905 = pneg %p330
        $region158: #{my_transformer_decoder.3} parent=107 // pred_check_branch
          %907 = sbr.rel (%p905) target = $region160
        $region159: #{my_transformer_decoder.3} parent=107 // pred_region
          %908 = dma.done [#allocation21], 2048
        $region160: #{my_transformer_decoder.3} parent=107 // pred_fallthru
          _
        // Predicated region
        $region161: #{my_transformer_decoder.3} parent=107 // pred_check
          %p909 = pneg %p351
        $region162: #{my_transformer_decoder.3} parent=107 // pred_check_branch
          %911 = sbr.rel (%p909) target = $region164
        $region163: #{my_transformer_decoder.3} parent=107 // pred_region
          %912 = dma.done [#allocation24], 32
        $region164: #{my_transformer_decoder.3} parent=107 // pred_fallthru
          _
        // Predicated region
        $region165: #{my_transformer_decoder.3} parent=107 // pred_check
          %p913 = pneg %p372
        $region166: #{my_transformer_decoder.3} parent=107 // pred_check_branch
          %915 = sbr.rel (%p913) target = $region168
        $region167: #{my_transformer_decoder.3} parent=107 // pred_region
          %916 = dma.done [#allocation24], 2048
        $region168: #{my_transformer_decoder.3} parent=107 // pred_fallthru
          _
        // Predicated region
        $region169: #{my_transformer_decoder.3} parent=107 // pred_check
          %p917 = pneg %p393
        $region170: #{my_transformer_decoder.3} parent=107 // pred_check_branch
          %919 = sbr.rel (%p917) target = $region172
        $region171: #{my_transformer_decoder.3} parent=107 // pred_region
          %920 = dma.done [#allocation27], 16
        $region172: #{my_transformer_decoder.3} parent=107 // pred_fallthru
          _
        // Predicated region
        $region173: #{my_transformer_decoder.3} parent=107 // pred_check
          %p921 = pneg %p414
        $region174: #{my_transformer_decoder.3} parent=107 // pred_check_branch
          %923 = sbr.rel (%p921) target = $region176
        $region175: #{my_transformer_decoder.3} parent=107 // pred_region
          %924 = dma.done [#allocation27], 16
        $region176: #{my_transformer_decoder.3} parent=107 // pred_fallthru
          _
        // Predicated region
        $region177: #{my_transformer_decoder.3} parent=107 // pred_check
          %p925 = pneg %p435
        $region178: #{my_transformer_decoder.3} parent=107 // pred_check_branch
          %927 = sbr.rel (%p925) target = $region180
        $region179: #{my_transformer_decoder.3} parent=107 // pred_region
          %928 = dma.done [#allocation30], 16
        $region180: #{my_transformer_decoder.3} parent=107 // pred_fallthru
          _
        // Predicated region
        $region181: #{my_transformer_decoder.3} parent=107 // pred_check
          %p929 = pneg %p456
        $region182: #{my_transformer_decoder.3} parent=107 // pred_check_branch
          %931 = sbr.rel (%p929) target = $region184
        $region183: #{my_transformer_decoder.3} parent=107 // pred_region
          %932 = dma.done [#allocation30], 16
        $region184: #{my_transformer_decoder.3} parent=107 // pred_fallthru
          _
        // Predicated region
        $region185: #{my_transformer_decoder.3} parent=107 // pred_check
          %p933 = pneg %p477
        $region186: #{my_transformer_decoder.3} parent=107 // pred_check_branch
          %935 = sbr.rel (%p933) target = $region188
        $region187: #{my_transformer_decoder.3} parent=107 // pred_region
          %936 = dma.done [#allocation33], 16
        $region188: #{my_transformer_decoder.3} parent=107 // pred_fallthru
          _
        // Predicated region
        $region189: #{my_transformer_decoder.3} parent=107 // pred_check
          %p937 = pneg %p498
        $region190: #{my_transformer_decoder.3} parent=107 // pred_check_branch
          %939 = sbr.rel (%p937) target = $region192
        $region191: #{my_transformer_decoder.3} parent=107 // pred_region
          %940 = dma.done [#allocation33], 16
        $region192: #{my_transformer_decoder.3} parent=107 // pred_fallthru
          _
        // Predicated region
        $region193: #{my_transformer_decoder.3} parent=107 // pred_check
          %p941 = pneg %p519
        $region194: #{my_transformer_decoder.3} parent=107 // pred_check_branch
          %943 = sbr.rel (%p941) target = $region196
        $region195: #{my_transformer_decoder.3} parent=107 // pred_region
          %944 = dma.done [#allocation36], 16
        $region196: #{my_transformer_decoder.3} parent=107 // pred_fallthru
          _
        %s945 = sand.u32 %s60, 1
        %s946 = scalar_lea.sflag [#allocation3], %s945
        %s947 = sand.u32 %s60, 1
        %s948 = smul.addr %s947, 16
        %s949 = scalar_lea.vmem [#allocation2], %s948
        %p950 = pneg %p73
        %p951 = pneg %p70
        %s952 = sand.u32 %s52, 1
        %s953 = scalar_lea.sflag [#allocation6], %s952
        %s954 = sand.u32 %s86, 1
        %s955 = smul.addr %s954, 16
        %s956 = scalar_lea.vmem [#allocation5], %s955
        %p957 = pneg %p99
        %p958 = pneg %p96
        %p959 = pneg %p120
        %p960 = pneg %p117
        %p961 = pneg %p141
        %p962 = pneg %p138
        %p963 = pneg %p162
        %p964 = pneg %p159
        %p965 = pneg %p183
        %p966 = pneg %p180
        %p967 = pneg %p204
        %p968 = pneg %p201
        %p969 = pneg %p225
        %p970 = pneg %p222
        %p971 = pneg %p246
        %p972 = pneg %p243
        %p973 = pneg %p267
        %p974 = pneg %p264
        %p975 = pneg %p288
        %p976 = pneg %p285
        %p977 = pneg %p309
        %p978 = pneg %p306
        %p979 = pneg %p330
        %p980 = pneg %p327
        %p981 = pneg %p351
        %p982 = pneg %p348
        %p983 = pneg %p372
        %p984 = pneg %p369
        %p985 = pneg %p393
        %p986 = pneg %p390
        %p987 = pneg %p414
        %p988 = pneg %p411
        %p989 = pneg %p435
        %p990 = pneg %p432
        %p991 = pneg %p456
        %p992 = pneg %p453
        %p993 = pneg %p477
        %p994 = pneg %p474
        %p995 = pneg %p498
        %p996 = pneg %p495
        %p997 = pneg %p519
        %p998 = pneg %p516
        %p999 = pneg %p545
        %p1000 = pneg %p542
        %s1001 = sand.u32 %s532, 1
        %s1002 = scalar_lea.sflag [#allocation4], %s1001
        %s1003 = sand.u32 %s532, 1
        %s1004 = smul.addr %s1003, 16
        %s1005 = scalar_lea.vmem [#allocation37], %s1004
        %v1007 = vld [vmem:[%s851] sm:$0xff]
        %v1008 = vld [vmem:[%s851 + $0x8] sm:$0xff]
        %v1009 = vld [vmem:[%s860] sm:$0xff]
        %v1010 = vld [vmem:[%s860 + $0x8] sm:$0xff]
        %v1011 = vpack.c.bf16 %v1008, %v1007
        %v1012 = vld [vmem:[#allocation7] sm:$0xff]
        %v1013 = vld [vmem:[#allocation7 + $0x8] sm:$0xf]
        %v1014 = vld [vmem:[#allocation7 + $0xc] sm:$0xff]
        %v1015 = vld [vmem:[#allocation7 + $0x14] sm:$0xf]
        %v1016 = vld [vmem:[#allocation7 + $0x18] sm:$0xff]
        %v1017 = vld [vmem:[#allocation7 + $0x20] sm:$0xf]
        %v1018 = vld [vmem:[#allocation7 + $0x24] sm:$0xff]
        %v1019 = vld [vmem:[#allocation7 + $0x2c] sm:$0xf]
        %v1020 = vld [vmem:[#allocation7 + $0x30] sm:$0xff]
        %v1021 = vld [vmem:[#allocation7 + $0x38] sm:$0xf]
        %v1022 = vld [vmem:[#allocation7 + $0x3c] sm:$0xff]
        %v1023 = vld [vmem:[#allocation7 + $0x44] sm:$0xf]
        %v1024 = vld [vmem:[#allocation7 + $0x48] sm:$0xff]
        %v1025 = vld [vmem:[#allocation7 + $0x50] sm:$0xf]
        %v1026 = vld [vmem:[#allocation7 + $0x54] sm:$0xff]
        %v1027 = vld [vmem:[#allocation7 + $0x5c] sm:$0xf]
        %v1028 = vld [vmem:[#allocation7 + $0x60] sm:$0xff]
        %v1029 = vld [vmem:[#allocation7 + $0x68] sm:$0xf]
        %v1030 = vld [vmem:[#allocation7 + $0x6c] sm:$0xff]
        %v1031 = vld [vmem:[#allocation7 + $0x74] sm:$0xf]
        %v1032 = vld [vmem:[#allocation7 + $0x78] sm:$0xff]
        %v1033 = vld [vmem:[#allocation7 + $0x80] sm:$0xf]
        %v1034 = vld [vmem:[#allocation7 + $0x84] sm:$0xff]
        %v1035 = vld [vmem:[#allocation7 + $0x8c] sm:$0xf]
        %v1036 = vld [vmem:[#allocation7 + $0x90] sm:$0xff]
        %v1037 = vld [vmem:[#allocation7 + $0x98] sm:$0xf]
        %v1038 = vld [vmem:[#allocation7 + $0x9c] sm:$0xff]
        %v1039 = vld [vmem:[#allocation7 + $0xa4] sm:$0xf]
        %v1040 = vld [vmem:[#allocation7 + $0xa8] sm:$0xff]
        %v1041 = vld [vmem:[#allocation7 + $0xb0] sm:$0xf]
        %v1042 = vld [vmem:[#allocation7 + $0xb4] sm:$0xff]
        %v1043 = vld [vmem:[#allocation7 + $0xbc] sm:$0xf]
        %v1044 = vld [vmem:[#allocation8] sm:$0x7]
        %v1046 = vlaneseq
        %v1047 = vshrl.u32 %v1046, 7
        %v1048 = vsub.s32 0, %v1047
        %v1049 = vrot.slane %v1044, %v1048
        %v1050 = vlaneseq
        %v1051 = vshrl.u32 %v1050, 7
        %v1052 = vsub.s32 1, %v1051
        %v1053 = vrot.slane %v1044, %v1052
        %v1054 = vlaneseq
        %v1055 = vshrl.u32 %v1054, 7
        %v1056 = vsub.s32 2, %v1055
        %v1057 = vrot.slane %v1044, %v1056
        %v1093 = vunpack.c.l.b16 %v1012
        %v1094 = vunpack.c.h.b16 %v1012
        %v1095 = vunpack.c.l.b16 %v1013
        %v1096 = vunpack.c.l.b16 %v1014
        %v1097 = vunpack.c.h.b16 %v1014
        %v1098 = vunpack.c.l.b16 %v1015
        %v1099 = vunpack.c.l.b16 %v1016
        %v1100 = vunpack.c.h.b16 %v1016
        %v1101 = vunpack.c.l.b16 %v1017
        %v1102 = vunpack.c.l.b16 %v1018
        %v1103 = vunpack.c.h.b16 %v1018
        %v1104 = vunpack.c.l.b16 %v1019
        %v1105 = vunpack.c.l.b16 %v1020
        %v1106 = vunpack.c.h.b16 %v1020
        %v1107 = vunpack.c.l.b16 %v1021
        %v1108 = vunpack.c.l.b16 %v1022
        %v1109 = vunpack.c.h.b16 %v1022
        %v1110 = vunpack.c.l.b16 %v1023
        %v1111 = vunpack.c.l.b16 %v1024
        %v1112 = vunpack.c.h.b16 %v1024
        %v1113 = vunpack.c.l.b16 %v1025
        %v1114 = vunpack.c.l.b16 %v1026
        %v1115 = vunpack.c.h.b16 %v1026
        %v1116 = vunpack.c.l.b16 %v1027
        %v1117 = vunpack.c.l.b16 %v1028
        %v1118 = vunpack.c.h.b16 %v1028
        %v1119 = vunpack.c.l.b16 %v1029
        %v1120 = vunpack.c.l.b16 %v1030
        %v1121 = vunpack.c.h.b16 %v1030
        %v1122 = vunpack.c.l.b16 %v1031
        %v1123 = vunpack.c.l.b16 %v1032
        %v1124 = vunpack.c.h.b16 %v1032
        %v1125 = vunpack.c.l.b16 %v1033
        %v1126 = vunpack.c.l.b16 %v1034
        %v1127 = vunpack.c.h.b16 %v1034
        %v1128 = vunpack.c.l.b16 %v1035
        %v1129 = vunpack.c.l.b16 %v1036
        %v1130 = vunpack.c.h.b16 %v1036
        %v1131 = vunpack.c.l.b16 %v1037
        %v1132 = vunpack.c.l.b16 %v1038
        %v1133 = vunpack.c.h.b16 %v1038
        %v1134 = vunpack.c.l.b16 %v1039
        %v1135 = vunpack.c.l.b16 %v1040
        %v1136 = vunpack.c.h.b16 %v1040
        %v1137 = vunpack.c.l.b16 %v1041
        %v1138 = vunpack.c.l.b16 %v1042
        %v1139 = vunpack.c.h.b16 %v1042
        %v1140 = vunpack.c.l.b16 %v1043
        %v1141 = vpack.c.b16 %v1096, %v1093
        %v1142 = vpack.c.b16 %v1097, %v1094
        %v1143 = vpack.c.b16 %v1098, %v1095
        %v1144 = vpack.c.b16 %v1102, %v1099
        %v1145 = vpack.c.b16 %v1103, %v1100
        %v1146 = vpack.c.b16 %v1104, %v1101
        %v1147 = vpack.c.b16 %v1108, %v1105
        %v1148 = vpack.c.b16 %v1109, %v1106
        %v1149 = vpack.c.b16 %v1110, %v1107
        %v1150 = vpack.c.b16 %v1114, %v1111
        %v1151 = vpack.c.b16 %v1115, %v1112
        %v1152 = vpack.c.b16 %v1116, %v1113
        %v1153 = vpack.c.b16 %v1120, %v1117
        %v1154 = vpack.c.b16 %v1121, %v1118
        %v1155 = vpack.c.b16 %v1122, %v1119
        %v1156 = vpack.c.b16 %v1126, %v1123
        %v1157 = vpack.c.b16 %v1127, %v1124
        %v1158 = vpack.c.b16 %v1128, %v1125
        %v1159 = vpack.c.b16 %v1132, %v1129
        %v1160 = vpack.c.b16 %v1133, %v1130
        %v1161 = vpack.c.b16 %v1134, %v1131
        %v1162 = vpack.c.b16 %v1138, %v1135
        %v1163 = vpack.c.b16 %v1139, %v1136
        %v1164 = vpack.c.b16 %v1140, %v1137
        %1189 = vmatprep.subr.bf16.mxu0 %v1142
        %1190 = vmatpush1.bf16.msra.mxu0 %v1141
        %1191 = vmatprep.subr.bf16.mxu0 %v1145
        %1192 = vmatpush1.bf16.msra.mxu0 %v1144
        %1193 = vmatprep.subr.bf16.mxu0 %v1148
        %1194 = vmatpush1.bf16.msra.mxu0 %v1147
        %1195 = vmatprep.subr.bf16.mxu0 %v1151
        %1196 = vmatpush1.bf16.msra.mxu0 %v1150
        %1197 = vmatprep.subr.bf16.mxu0 %v1154
        %1198 = vmatpush1.bf16.msra.mxu0 %v1153
        %1199 = vmatprep.subr.bf16.mxu0 %v1157
        %1200 = vmatpush1.bf16.msra.mxu0 %v1156
        %1201 = vmatprep.subr.bf16.mxu0 %v1160
        %1202 = vmatpush1.bf16.msra.mxu0 %v1159
        %1203 = vmatprep.subr.bf16.mxu0 %v1163
        %1204 = vmatpush1.bf16.msra.mxu0 %v1162
        %1205 = vmatprep.subr.bf16.mxu0 0
        %1206 = vmatpush1.bf16.msra.mxu0 0
        %1207 = vmatprep.subr.bf16.mxu0 0
        %1208 = vmatpush1.bf16.msra.mxu0 0
        %1209 = vmatprep.subr.bf16.mxu0 0
        %1210 = vmatpush1.bf16.msra.mxu0 0
        %1211 = vmatprep.subr.bf16.mxu0 0
        %1212 = vmatpush1.bf16.msra.mxu0 0
        %1213 = vmatprep.subr.bf16.mxu0 0
        %1214 = vmatpush1.bf16.msra.mxu0 0
        %1215 = vmatprep.subr.bf16.mxu0 0
        %1216 = vmatpush1.bf16.msra.mxu0 0
        %1217 = vmatprep.subr.bf16.mxu0 0
        %1218 = vmatpush1.bf16.msra.mxu0 0
        %1219 = vmatprep.subr.bf16.mxu0 0
        %1220 = vmatpush1.bf16.msra.mxu0 0
        %1221 = vmatprep.mubr.bf16.mxu0 0
        %1222 = vmatmul.mubr.bf16.gmra.mrb[0].mxu0 %v1011
        %v1223 = vpop.f32.mrb[0].mxu0
        %v1224 = vadd.f32 %v1049, %v1223
        %v1225 = vpop.f32.mrb[0].mxu0
        %v1226 = vadd.f32 %v1053, %v1225
        %v1227 = vpop.f32.mrb[0].mxu0
        %v1228 = vadd.f32 %v1049, %v1227
        %v1229 = vpop.f32.mrb[0].mxu0
        %v1230 = vadd.f32 %v1053, %v1229
        %1231 = vdwg.mxu0
        %1232 = vmatprep.subr.bf16.mxu0 0
        %1233 = vmatpush1.bf16.msra.mxu0 %v1143
        %1234 = vmatprep.subr.bf16.mxu0 0
        %1235 = vmatpush1.bf16.msra.mxu0 %v1146
        %1236 = vmatprep.subr.bf16.mxu0 0
        %1237 = vmatpush1.bf16.msra.mxu0 %v1149
        %1238 = vmatprep.subr.bf16.mxu0 0
        %1239 = vmatpush1.bf16.msra.mxu0 %v1152
        %1240 = vmatprep.subr.bf16.mxu0 0
        %1241 = vmatpush1.bf16.msra.mxu0 %v1155
        %1242 = vmatprep.subr.bf16.mxu0 0
        %1243 = vmatpush1.bf16.msra.mxu0 %v1158
        %1244 = vmatprep.subr.bf16.mxu0 0
        %1245 = vmatpush1.bf16.msra.mxu0 %v1161
        %1246 = vmatprep.subr.bf16.mxu0 0
        %1247 = vmatpush1.bf16.msra.mxu0 %v1164
        %1248 = vmatprep.subr.bf16.mxu0 0
        %1249 = vmatpush1.bf16.msra.mxu0 0
        %1250 = vmatprep.subr.bf16.mxu0 0
        %1251 = vmatpush1.bf16.msra.mxu0 0
        %1252 = vmatprep.subr.bf16.mxu0 0
        %1253 = vmatpush1.bf16.msra.mxu0 0
        %1254 = vmatprep.subr.bf16.mxu0 0
        %1255 = vmatpush1.bf16.msra.mxu0 0
        %1256 = vmatprep.subr.bf16.mxu0 0
        %1257 = vmatpush1.bf16.msra.mxu0 0
        %1258 = vmatprep.subr.bf16.mxu0 0
        %1259 = vmatpush1.bf16.msra.mxu0 0
        %1260 = vmatprep.subr.bf16.mxu0 0
        %1261 = vmatpush1.bf16.msra.mxu0 0
        %1262 = vmatprep.subr.bf16.mxu0 0
        %1263 = vmatpush1.bf16.msra.mxu0 0
        %1264 = vmatprep.mubr.bf16.mxu0 0
        %1265 = vmatmul.mubr.bf16.gmra.mrb[0].mxu0 %v1011
        %v1266 = vpop.f32.mrb[0].mxu0
        %v1267 = vadd.f32 %v1057, %v1266
        %v1268 = vpop.f32.mrb[0].mxu0
        %v1269 = vpop.f32.mrb[0].mxu0
        %v1270 = vadd.f32 %v1057, %v1269
        %v1271 = vpop.f32.mrb[0].mxu0
        %1272 = vdwg.mxu0
        %1275 = vrot.lane.b32.xlu0 %v1224, 96
        %v1276 = vpop.permute.xlu0 %1275
        %1277 = vrot.lane.b32.xlu0 %v1228, 96
        %v1278 = vpop.permute.xlu0 %1277
        %1281 = vrot.lane.b32.xlu0 %v1224, 64
        %v1282 = vpop.permute.xlu0 %1281
        %1283 = vrot.lane.b32.xlu0 %v1228, 64
        %v1284 = vpop.permute.xlu0 %1283
        %1287 = vrot.lane.b32.xlu0 %v1224, 32
        %v1288 = vpop.permute.xlu0 %1287
        %1289 = vrot.lane.b32.xlu0 %v1228, 32
        %v1290 = vpop.permute.xlu0 %1289
        %v1293 = vcombine.low %v1224, %v1282
        %v1294 = vcombine.high %v1224, %v1282
        %v1296 = vunpack.c.l.s4 1983009808
        %v1297 = vunpack.c.0.s8 %v1296
        %v1298 = vlaneseq
        %v1299 = vshrl.u32 %v1298, 7
        %v1300 = vsub.s32 %v1297, %v1299
        %v1301 = vrot.slane %v1293, %v1300
        %v1303 = vunpack.c.l.s4 1983009808
        %v1304 = vunpack.c.0.s8 %v1303
        %v1305 = vlaneseq
        %v1306 = vshrl.u32 %v1305, 7
        %v1307 = vsub.s32 %v1304, %v1306
        %v1308 = vrot.slane %v1294, %v1307
        %v1309 = vcombine.low %v1276, %v1288
        %v1310 = vcombine.high %v1276, %v1288
        %v1312 = vunpack.c.l.s4 1983009808
        %v1313 = vunpack.c.0.s8 %v1312
        %v1314 = vlaneseq
        %v1315 = vshrl.u32 %v1314, 7
        %v1316 = vsub.s32 %v1313, %v1315
        %v1317 = vrot.slane %v1309, %v1316
        %v1319 = vunpack.c.l.s4 1983009808
        %v1320 = vunpack.c.0.s8 %v1319
        %v1321 = vlaneseq
        %v1322 = vshrl.u32 %v1321, 7
        %v1323 = vsub.s32 %v1320, %v1322
        %v1324 = vrot.slane %v1310, %v1323
        %v1325 = vcombine.low %v1301, %v1317
        %v1326 = vcombine.high %v1301, %v1317
        %v1328 = vunpack.c.l.s4 1934713408
        %v1329 = vunpack.c.0.s8 %v1328
        %v1330 = vlaneseq
        %v1331 = vshrl.u32 %v1330, 7
        %v1332 = vsub.s32 %v1329, %v1331
        %v1333 = vrot.slane %v1325, %v1332
        %v1335 = vunpack.c.l.s4 1934713408
        %v1336 = vunpack.c.0.s8 %v1335
        %v1337 = vlaneseq
        %v1338 = vshrl.u32 %v1337, 7
        %v1339 = vsub.s32 %v1336, %v1338
        %v1340 = vrot.slane %v1326, %v1339
        %v1341 = vcombine.low %v1308, %v1324
        %v1342 = vcombine.high %v1308, %v1324
        %v1344 = vunpack.c.l.s4 1934713408
        %v1345 = vunpack.c.0.s8 %v1344
        %v1346 = vlaneseq
        %v1347 = vshrl.u32 %v1346, 7
        %v1348 = vsub.s32 %v1345, %v1347
        %v1349 = vrot.slane %v1341, %v1348
        %v1351 = vunpack.c.l.s4 1934713408
        %v1352 = vunpack.c.0.s8 %v1351
        %v1353 = vlaneseq
        %v1354 = vshrl.u32 %v1353, 7
        %v1355 = vsub.s32 %v1352, %v1354
        %v1356 = vrot.slane %v1342, %v1355
        %v1357 = vcombine.high %v1333, 0.0
        %v1358 = vcombine.high %v1340, 0.0
        %v1359 = vcombine.high %v1349, 0.0
        %v1360 = vcombine.high %v1356, 0.0
        %v1361 = vcombine.low %v1228, %v1284
        %v1362 = vcombine.high %v1228, %v1284
        %v1364 = vunpack.c.l.s4 1983009808
        %v1365 = vunpack.c.0.s8 %v1364
        %v1366 = vlaneseq
        %v1367 = vshrl.u32 %v1366, 7
        %v1368 = vsub.s32 %v1365, %v1367
        %v1369 = vrot.slane %v1361, %v1368
        %v1371 = vunpack.c.l.s4 1983009808
        %v1372 = vunpack.c.0.s8 %v1371
        %v1373 = vlaneseq
        %v1374 = vshrl.u32 %v1373, 7
        %v1375 = vsub.s32 %v1372, %v1374
        %v1376 = vrot.slane %v1362, %v1375
        %v1377 = vcombine.low %v1278, %v1290
        %v1378 = vcombine.high %v1278, %v1290
        %v1380 = vunpack.c.l.s4 1983009808
        %v1381 = vunpack.c.0.s8 %v1380
        %v1382 = vlaneseq
        %v1383 = vshrl.u32 %v1382, 7
        %v1384 = vsub.s32 %v1381, %v1383
        %v1385 = vrot.slane %v1377, %v1384
        %v1387 = vunpack.c.l.s4 1983009808
        %v1388 = vunpack.c.0.s8 %v1387
        %v1389 = vlaneseq
        %v1390 = vshrl.u32 %v1389, 7
        %v1391 = vsub.s32 %v1388, %v1390
        %v1392 = vrot.slane %v1378, %v1391
        %v1393 = vcombine.low %v1369, %v1385
        %v1394 = vcombine.high %v1369, %v1385
        %v1396 = vunpack.c.l.s4 1934713408
        %v1397 = vunpack.c.0.s8 %v1396
        %v1398 = vlaneseq
        %v1399 = vshrl.u32 %v1398, 7
        %v1400 = vsub.s32 %v1397, %v1399
        %v1401 = vrot.slane %v1393, %v1400
        %v1403 = vunpack.c.l.s4 1934713408
        %v1404 = vunpack.c.0.s8 %v1403
        %v1405 = vlaneseq
        %v1406 = vshrl.u32 %v1405, 7
        %v1407 = vsub.s32 %v1404, %v1406
        %v1408 = vrot.slane %v1394, %v1407
        %v1409 = vcombine.low %v1376, %v1392
        %v1410 = vcombine.high %v1376, %v1392
        %v1412 = vunpack.c.l.s4 1934713408
        %v1413 = vunpack.c.0.s8 %v1412
        %v1414 = vlaneseq
        %v1415 = vshrl.u32 %v1414, 7
        %v1416 = vsub.s32 %v1413, %v1415
        %v1417 = vrot.slane %v1409, %v1416
        %v1419 = vunpack.c.l.s4 1934713408
        %v1420 = vunpack.c.0.s8 %v1419
        %v1421 = vlaneseq
        %v1422 = vshrl.u32 %v1421, 7
        %v1423 = vsub.s32 %v1420, %v1422
        %v1424 = vrot.slane %v1410, %v1423
        %v1425 = vcombine.high %v1401, 0.0
        %v1426 = vcombine.high %v1408, 0.0
        %v1427 = vcombine.high %v1417, 0.0
        %v1428 = vcombine.high %v1424, 0.0
        %v1429 = vcombine.low %v1333, %v1340
        %v1431 = vunpack.c.l.s4 1983009808
        %v1432 = vunpack.c.0.s8 %v1431
        %v1433 = vlaneseq
        %v1434 = vshrl.u32 %v1433, 7
        %v1435 = vsub.s32 %v1432, %v1434
        %v1436 = vrot.slane %v1429, %v1435
        %v1437 = vcombine.low %v1357, %v1358
        %v1439 = vunpack.c.l.s4 1983009808
        %v1440 = vunpack.c.0.s8 %v1439
        %v1441 = vlaneseq
        %v1442 = vshrl.u32 %v1441, 7
        %v1443 = vsub.s32 %v1440, %v1442
        %v1444 = vrot.slane %v1437, %v1443
        %v1445 = vcombine.low %v1349, %v1356
        %v1447 = vunpack.c.l.s4 1983009808
        %v1448 = vunpack.c.0.s8 %v1447
        %v1449 = vlaneseq
        %v1450 = vshrl.u32 %v1449, 7
        %v1451 = vsub.s32 %v1448, %v1450
        %v1452 = vrot.slane %v1445, %v1451
        %v1453 = vcombine.low %v1359, %v1360
        %v1455 = vunpack.c.l.s4 1983009808
        %v1456 = vunpack.c.0.s8 %v1455
        %v1457 = vlaneseq
        %v1458 = vshrl.u32 %v1457, 7
        %v1459 = vsub.s32 %v1456, %v1458
        %v1460 = vrot.slane %v1453, %v1459
        %v1461 = vcombine.low %v1436, %v1444
        %v1462 = vcombine.high %v1436, %v1444
        %v1464 = vunpack.c.l.s4 1934713408
        %v1465 = vunpack.c.0.s8 %v1464
        %v1466 = vlaneseq
        %v1467 = vshrl.u32 %v1466, 7
        %v1468 = vsub.s32 %v1465, %v1467
        %v1469 = vrot.slane %v1461, %v1468
        %v1471 = vunpack.c.l.s4 1934713408
        %v1472 = vunpack.c.0.s8 %v1471
        %v1473 = vlaneseq
        %v1474 = vshrl.u32 %v1473, 7
        %v1475 = vsub.s32 %v1472, %v1474
        %v1476 = vrot.slane %v1462, %v1475
        %v1477 = vcombine.low %v1452, %v1460
        %v1478 = vcombine.high %v1452, %v1460
        %v1480 = vunpack.c.l.s4 1934713408
        %v1481 = vunpack.c.0.s8 %v1480
        %v1482 = vlaneseq
        %v1483 = vshrl.u32 %v1482, 7
        %v1484 = vsub.s32 %v1481, %v1483
        %v1485 = vrot.slane %v1477, %v1484
        %v1487 = vunpack.c.l.s4 1934713408
        %v1488 = vunpack.c.0.s8 %v1487
        %v1489 = vlaneseq
        %v1490 = vshrl.u32 %v1489, 7
        %v1491 = vsub.s32 %v1488, %v1490
        %v1492 = vrot.slane %v1478, %v1491
        %v1493 = vcombine.low %v1469, %v1485
        %v1494 = vcombine.high %v1469, %v1485
        %v1495 = vcombine.low %v1476, %v1492
        %v1496 = vcombine.high %v1476, %v1492
        %v1497 = vcombine.low %v1401, %v1408
        %v1499 = vunpack.c.l.s4 1983009808
        %v1500 = vunpack.c.0.s8 %v1499
        %v1501 = vlaneseq
        %v1502 = vshrl.u32 %v1501, 7
        %v1503 = vsub.s32 %v1500, %v1502
        %v1504 = vrot.slane %v1497, %v1503
        %v1505 = vcombine.low %v1425, %v1426
        %v1507 = vunpack.c.l.s4 1983009808
        %v1508 = vunpack.c.0.s8 %v1507
        %v1509 = vlaneseq
        %v1510 = vshrl.u32 %v1509, 7
        %v1511 = vsub.s32 %v1508, %v1510
        %v1512 = vrot.slane %v1505, %v1511
        %v1513 = vcombine.low %v1417, %v1424
        %v1515 = vunpack.c.l.s4 1983009808
        %v1516 = vunpack.c.0.s8 %v1515
        %v1517 = vlaneseq
        %v1518 = vshrl.u32 %v1517, 7
        %v1519 = vsub.s32 %v1516, %v1518
        %v1520 = vrot.slane %v1513, %v1519
        %v1521 = vcombine.low %v1427, %v1428
        %v1523 = vunpack.c.l.s4 1983009808
        %v1524 = vunpack.c.0.s8 %v1523
        %v1525 = vlaneseq
        %v1526 = vshrl.u32 %v1525, 7
        %v1527 = vsub.s32 %v1524, %v1526
        %v1528 = vrot.slane %v1521, %v1527
        %v1529 = vcombine.low %v1504, %v1512
        %v1530 = vcombine.high %v1504, %v1512
        %v1532 = vunpack.c.l.s4 1934713408
        %v1533 = vunpack.c.0.s8 %v1532
        %v1534 = vlaneseq
        %v1535 = vshrl.u32 %v1534, 7
        %v1536 = vsub.s32 %v1533, %v1535
        %v1537 = vrot.slane %v1529, %v1536
        %v1539 = vunpack.c.l.s4 1934713408
        %v1540 = vunpack.c.0.s8 %v1539
        %v1541 = vlaneseq
        %v1542 = vshrl.u32 %v1541, 7
        %v1543 = vsub.s32 %v1540, %v1542
        %v1544 = vrot.slane %v1530, %v1543
        %v1545 = vcombine.low %v1520, %v1528
        %v1546 = vcombine.high %v1520, %v1528
        %v1548 = vunpack.c.l.s4 1934713408
        %v1549 = vunpack.c.0.s8 %v1548
        %v1550 = vlaneseq
        %v1551 = vshrl.u32 %v1550, 7
        %v1552 = vsub.s32 %v1549, %v1551
        %v1553 = vrot.slane %v1545, %v1552
        %v1555 = vunpack.c.l.s4 1934713408
        %v1556 = vunpack.c.0.s8 %v1555
        %v1557 = vlaneseq
        %v1558 = vshrl.u32 %v1557, 7
        %v1559 = vsub.s32 %v1556, %v1558
        %v1560 = vrot.slane %v1546, %v1559
        %v1561 = vcombine.low %v1537, %v1553
        %v1562 = vcombine.high %v1537, %v1553
        %v1563 = vcombine.low %v1544, %v1560
        %v1564 = vcombine.high %v1544, %v1560
        %1567 = vrot.lane.b32.xlu0 %v1226, 96
        %v1568 = vpop.permute.xlu0 %1567
        %1569 = vrot.lane.b32.xlu0 %v1230, 96
        %v1570 = vpop.permute.xlu0 %1569
        %1573 = vrot.lane.b32.xlu0 %v1226, 64
        %v1574 = vpop.permute.xlu0 %1573
        %1575 = vrot.lane.b32.xlu0 %v1230, 64
        %v1576 = vpop.permute.xlu0 %1575
        %1579 = vrot.lane.b32.xlu0 %v1226, 32
        %v1580 = vpop.permute.xlu0 %1579
        %1581 = vrot.lane.b32.xlu0 %v1230, 32
        %v1582 = vpop.permute.xlu0 %1581
        %v1585 = vcombine.low %v1226, %v1574
        %v1586 = vcombine.high %v1226, %v1574
        %v1588 = vunpack.c.l.s4 1983009808
        %v1589 = vunpack.c.0.s8 %v1588
        %v1590 = vlaneseq
        %v1591 = vshrl.u32 %v1590, 7
        %v1592 = vsub.s32 %v1589, %v1591
        %v1593 = vrot.slane %v1585, %v1592
        %v1595 = vunpack.c.l.s4 1983009808
        %v1596 = vunpack.c.0.s8 %v1595
        %v1597 = vlaneseq
        %v1598 = vshrl.u32 %v1597, 7
        %v1599 = vsub.s32 %v1596, %v1598
        %v1600 = vrot.slane %v1586, %v1599
        %v1601 = vcombine.low %v1568, %v1580
        %v1602 = vcombine.high %v1568, %v1580
        %v1604 = vunpack.c.l.s4 1983009808
        %v1605 = vunpack.c.0.s8 %v1604
        %v1606 = vlaneseq
        %v1607 = vshrl.u32 %v1606, 7
        %v1608 = vsub.s32 %v1605, %v1607
        %v1609 = vrot.slane %v1601, %v1608
        %v1611 = vunpack.c.l.s4 1983009808
        %v1612 = vunpack.c.0.s8 %v1611
        %v1613 = vlaneseq
        %v1614 = vshrl.u32 %v1613, 7
        %v1615 = vsub.s32 %v1612, %v1614
        %v1616 = vrot.slane %v1602, %v1615
        %v1617 = vcombine.low %v1593, %v1609
        %v1618 = vcombine.high %v1593, %v1609
        %v1620 = vunpack.c.l.s4 1934713408
        %v1621 = vunpack.c.0.s8 %v1620
        %v1622 = vlaneseq
        %v1623 = vshrl.u32 %v1622, 7
        %v1624 = vsub.s32 %v1621, %v1623
        %v1625 = vrot.slane %v1617, %v1624
        %v1627 = vunpack.c.l.s4 1934713408
        %v1628 = vunpack.c.0.s8 %v1627
        %v1629 = vlaneseq
        %v1630 = vshrl.u32 %v1629, 7
        %v1631 = vsub.s32 %v1628, %v1630
        %v1632 = vrot.slane %v1618, %v1631
        %v1633 = vcombine.low %v1600, %v1616
        %v1634 = vcombine.high %v1600, %v1616
        %v1636 = vunpack.c.l.s4 1934713408
        %v1637 = vunpack.c.0.s8 %v1636
        %v1638 = vlaneseq
        %v1639 = vshrl.u32 %v1638, 7
        %v1640 = vsub.s32 %v1637, %v1639
        %v1641 = vrot.slane %v1633, %v1640
        %v1643 = vunpack.c.l.s4 1934713408
        %v1644 = vunpack.c.0.s8 %v1643
        %v1645 = vlaneseq
        %v1646 = vshrl.u32 %v1645, 7
        %v1647 = vsub.s32 %v1644, %v1646
        %v1648 = vrot.slane %v1634, %v1647
        %v1649 = vcombine.high %v1625, 0.0
        %v1650 = vcombine.high %v1632, 0.0
        %v1651 = vcombine.high %v1641, 0.0
        %v1652 = vcombine.high %v1648, 0.0
        %v1653 = vcombine.low %v1230, %v1576
        %v1654 = vcombine.high %v1230, %v1576
        %v1656 = vunpack.c.l.s4 1983009808
        %v1657 = vunpack.c.0.s8 %v1656
        %v1658 = vlaneseq
        %v1659 = vshrl.u32 %v1658, 7
        %v1660 = vsub.s32 %v1657, %v1659
        %v1661 = vrot.slane %v1653, %v1660
        %v1663 = vunpack.c.l.s4 1983009808
        %v1664 = vunpack.c.0.s8 %v1663
        %v1665 = vlaneseq
        %v1666 = vshrl.u32 %v1665, 7
        %v1667 = vsub.s32 %v1664, %v1666
        %v1668 = vrot.slane %v1654, %v1667
        %v1669 = vcombine.low %v1570, %v1582
        %v1670 = vcombine.high %v1570, %v1582
        %v1672 = vunpack.c.l.s4 1983009808
        %v1673 = vunpack.c.0.s8 %v1672
        %v1674 = vlaneseq
        %v1675 = vshrl.u32 %v1674, 7
        %v1676 = vsub.s32 %v1673, %v1675
        %v1677 = vrot.slane %v1669, %v1676
        %v1679 = vunpack.c.l.s4 1983009808
        %v1680 = vunpack.c.0.s8 %v1679
        %v1681 = vlaneseq
        %v1682 = vshrl.u32 %v1681, 7
        %v1683 = vsub.s32 %v1680, %v1682
        %v1684 = vrot.slane %v1670, %v1683
        %v1685 = vcombine.low %v1661, %v1677
        %v1686 = vcombine.high %v1661, %v1677
        %v1688 = vunpack.c.l.s4 1934713408
        %v1689 = vunpack.c.0.s8 %v1688
        %v1690 = vlaneseq
        %v1691 = vshrl.u32 %v1690, 7
        %v1692 = vsub.s32 %v1689, %v1691
        %v1693 = vrot.slane %v1685, %v1692
        %v1695 = vunpack.c.l.s4 1934713408
        %v1696 = vunpack.c.0.s8 %v1695
        %v1697 = vlaneseq
        %v1698 = vshrl.u32 %v1697, 7
        %v1699 = vsub.s32 %v1696, %v1698
        %v1700 = vrot.slane %v1686, %v1699
        %v1701 = vcombine.low %v1668, %v1684
        %v1702 = vcombine.high %v1668, %v1684
        %v1704 = vunpack.c.l.s4 1934713408
        %v1705 = vunpack.c.0.s8 %v1704
        %v1706 = vlaneseq
        %v1707 = vshrl.u32 %v1706, 7
        %v1708 = vsub.s32 %v1705, %v1707
        %v1709 = vrot.slane %v1701, %v1708
        %v1711 = vunpack.c.l.s4 1934713408
        %v1712 = vunpack.c.0.s8 %v1711
        %v1713 = vlaneseq
        %v1714 = vshrl.u32 %v1713, 7
        %v1715 = vsub.s32 %v1712, %v1714
        %v1716 = vrot.slane %v1702, %v1715
        %v1717 = vcombine.high %v1693, 0.0
        %v1718 = vcombine.high %v1700, 0.0
        %v1719 = vcombine.high %v1709, 0.0
        %v1720 = vcombine.high %v1716, 0.0
        %v1721 = vcombine.low %v1625, %v1632
        %v1723 = vunpack.c.l.s4 1983009808
        %v1724 = vunpack.c.0.s8 %v1723
        %v1725 = vlaneseq
        %v1726 = vshrl.u32 %v1725, 7
        %v1727 = vsub.s32 %v1724, %v1726
        %v1728 = vrot.slane %v1721, %v1727
        %v1729 = vcombine.low %v1649, %v1650
        %v1731 = vunpack.c.l.s4 1983009808
        %v1732 = vunpack.c.0.s8 %v1731
        %v1733 = vlaneseq
        %v1734 = vshrl.u32 %v1733, 7
        %v1735 = vsub.s32 %v1732, %v1734
        %v1736 = vrot.slane %v1729, %v1735
        %v1737 = vcombine.low %v1641, %v1648
        %v1739 = vunpack.c.l.s4 1983009808
        %v1740 = vunpack.c.0.s8 %v1739
        %v1741 = vlaneseq
        %v1742 = vshrl.u32 %v1741, 7
        %v1743 = vsub.s32 %v1740, %v1742
        %v1744 = vrot.slane %v1737, %v1743
        %v1745 = vcombine.low %v1651, %v1652
        %v1747 = vunpack.c.l.s4 1983009808
        %v1748 = vunpack.c.0.s8 %v1747
        %v1749 = vlaneseq
        %v1750 = vshrl.u32 %v1749, 7
        %v1751 = vsub.s32 %v1748, %v1750
        %v1752 = vrot.slane %v1745, %v1751
        %v1753 = vcombine.low %v1728, %v1736
        %v1754 = vcombine.high %v1728, %v1736
        %v1756 = vunpack.c.l.s4 1934713408
        %v1757 = vunpack.c.0.s8 %v1756
        %v1758 = vlaneseq
        %v1759 = vshrl.u32 %v1758, 7
        %v1760 = vsub.s32 %v1757, %v1759
        %v1761 = vrot.slane %v1753, %v1760
        %v1763 = vunpack.c.l.s4 1934713408
        %v1764 = vunpack.c.0.s8 %v1763
        %v1765 = vlaneseq
        %v1766 = vshrl.u32 %v1765, 7
        %v1767 = vsub.s32 %v1764, %v1766
        %v1768 = vrot.slane %v1754, %v1767
        %v1769 = vcombine.low %v1744, %v1752
        %v1770 = vcombine.high %v1744, %v1752
        %v1772 = vunpack.c.l.s4 1934713408
        %v1773 = vunpack.c.0.s8 %v1772
        %v1774 = vlaneseq
        %v1775 = vshrl.u32 %v1774, 7
        %v1776 = vsub.s32 %v1773, %v1775
        %v1777 = vrot.slane %v1769, %v1776
        %v1779 = vunpack.c.l.s4 1934713408
        %v1780 = vunpack.c.0.s8 %v1779
        %v1781 = vlaneseq
        %v1782 = vshrl.u32 %v1781, 7
        %v1783 = vsub.s32 %v1780, %v1782
        %v1784 = vrot.slane %v1770, %v1783
        %v1785 = vcombine.low %v1761, %v1777
        %v1786 = vcombine.high %v1761, %v1777
        %v1787 = vcombine.low %v1768, %v1784
        %v1788 = vcombine.high %v1768, %v1784
        %v1789 = vcombine.low %v1693, %v1700
        %v1791 = vunpack.c.l.s4 1983009808
        %v1792 = vunpack.c.0.s8 %v1791
        %v1793 = vlaneseq
        %v1794 = vshrl.u32 %v1793, 7
        %v1795 = vsub.s32 %v1792, %v1794
        %v1796 = vrot.slane %v1789, %v1795
        %v1797 = vcombine.low %v1717, %v1718
        %v1799 = vunpack.c.l.s4 1983009808
        %v1800 = vunpack.c.0.s8 %v1799
        %v1801 = vlaneseq
        %v1802 = vshrl.u32 %v1801, 7
        %v1803 = vsub.s32 %v1800, %v1802
        %v1804 = vrot.slane %v1797, %v1803
        %v1805 = vcombine.low %v1709, %v1716
        %v1807 = vunpack.c.l.s4 1983009808
        %v1808 = vunpack.c.0.s8 %v1807
        %v1809 = vlaneseq
        %v1810 = vshrl.u32 %v1809, 7
        %v1811 = vsub.s32 %v1808, %v1810
        %v1812 = vrot.slane %v1805, %v1811
        %v1813 = vcombine.low %v1719, %v1720
        %v1815 = vunpack.c.l.s4 1983009808
        %v1816 = vunpack.c.0.s8 %v1815
        %v1817 = vlaneseq
        %v1818 = vshrl.u32 %v1817, 7
        %v1819 = vsub.s32 %v1816, %v1818
        %v1820 = vrot.slane %v1813, %v1819
        %v1821 = vcombine.low %v1796, %v1804
        %v1822 = vcombine.high %v1796, %v1804
        %v1824 = vunpack.c.l.s4 1934713408
        %v1825 = vunpack.c.0.s8 %v1824
        %v1826 = vlaneseq
        %v1827 = vshrl.u32 %v1826, 7
        %v1828 = vsub.s32 %v1825, %v1827
        %v1829 = vrot.slane %v1821, %v1828
        %v1831 = vunpack.c.l.s4 1934713408
        %v1832 = vunpack.c.0.s8 %v1831
        %v1833 = vlaneseq
        %v1834 = vshrl.u32 %v1833, 7
        %v1835 = vsub.s32 %v1832, %v1834
        %v1836 = vrot.slane %v1822, %v1835
        %v1837 = vcombine.low %v1812, %v1820
        %v1838 = vcombine.high %v1812, %v1820
        %v1840 = vunpack.c.l.s4 1934713408
        %v1841 = vunpack.c.0.s8 %v1840
        %v1842 = vlaneseq
        %v1843 = vshrl.u32 %v1842, 7
        %v1844 = vsub.s32 %v1841, %v1843
        %v1845 = vrot.slane %v1837, %v1844
        %v1847 = vunpack.c.l.s4 1934713408
        %v1848 = vunpack.c.0.s8 %v1847
        %v1849 = vlaneseq
        %v1850 = vshrl.u32 %v1849, 7
        %v1851 = vsub.s32 %v1848, %v1850
        %v1852 = vrot.slane %v1838, %v1851
        %v1853 = vcombine.low %v1829, %v1845
        %v1854 = vcombine.high %v1829, %v1845
        %v1855 = vcombine.low %v1836, %v1852
        %v1856 = vcombine.high %v1836, %v1852
        %1859 = vrot.lane.b32.xlu0 %v1267, 96
        %v1860 = vpop.permute.xlu0 %1859
        %1861 = vrot.lane.b32.xlu0 %v1270, 96
        %v1862 = vpop.permute.xlu0 %1861
        %1865 = vrot.lane.b32.xlu0 %v1267, 64
        %v1866 = vpop.permute.xlu0 %1865
        %1867 = vrot.lane.b32.xlu0 %v1270, 64
        %v1868 = vpop.permute.xlu0 %1867
        %1871 = vrot.lane.b32.xlu0 %v1267, 32
        %v1872 = vpop.permute.xlu0 %1871
        %1873 = vrot.lane.b32.xlu0 %v1270, 32
        %v1874 = vpop.permute.xlu0 %1873
        %v1877 = vcombine.low %v1267, %v1866
        %v1878 = vcombine.high %v1267, %v1866
        %v1880 = vunpack.c.l.s4 1983009808
        %v1881 = vunpack.c.0.s8 %v1880
        %v1882 = vlaneseq
        %v1883 = vshrl.u32 %v1882, 7
        %v1884 = vsub.s32 %v1881, %v1883
        %v1885 = vrot.slane %v1877, %v1884
        %v1887 = vunpack.c.l.s4 1983009808
        %v1888 = vunpack.c.0.s8 %v1887
        %v1889 = vlaneseq
        %v1890 = vshrl.u32 %v1889, 7
        %v1891 = vsub.s32 %v1888, %v1890
        %v1892 = vrot.slane %v1878, %v1891
        %v1893 = vcombine.low %v1860, %v1872
        %v1894 = vcombine.high %v1860, %v1872
        %v1896 = vunpack.c.l.s4 1983009808
        %v1897 = vunpack.c.0.s8 %v1896
        %v1898 = vlaneseq
        %v1899 = vshrl.u32 %v1898, 7
        %v1900 = vsub.s32 %v1897, %v1899
        %v1901 = vrot.slane %v1893, %v1900
        %v1903 = vunpack.c.l.s4 1983009808
        %v1904 = vunpack.c.0.s8 %v1903
        %v1905 = vlaneseq
        %v1906 = vshrl.u32 %v1905, 7
        %v1907 = vsub.s32 %v1904, %v1906
        %v1908 = vrot.slane %v1894, %v1907
        %v1909 = vcombine.low %v1885, %v1901
        %v1910 = vcombine.high %v1885, %v1901
        %v1912 = vunpack.c.l.s4 1934713408
        %v1913 = vunpack.c.0.s8 %v1912
        %v1914 = vlaneseq
        %v1915 = vshrl.u32 %v1914, 7
        %v1916 = vsub.s32 %v1913, %v1915
        %v1917 = vrot.slane %v1909, %v1916
        %v1919 = vunpack.c.l.s4 1934713408
        %v1920 = vunpack.c.0.s8 %v1919
        %v1921 = vlaneseq
        %v1922 = vshrl.u32 %v1921, 7
        %v1923 = vsub.s32 %v1920, %v1922
        %v1924 = vrot.slane %v1910, %v1923
        %v1925 = vcombine.low %v1892, %v1908
        %v1926 = vcombine.high %v1892, %v1908
        %v1928 = vunpack.c.l.s4 1934713408
        %v1929 = vunpack.c.0.s8 %v1928
        %v1930 = vlaneseq
        %v1931 = vshrl.u32 %v1930, 7
        %v1932 = vsub.s32 %v1929, %v1931
        %v1933 = vrot.slane %v1925, %v1932
        %v1935 = vunpack.c.l.s4 1934713408
        %v1936 = vunpack.c.0.s8 %v1935
        %v1937 = vlaneseq
        %v1938 = vshrl.u32 %v1937, 7
        %v1939 = vsub.s32 %v1936, %v1938
        %v1940 = vrot.slane %v1926, %v1939
        %v1941 = vcombine.high %v1917, 0.0
        %v1942 = vcombine.high %v1924, 0.0
        %v1943 = vcombine.high %v1933, 0.0
        %v1944 = vcombine.high %v1940, 0.0
        %v1945 = vcombine.low %v1270, %v1868
        %v1946 = vcombine.high %v1270, %v1868
        %v1948 = vunpack.c.l.s4 1983009808
        %v1949 = vunpack.c.0.s8 %v1948
        %v1950 = vlaneseq
        %v1951 = vshrl.u32 %v1950, 7
        %v1952 = vsub.s32 %v1949, %v1951
        %v1953 = vrot.slane %v1945, %v1952
        %v1955 = vunpack.c.l.s4 1983009808
        %v1956 = vunpack.c.0.s8 %v1955
        %v1957 = vlaneseq
        %v1958 = vshrl.u32 %v1957, 7
        %v1959 = vsub.s32 %v1956, %v1958
        %v1960 = vrot.slane %v1946, %v1959
        %v1961 = vcombine.low %v1862, %v1874
        %v1962 = vcombine.high %v1862, %v1874
        %v1964 = vunpack.c.l.s4 1983009808
        %v1965 = vunpack.c.0.s8 %v1964
        %v1966 = vlaneseq
        %v1967 = vshrl.u32 %v1966, 7
        %v1968 = vsub.s32 %v1965, %v1967
        %v1969 = vrot.slane %v1961, %v1968
        %v1971 = vunpack.c.l.s4 1983009808
        %v1972 = vunpack.c.0.s8 %v1971
        %v1973 = vlaneseq
        %v1974 = vshrl.u32 %v1973, 7
        %v1975 = vsub.s32 %v1972, %v1974
        %v1976 = vrot.slane %v1962, %v1975
        %v1977 = vcombine.low %v1953, %v1969
        %v1978 = vcombine.high %v1953, %v1969
        %v1980 = vunpack.c.l.s4 1934713408
        %v1981 = vunpack.c.0.s8 %v1980
        %v1982 = vlaneseq
        %v1983 = vshrl.u32 %v1982, 7
        %v1984 = vsub.s32 %v1981, %v1983
        %v1985 = vrot.slane %v1977, %v1984
        %v1987 = vunpack.c.l.s4 1934713408
        %v1988 = vunpack.c.0.s8 %v1987
        %v1989 = vlaneseq
        %v1990 = vshrl.u32 %v1989, 7
        %v1991 = vsub.s32 %v1988, %v1990
        %v1992 = vrot.slane %v1978, %v1991
        %v1993 = vcombine.low %v1960, %v1976
        %v1994 = vcombine.high %v1960, %v1976
        %v1996 = vunpack.c.l.s4 1934713408
        %v1997 = vunpack.c.0.s8 %v1996
        %v1998 = vlaneseq
        %v1999 = vshrl.u32 %v1998, 7
        %v2000 = vsub.s32 %v1997, %v1999
        %v2001 = vrot.slane %v1993, %v2000
        %v2003 = vunpack.c.l.s4 1934713408
        %v2004 = vunpack.c.0.s8 %v2003
        %v2005 = vlaneseq
        %v2006 = vshrl.u32 %v2005, 7
        %v2007 = vsub.s32 %v2004, %v2006
        %v2008 = vrot.slane %v1994, %v2007
        %v2009 = vcombine.high %v1985, 0.0
        %v2010 = vcombine.high %v1992, 0.0
        %v2011 = vcombine.high %v2001, 0.0
        %v2012 = vcombine.high %v2008, 0.0
        %v2013 = vcombine.low %v1917, %v1924
        %v2015 = vunpack.c.l.s4 1983009808
        %v2016 = vunpack.c.0.s8 %v2015
        %v2017 = vlaneseq
        %v2018 = vshrl.u32 %v2017, 7
        %v2019 = vsub.s32 %v2016, %v2018
        %v2020 = vrot.slane %v2013, %v2019
        %v2021 = vcombine.low %v1941, %v1942
        %v2023 = vunpack.c.l.s4 1983009808
        %v2024 = vunpack.c.0.s8 %v2023
        %v2025 = vlaneseq
        %v2026 = vshrl.u32 %v2025, 7
        %v2027 = vsub.s32 %v2024, %v2026
        %v2028 = vrot.slane %v2021, %v2027
        %v2029 = vcombine.low %v1933, %v1940
        %v2031 = vunpack.c.l.s4 1983009808
        %v2032 = vunpack.c.0.s8 %v2031
        %v2033 = vlaneseq
        %v2034 = vshrl.u32 %v2033, 7
        %v2035 = vsub.s32 %v2032, %v2034
        %v2036 = vrot.slane %v2029, %v2035
        %v2037 = vcombine.low %v1943, %v1944
        %v2039 = vunpack.c.l.s4 1983009808
        %v2040 = vunpack.c.0.s8 %v2039
        %v2041 = vlaneseq
        %v2042 = vshrl.u32 %v2041, 7
        %v2043 = vsub.s32 %v2040, %v2042
        %v2044 = vrot.slane %v2037, %v2043
        %v2045 = vcombine.low %v2020, %v2028
        %v2046 = vcombine.high %v2020, %v2028
        %v2048 = vunpack.c.l.s4 1934713408
        %v2049 = vunpack.c.0.s8 %v2048
        %v2050 = vlaneseq
        %v2051 = vshrl.u32 %v2050, 7
        %v2052 = vsub.s32 %v2049, %v2051
        %v2053 = vrot.slane %v2045, %v2052
        %v2055 = vunpack.c.l.s4 1934713408
        %v2056 = vunpack.c.0.s8 %v2055
        %v2057 = vlaneseq
        %v2058 = vshrl.u32 %v2057, 7
        %v2059 = vsub.s32 %v2056, %v2058
        %v2060 = vrot.slane %v2046, %v2059
        %v2061 = vcombine.low %v2036, %v2044
        %v2062 = vcombine.high %v2036, %v2044
        %v2064 = vunpack.c.l.s4 1934713408
        %v2065 = vunpack.c.0.s8 %v2064
        %v2066 = vlaneseq
        %v2067 = vshrl.u32 %v2066, 7
        %v2068 = vsub.s32 %v2065, %v2067
        %v2069 = vrot.slane %v2061, %v2068
        %v2071 = vunpack.c.l.s4 1934713408
        %v2072 = vunpack.c.0.s8 %v2071
        %v2073 = vlaneseq
        %v2074 = vshrl.u32 %v2073, 7
        %v2075 = vsub.s32 %v2072, %v2074
        %v2076 = vrot.slane %v2062, %v2075
        %v2077 = vcombine.low %v2053, %v2069
        %v2078 = vcombine.high %v2053, %v2069
        %v2079 = vcombine.low %v2060, %v2076
        %v2080 = vcombine.high %v2060, %v2076
        %v2081 = vcombine.low %v1985, %v1992
        %v2083 = vunpack.c.l.s4 1983009808
        %v2084 = vunpack.c.0.s8 %v2083
        %v2085 = vlaneseq
        %v2086 = vshrl.u32 %v2085, 7
        %v2087 = vsub.s32 %v2084, %v2086
        %v2088 = vrot.slane %v2081, %v2087
        %v2089 = vcombine.low %v2009, %v2010
        %v2091 = vunpack.c.l.s4 1983009808
        %v2092 = vunpack.c.0.s8 %v2091
        %v2093 = vlaneseq
        %v2094 = vshrl.u32 %v2093, 7
        %v2095 = vsub.s32 %v2092, %v2094
        %v2096 = vrot.slane %v2089, %v2095
        %v2097 = vcombine.low %v2001, %v2008
        %v2099 = vunpack.c.l.s4 1983009808
        %v2100 = vunpack.c.0.s8 %v2099
        %v2101 = vlaneseq
        %v2102 = vshrl.u32 %v2101, 7
        %v2103 = vsub.s32 %v2100, %v2102
        %v2104 = vrot.slane %v2097, %v2103
        %v2105 = vcombine.low %v2011, %v2012
        %v2107 = vunpack.c.l.s4 1983009808
        %v2108 = vunpack.c.0.s8 %v2107
        %v2109 = vlaneseq
        %v2110 = vshrl.u32 %v2109, 7
        %v2111 = vsub.s32 %v2108, %v2110
        %v2112 = vrot.slane %v2105, %v2111
        %v2113 = vcombine.low %v2088, %v2096
        %v2114 = vcombine.high %v2088, %v2096
        %v2116 = vunpack.c.l.s4 1934713408
        %v2117 = vunpack.c.0.s8 %v2116
        %v2118 = vlaneseq
        %v2119 = vshrl.u32 %v2118, 7
        %v2120 = vsub.s32 %v2117, %v2119
        %v2121 = vrot.slane %v2113, %v2120
        %v2123 = vunpack.c.l.s4 1934713408
        %v2124 = vunpack.c.0.s8 %v2123
        %v2125 = vlaneseq
        %v2126 = vshrl.u32 %v2125, 7
        %v2127 = vsub.s32 %v2124, %v2126
        %v2128 = vrot.slane %v2114, %v2127
        %v2129 = vcombine.low %v2104, %v2112
        %v2130 = vcombine.high %v2104, %v2112
        %v2132 = vunpack.c.l.s4 1934713408
        %v2133 = vunpack.c.0.s8 %v2132
        %v2134 = vlaneseq
        %v2135 = vshrl.u32 %v2134, 7
        %v2136 = vsub.s32 %v2133, %v2135
        %v2137 = vrot.slane %v2129, %v2136
        %v2139 = vunpack.c.l.s4 1934713408
        %v2140 = vunpack.c.0.s8 %v2139
        %v2141 = vlaneseq
        %v2142 = vshrl.u32 %v2141, 7
        %v2143 = vsub.s32 %v2140, %v2142
        %v2144 = vrot.slane %v2130, %v2143
        %v2145 = vcombine.low %v2121, %v2137
        %v2146 = vcombine.high %v2121, %v2137
        %v2147 = vcombine.low %v2128, %v2144
        %v2148 = vcombine.high %v2128, %v2144
        %v2149 = vpack.c.bf16 %v1561, %v1493
        %v2150 = vpack.c.bf16 %v1562, %v1494
        %v2151 = vpack.c.bf16 %v1563, %v1495
        %v2152 = vpack.c.bf16 %v1564, %v1496
        %v2153 = vpack.c.bf16 %v1853, %v1785
        %v2154 = vpack.c.bf16 %v1854, %v1786
        %v2155 = vpack.c.bf16 %v1855, %v1787
        %v2156 = vpack.c.bf16 %v1856, %v1788
        %vm2157 = vcmask 261120
        %v2159 = vsel %vm2157, %v2149, 0
        %v2162 = vsel %vm2157, %v2153, 0
        %2164 = vmatprep.subr.bf16.mxu0 0
        %2165 = vmatpush1.bf16.xpose.msra.mxu0 %v2162
        %2166 = vmatprep.subr.bf16.mxu0 0
        %2167 = vmatpush1.bf16.xpose.msra.mxu0 0
        %2168 = vmatprep.subr.bf16.mxu0 0
        %2169 = vmatpush1.bf16.xpose.msra.mxu0 0
        %2170 = vmatprep.subr.bf16.mxu0 0
        %2171 = vmatpush1.bf16.xpose.msra.mxu0 0
        %2172 = vmatprep.subr.bf16.mxu0 0
        %2173 = vmatpush1.bf16.xpose.msra.mxu0 0
        %2174 = vmatprep.subr.bf16.mxu0 0
        %2175 = vmatpush1.bf16.xpose.msra.mxu0 0
        %2176 = vmatprep.subr.bf16.mxu0 0
        %2177 = vmatpush1.bf16.xpose.msra.mxu0 0
        %2178 = vmatprep.subr.bf16.mxu0 0
        %2179 = vmatpush1.bf16.xpose.msra.mxu0 0
        %2180 = vmatprep.subr.bf16.mxu0 0
        %2181 = vmatpush1.bf16.xpose.msra.mxu0 0
        %2182 = vmatprep.subr.bf16.mxu0 0
        %2183 = vmatpush1.bf16.xpose.msra.mxu0 0
        %2184 = vmatprep.subr.bf16.mxu0 0
        %2185 = vmatpush1.bf16.xpose.msra.mxu0 0
        %2186 = vmatprep.subr.bf16.mxu0 0
        %2187 = vmatpush1.bf16.xpose.msra.mxu0 0
        %2188 = vmatprep.subr.bf16.mxu0 0
        %2189 = vmatpush1.bf16.xpose.msra.mxu0 0
        %2190 = vmatprep.subr.bf16.mxu0 0
        %2191 = vmatpush1.bf16.xpose.msra.mxu0 0
        %2192 = vmatprep.subr.bf16.mxu0 0
        %2193 = vmatpush1.bf16.xpose.msra.mxu0 0
        %2194 = vmatprep.subr.bf16.mxu0 0
        %2195 = vmatpush1.bf16.xpose.msra.mxu0 0
        %2196 = vmatprep.mubr.bf16.mxu0 0
        %2197 = vmatmul.mubr.bf16.gmra.mrb[0].mxu0 %v2159
        %v2198 = vpop.f32.mrb[0].mxu0
        %v2199 = vadd.f32 0.0, %v2198
        %v2200 = vpop.f32.mrb[0].mxu0
        %v2201 = vpop.f32.mrb[0].mxu0
        %v2202 = vadd.f32 0.0, %v2201
        %v2203 = vpop.f32.mrb[0].mxu0
        %2204 = vdwg.mxu0
        %v2206 = vsel %vm2157, %v2150, 0
        %v2209 = vsel %vm2157, %v2154, 0
        %2211 = vmatprep.subr.bf16.mxu0 0
        %2212 = vmatpush1.bf16.xpose.msra.mxu0 %v2209
        %2213 = vmatprep.subr.bf16.mxu0 0
        %2214 = vmatpush1.bf16.xpose.msra.mxu0 0
        %2215 = vmatprep.subr.bf16.mxu0 0
        %2216 = vmatpush1.bf16.xpose.msra.mxu0 0
        %2217 = vmatprep.subr.bf16.mxu0 0
        %2218 = vmatpush1.bf16.xpose.msra.mxu0 0
        %2219 = vmatprep.subr.bf16.mxu0 0
        %2220 = vmatpush1.bf16.xpose.msra.mxu0 0
        %2221 = vmatprep.subr.bf16.mxu0 0
        %2222 = vmatpush1.bf16.xpose.msra.mxu0 0
        %2223 = vmatprep.subr.bf16.mxu0 0
        %2224 = vmatpush1.bf16.xpose.msra.mxu0 0
        %2225 = vmatprep.subr.bf16.mxu0 0
        %2226 = vmatpush1.bf16.xpose.msra.mxu0 0
        %2227 = vmatprep.subr.bf16.mxu0 0
        %2228 = vmatpush1.bf16.xpose.msra.mxu0 0
        %2229 = vmatprep.subr.bf16.mxu0 0
        %2230 = vmatpush1.bf16.xpose.msra.mxu0 0
        %2231 = vmatprep.subr.bf16.mxu0 0
        %2232 = vmatpush1.bf16.xpose.msra.mxu0 0
        %2233 = vmatprep.subr.bf16.mxu0 0
        %2234 = vmatpush1.bf16.xpose.msra.mxu0 0
        %2235 = vmatprep.subr.bf16.mxu0 0
        %2236 = vmatpush1.bf16.xpose.msra.mxu0 0
        %2237 = vmatprep.subr.bf16.mxu0 0
        %2238 = vmatpush1.bf16.xpose.msra.mxu0 0
        %2239 = vmatprep.subr.bf16.mxu0 0
        %2240 = vmatpush1.bf16.xpose.msra.mxu0 0
        %2241 = vmatprep.subr.bf16.mxu0 0
        %2242 = vmatpush1.bf16.xpose.msra.mxu0 0
        %2243 = vmatprep.mubr.bf16.mxu0 0
        %2244 = vmatmul.mubr.bf16.gmra.mrb[0].mxu0 %v2206
        %v2245 = vpop.f32.mrb[0].mxu0
        %v2246 = vadd.f32 0.0, %v2245
        %v2247 = vpop.f32.mrb[0].mxu0
        %v2248 = vpop.f32.mrb[0].mxu0
        %v2249 = vadd.f32 0.0, %v2248
        %v2250 = vpop.f32.mrb[0].mxu0
        %2251 = vdwg.mxu0
        %v2253 = vsel %vm2157, %v2151, 0
        %v2256 = vsel %vm2157, %v2155, 0
        %2258 = vmatprep.subr.bf16.mxu0 0
        %2259 = vmatpush1.bf16.xpose.msra.mxu0 %v2256
        %2260 = vmatprep.subr.bf16.mxu0 0
        %2261 = vmatpush1.bf16.xpose.msra.mxu0 0
        %2262 = vmatprep.subr.bf16.mxu0 0
        %2263 = vmatpush1.bf16.xpose.msra.mxu0 0
        %2264 = vmatprep.subr.bf16.mxu0 0
        %2265 = vmatpush1.bf16.xpose.msra.mxu0 0
        %2266 = vmatprep.subr.bf16.mxu0 0
        %2267 = vmatpush1.bf16.xpose.msra.mxu0 0
        %2268 = vmatprep.subr.bf16.mxu0 0
        %2269 = vmatpush1.bf16.xpose.msra.mxu0 0
        %2270 = vmatprep.subr.bf16.mxu0 0
        %2271 = vmatpush1.bf16.xpose.msra.mxu0 0
        %2272 = vmatprep.subr.bf16.mxu0 0
        %2273 = vmatpush1.bf16.xpose.msra.mxu0 0
        %2274 = vmatprep.subr.bf16.mxu0 0
        %2275 = vmatpush1.bf16.xpose.msra.mxu0 0
        %2276 = vmatprep.subr.bf16.mxu0 0
        %2277 = vmatpush1.bf16.xpose.msra.mxu0 0
        %2278 = vmatprep.subr.bf16.mxu0 0
        %2279 = vmatpush1.bf16.xpose.msra.mxu0 0
        %2280 = vmatprep.subr.bf16.mxu0 0
        %2281 = vmatpush1.bf16.xpose.msra.mxu0 0
        %2282 = vmatprep.subr.bf16.mxu0 0
        %2283 = vmatpush1.bf16.xpose.msra.mxu0 0
        %2284 = vmatprep.subr.bf16.mxu0 0
        %2285 = vmatpush1.bf16.xpose.msra.mxu0 0
        %2286 = vmatprep.subr.bf16.mxu0 0
        %2287 = vmatpush1.bf16.xpose.msra.mxu0 0
        %2288 = vmatprep.subr.bf16.mxu0 0
        %2289 = vmatpush1.bf16.xpose.msra.mxu0 0
        %2290 = vmatprep.mubr.bf16.mxu0 0
        %2291 = vmatmul.mubr.bf16.gmra.mrb[0].mxu0 %v2253
        %v2292 = vpop.f32.mrb[0].mxu0
        %v2293 = vadd.f32 0.0, %v2292
        %v2294 = vpop.f32.mrb[0].mxu0
        %v2295 = vpop.f32.mrb[0].mxu0
        %v2296 = vadd.f32 0.0, %v2295
        %v2297 = vpop.f32.mrb[0].mxu0
        %2298 = vdwg.mxu0
        %v2300 = vsel %vm2157, %v2152, 0
        %v2303 = vsel %vm2157, %v2156, 0
        %2305 = vmatprep.subr.bf16.mxu0 0
        %2306 = vmatpush1.bf16.xpose.msra.mxu0 %v2303
        %2307 = vmatprep.subr.bf16.mxu0 0
        %2308 = vmatpush1.bf16.xpose.msra.mxu0 0
        %2309 = vmatprep.subr.bf16.mxu0 0
        %2310 = vmatpush1.bf16.xpose.msra.mxu0 0
        %2311 = vmatprep.subr.bf16.mxu0 0
        %2312 = vmatpush1.bf16.xpose.msra.mxu0 0
        %2313 = vmatprep.subr.bf16.mxu0 0
        %2314 = vmatpush1.bf16.xpose.msra.mxu0 0
        %2315 = vmatprep.subr.bf16.mxu0 0
        %2316 = vmatpush1.bf16.xpose.msra.mxu0 0
        %2317 = vmatprep.subr.bf16.mxu0 0
        %2318 = vmatpush1.bf16.xpose.msra.mxu0 0
        %2319 = vmatprep.subr.bf16.mxu0 0
        %2320 = vmatpush1.bf16.xpose.msra.mxu0 0
        %2321 = vmatprep.subr.bf16.mxu0 0
        %2322 = vmatpush1.bf16.xpose.msra.mxu0 0
        %2323 = vmatprep.subr.bf16.mxu0 0
        %2324 = vmatpush1.bf16.xpose.msra.mxu0 0
        %2325 = vmatprep.subr.bf16.mxu0 0
        %2326 = vmatpush1.bf16.xpose.msra.mxu0 0
        %2327 = vmatprep.subr.bf16.mxu0 0
        %2328 = vmatpush1.bf16.xpose.msra.mxu0 0
        %2329 = vmatprep.subr.bf16.mxu0 0
        %2330 = vmatpush1.bf16.xpose.msra.mxu0 0
        %2331 = vmatprep.subr.bf16.mxu0 0
        %2332 = vmatpush1.bf16.xpose.msra.mxu0 0
        %2333 = vmatprep.subr.bf16.mxu0 0
        %2334 = vmatpush1.bf16.xpose.msra.mxu0 0
        %2335 = vmatprep.subr.bf16.mxu0 0
        %2336 = vmatpush1.bf16.xpose.msra.mxu0 0
        %2337 = vmatprep.mubr.bf16.mxu0 0
        %2338 = vmatmul.mubr.bf16.gmra.mrb[0].mxu0 %v2300
        %v2339 = vpop.f32.mrb[0].mxu0
        %v2340 = vadd.f32 0.0, %v2339
        %v2341 = vpop.f32.mrb[0].mxu0
        %v2342 = vpop.f32.mrb[0].mxu0
        %v2343 = vadd.f32 0.0, %v2342
        %v2344 = vpop.f32.mrb[0].mxu0
        %2345 = vdwg.mxu0
        %v2346 = vmul.f32 %v2199, 0.17677669
        %v2347 = vmul.f32 %v2202, 0.17677669
        %v2348 = vmul.f32 %v2246, 0.17677669
        %v2349 = vmul.f32 %v2249, 0.17677669
        %v2350 = vmul.f32 %v2293, 0.17677669
        %v2351 = vmul.f32 %v2296, 0.17677669
        %v2352 = vmul.f32 %v2340, 0.17677669
        %v2353 = vmul.f32 %v2343, 0.17677669
        %v2354 = vlaneseq
        %v2355 = vshrl.u32 %v2354, 7
        %v2356 = vadd.s32 %v2355, 8
        %v2357 = vlaneseq
        %v2358 = vand.u32 %v2357, 127
        %vm2359 = vcmp.gt.s32.totalorder %v2358, %v2355
        %vm2360 = vcmp.gt.s32.totalorder %v2358, %v2356
        %v2361 = vsel %vm2359, 1, 0
        %v2362 = vsel %vm2360, 1, 0
        %vm2363 = vcmp.eq.s32.totalorder %v2361, 1
        %vm2364 = vcmp.eq.s32.totalorder %v2362, 1
        %v2365 = vsel %vm2363, -1e+09, %v2346
        %v2366 = vsel %vm2364, -1e+09, %v2347
        %v2367 = vsel %vm2363, -1e+09, %v2348
        %v2368 = vsel %vm2364, -1e+09, %v2349
        %v2369 = vsel %vm2363, -1e+09, %v2350
        %v2370 = vsel %vm2364, -1e+09, %v2351
        %v2371 = vsel %vm2363, -1e+09, %v2352
        %v2372 = vsel %vm2364, -1e+09, %v2353
        %vm2373 = vcmask 130048
        %v2374 = vsel %vm2373, %v2365, -inf
        %2375 = vmax.xlane.f32.xlu0 %v2374
        %v2376 = vpop.xlane.xlu0 %2375
        %v2377 = vsel %vm2373, %v2366, -inf
        %2378 = vmax.xlane.f32.xlu0 %v2377
        %v2379 = vpop.xlane.xlu0 %2378
        %v2380 = vsel %vm2373, %v2367, -inf
        %2381 = vmax.xlane.f32.xlu0 %v2380
        %v2382 = vpop.xlane.xlu0 %2381
        %v2383 = vsel %vm2373, %v2368, -inf
        %2384 = vmax.xlane.f32.xlu0 %v2383
        %v2385 = vpop.xlane.xlu0 %2384
        %v2386 = vsel %vm2373, %v2369, -inf
        %2387 = vmax.xlane.f32.xlu0 %v2386
        %v2388 = vpop.xlane.xlu0 %2387
        %v2389 = vsel %vm2373, %v2370, -inf
        %2390 = vmax.xlane.f32.xlu0 %v2389
        %v2391 = vpop.xlane.xlu0 %2390
        %v2392 = vsel %vm2373, %v2371, -inf
        %2393 = vmax.xlane.f32.xlu0 %v2392
        %v2394 = vpop.xlane.xlu0 %2393
        %v2395 = vsel %vm2373, %v2372, -inf
        %2396 = vmax.xlane.f32.xlu0 %v2395
        %v2397 = vpop.xlane.xlu0 %2396
        %v2398 = vsub.f32 %v2365, %v2376
        %v2399 = vsub.f32 %v2366, %v2379
        %v2400 = vsub.f32 %v2367, %v2382
        %v2401 = vsub.f32 %v2368, %v2385
        %v2402 = vsub.f32 %v2369, %v2388
        %v2403 = vsub.f32 %v2370, %v2391
        %v2404 = vsub.f32 %v2371, %v2394
        %v2405 = vsub.f32 %v2372, %v2397
        %v2406 = vmul.f32 %v2398, 1.442695
        %v2407 = vpow.pop %v2406
        %v2408 = vmul.f32 %v2399, 1.442695
        %v2409 = vpow.pop %v2408
        %v2410 = vmul.f32 %v2400, 1.442695
        %v2411 = vpow.pop %v2410
        %v2412 = vmul.f32 %v2401, 1.442695
        %v2413 = vpow.pop %v2412
        %v2414 = vmul.f32 %v2402, 1.442695
        %v2415 = vpow.pop %v2414
        %v2416 = vmul.f32 %v2403, 1.442695
        %v2417 = vpow.pop %v2416
        %v2418 = vmul.f32 %v2404, 1.442695
        %v2419 = vpow.pop %v2418
        %v2420 = vmul.f32 %v2405, 1.442695
        %v2421 = vpow.pop %v2420
        %v2422 = vsel %vm2373, %v2407, 0.0
        %2423 = vadd.xlane.f32.xlu0 %v2422
        %v2424 = vpop.xlane.xlu0 %2423
        %v2425 = vsel %vm2373, %v2409, 0.0
        %2426 = vadd.xlane.f32.xlu0 %v2425
        %v2427 = vpop.xlane.xlu0 %2426
        %v2428 = vsel %vm2373, %v2411, 0.0
        %2429 = vadd.xlane.f32.xlu0 %v2428
        %v2430 = vpop.xlane.xlu0 %2429
        %v2431 = vsel %vm2373, %v2413, 0.0
        %2432 = vadd.xlane.f32.xlu0 %v2431
        %v2433 = vpop.xlane.xlu0 %2432
        %v2434 = vsel %vm2373, %v2415, 0.0
        %2435 = vadd.xlane.f32.xlu0 %v2434
        %v2436 = vpop.xlane.xlu0 %2435
        %v2437 = vsel %vm2373, %v2417, 0.0
        %2438 = vadd.xlane.f32.xlu0 %v2437
        %v2439 = vpop.xlane.xlu0 %2438
        %v2440 = vsel %vm2373, %v2419, 0.0
        %2441 = vadd.xlane.f32.xlu0 %v2440
        %v2442 = vpop.xlane.xlu0 %2441
        %v2443 = vsel %vm2373, %v2421, 0.0
        %2444 = vadd.xlane.f32.xlu0 %v2443
        %v2445 = vpop.xlane.xlu0 %2444
        %v2446 = vrcp.pop %v2424
        %v2447 = vrcp.pop %v2427
        %v2448 = vrcp.pop %v2430
        %v2449 = vrcp.pop %v2433
        %v2450 = vrcp.pop %v2436
        %v2451 = vrcp.pop %v2439
        %v2452 = vrcp.pop %v2442
        %v2453 = vrcp.pop %v2445
        %v2454 = vmul.f32 %v2407, %v2446
        %v2455 = vmul.f32 %v2409, %v2447
        %v2456 = vmul.f32 %v2411, %v2448
        %v2457 = vmul.f32 %v2413, %v2449
        %v2458 = vmul.f32 %v2415, %v2450
        %v2459 = vmul.f32 %v2417, %v2451
        %v2460 = vmul.f32 %v2419, %v2452
        %v2461 = vmul.f32 %v2421, %v2453
        %v2462 = vpack.c.bf16 %v2455, %v2454
        %v2463 = vpack.c.bf16 %v2457, %v2456
        %v2464 = vpack.c.bf16 %v2459, %v2458
        %v2465 = vpack.c.bf16 %v2461, %v2460
        %v2466 = vpack.c.bf16 %v2145, %v2077
        %v2467 = vpack.c.bf16 %v2146, %v2078
        %v2468 = vpack.c.bf16 %v2147, %v2079
        %v2469 = vpack.c.bf16 %v2148, %v2080
        %v2471 = vsel %vm2373, %v2462, 0
        %2473 = vmatprep.subr.bf16.mxu0 0
        %2474 = vmatpush1.bf16.msra.mxu0 %v2466
        %2475 = vmatprep.subr.bf16.mxu0 0
        %2476 = vmatpush1.bf16.msra.mxu0 0
        %2477 = vmatprep.subr.bf16.mxu0 0
        %2478 = vmatpush1.bf16.msra.mxu0 0
        %2479 = vmatprep.subr.bf16.mxu0 0
        %2480 = vmatpush1.bf16.msra.mxu0 0
        %2481 = vmatprep.subr.bf16.mxu0 0
        %2482 = vmatpush1.bf16.msra.mxu0 0
        %2483 = vmatprep.subr.bf16.mxu0 0
        %2484 = vmatpush1.bf16.msra.mxu0 0
        %2485 = vmatprep.subr.bf16.mxu0 0
        %2486 = vmatpush1.bf16.msra.mxu0 0
        %2487 = vmatprep.subr.bf16.mxu0 0
        %2488 = vmatpush1.bf16.msra.mxu0 0
        %2489 = vmatprep.subr.bf16.mxu0 0
        %2490 = vmatpush1.bf16.msra.mxu0 0
        %2491 = vmatprep.subr.bf16.mxu0 0
        %2492 = vmatpush1.bf16.msra.mxu0 0
        %2493 = vmatprep.subr.bf16.mxu0 0
        %2494 = vmatpush1.bf16.msra.mxu0 0
        %2495 = vmatprep.subr.bf16.mxu0 0
        %2496 = vmatpush1.bf16.msra.mxu0 0
        %2497 = vmatprep.subr.bf16.mxu0 0
        %2498 = vmatpush1.bf16.msra.mxu0 0
        %2499 = vmatprep.subr.bf16.mxu0 0
        %2500 = vmatpush1.bf16.msra.mxu0 0
        %2501 = vmatprep.subr.bf16.mxu0 0
        %2502 = vmatpush1.bf16.msra.mxu0 0
        %2503 = vmatprep.subr.bf16.mxu0 0
        %2504 = vmatpush1.bf16.msra.mxu0 0
        %2505 = vmatprep.mubr.bf16.mxu0 0
        %2506 = vmatmul.mubr.bf16.gmra.mrb[0].mxu0 %v2471
        %v2507 = vpop.f32.mrb[0].mxu0
        %v2508 = vadd.f32 0.0, %v2507
        %v2509 = vpop.f32.mrb[0].mxu0
        %v2510 = vpop.f32.mrb[0].mxu0
        %v2511 = vadd.f32 0.0, %v2510
        %v2512 = vpop.f32.mrb[0].mxu0
        %2513 = vdwg.mxu0
        %v2515 = vsel %vm2373, %v2463, 0
        %2517 = vmatprep.subr.bf16.mxu0 0
        %2518 = vmatpush1.bf16.msra.mxu0 %v2467
        %2519 = vmatprep.subr.bf16.mxu0 0
        %2520 = vmatpush1.bf16.msra.mxu0 0
        %2521 = vmatprep.subr.bf16.mxu0 0
        %2522 = vmatpush1.bf16.msra.mxu0 0
        %2523 = vmatprep.subr.bf16.mxu0 0
        %2524 = vmatpush1.bf16.msra.mxu0 0
        %2525 = vmatprep.subr.bf16.mxu0 0
        %2526 = vmatpush1.bf16.msra.mxu0 0
        %2527 = vmatprep.subr.bf16.mxu0 0
        %2528 = vmatpush1.bf16.msra.mxu0 0
        %2529 = vmatprep.subr.bf16.mxu0 0
        %2530 = vmatpush1.bf16.msra.mxu0 0
        %2531 = vmatprep.subr.bf16.mxu0 0
        %2532 = vmatpush1.bf16.msra.mxu0 0
        %2533 = vmatprep.subr.bf16.mxu0 0
        %2534 = vmatpush1.bf16.msra.mxu0 0
        %2535 = vmatprep.subr.bf16.mxu0 0
        %2536 = vmatpush1.bf16.msra.mxu0 0
        %2537 = vmatprep.subr.bf16.mxu0 0
        %2538 = vmatpush1.bf16.msra.mxu0 0
        %2539 = vmatprep.subr.bf16.mxu0 0
        %2540 = vmatpush1.bf16.msra.mxu0 0
        %2541 = vmatprep.subr.bf16.mxu0 0
        %2542 = vmatpush1.bf16.msra.mxu0 0
        %2543 = vmatprep.subr.bf16.mxu0 0
        %2544 = vmatpush1.bf16.msra.mxu0 0
        %2545 = vmatprep.subr.bf16.mxu0 0
        %2546 = vmatpush1.bf16.msra.mxu0 0
        %2547 = vmatprep.subr.bf16.mxu0 0
        %2548 = vmatpush1.bf16.msra.mxu0 0
        %2549 = vmatprep.mubr.bf16.mxu0 0
        %2550 = vmatmul.mubr.bf16.gmra.mrb[0].mxu0 %v2515
        %v2551 = vpop.f32.mrb[0].mxu0
        %v2552 = vadd.f32 0.0, %v2551
        %v2553 = vpop.f32.mrb[0].mxu0
        %v2554 = vpop.f32.mrb[0].mxu0
        %v2555 = vadd.f32 0.0, %v2554
        %v2556 = vpop.f32.mrb[0].mxu0
        %2557 = vdwg.mxu0
        %v2559 = vsel %vm2373, %v2464, 0
        %2561 = vmatprep.subr.bf16.mxu0 0
        %2562 = vmatpush1.bf16.msra.mxu0 %v2468
        %2563 = vmatprep.subr.bf16.mxu0 0
        %2564 = vmatpush1.bf16.msra.mxu0 0
        %2565 = vmatprep.subr.bf16.mxu0 0
        %2566 = vmatpush1.bf16.msra.mxu0 0
        %2567 = vmatprep.subr.bf16.mxu0 0
        %2568 = vmatpush1.bf16.msra.mxu0 0
        %2569 = vmatprep.subr.bf16.mxu0 0
        %2570 = vmatpush1.bf16.msra.mxu0 0
        %2571 = vmatprep.subr.bf16.mxu0 0
        %2572 = vmatpush1.bf16.msra.mxu0 0
        %2573 = vmatprep.subr.bf16.mxu0 0
        %2574 = vmatpush1.bf16.msra.mxu0 0
        %2575 = vmatprep.subr.bf16.mxu0 0
        %2576 = vmatpush1.bf16.msra.mxu0 0
        %2577 = vmatprep.subr.bf16.mxu0 0
        %2578 = vmatpush1.bf16.msra.mxu0 0
        %2579 = vmatprep.subr.bf16.mxu0 0
        %2580 = vmatpush1.bf16.msra.mxu0 0
        %2581 = vmatprep.subr.bf16.mxu0 0
        %2582 = vmatpush1.bf16.msra.mxu0 0
        %2583 = vmatprep.subr.bf16.mxu0 0
        %2584 = vmatpush1.bf16.msra.mxu0 0
        %2585 = vmatprep.subr.bf16.mxu0 0
        %2586 = vmatpush1.bf16.msra.mxu0 0
        %2587 = vmatprep.subr.bf16.mxu0 0
        %2588 = vmatpush1.bf16.msra.mxu0 0
        %2589 = vmatprep.subr.bf16.mxu0 0
        %2590 = vmatpush1.bf16.msra.mxu0 0
        %2591 = vmatprep.subr.bf16.mxu0 0
        %2592 = vmatpush1.bf16.msra.mxu0 0
        %2593 = vmatprep.mubr.bf16.mxu0 0
        %2594 = vmatmul.mubr.bf16.gmra.mrb[0].mxu0 %v2559
        %v2595 = vpop.f32.mrb[0].mxu0
        %v2596 = vadd.f32 0.0, %v2595
        %v2597 = vpop.f32.mrb[0].mxu0
        %v2598 = vpop.f32.mrb[0].mxu0
        %v2599 = vadd.f32 0.0, %v2598
        %v2600 = vpop.f32.mrb[0].mxu0
        %2601 = vdwg.mxu0
        %v2603 = vsel %vm2373, %v2465, 0
        %2605 = vmatprep.subr.bf16.mxu0 0
        %2606 = vmatpush1.bf16.msra.mxu0 %v2469
        %2607 = vmatprep.subr.bf16.mxu0 0
        %2608 = vmatpush1.bf16.msra.mxu0 0
        %2609 = vmatprep.subr.bf16.mxu0 0
        %2610 = vmatpush1.bf16.msra.mxu0 0
        %2611 = vmatprep.subr.bf16.mxu0 0
        %2612 = vmatpush1.bf16.msra.mxu0 0
        %2613 = vmatprep.subr.bf16.mxu0 0
        %2614 = vmatpush1.bf16.msra.mxu0 0
        %2615 = vmatprep.subr.bf16.mxu0 0
        %2616 = vmatpush1.bf16.msra.mxu0 0
        %2617 = vmatprep.subr.bf16.mxu0 0
        %2618 = vmatpush1.bf16.msra.mxu0 0
        %2619 = vmatprep.subr.bf16.mxu0 0
        %2620 = vmatpush1.bf16.msra.mxu0 0
        %2621 = vmatprep.subr.bf16.mxu0 0
        %2622 = vmatpush1.bf16.msra.mxu0 0
        %2623 = vmatprep.subr.bf16.mxu0 0
        %2624 = vmatpush1.bf16.msra.mxu0 0
        %2625 = vmatprep.subr.bf16.mxu0 0
        %2626 = vmatpush1.bf16.msra.mxu0 0
        %2627 = vmatprep.subr.bf16.mxu0 0
        %2628 = vmatpush1.bf16.msra.mxu0 0
        %2629 = vmatprep.subr.bf16.mxu0 0
        %2630 = vmatpush1.bf16.msra.mxu0 0
        %2631 = vmatprep.subr.bf16.mxu0 0
        %2632 = vmatpush1.bf16.msra.mxu0 0
        %2633 = vmatprep.subr.bf16.mxu0 0
        %2634 = vmatpush1.bf16.msra.mxu0 0
        %2635 = vmatprep.subr.bf16.mxu0 0
        %2636 = vmatpush1.bf16.msra.mxu0 0
        %2637 = vmatprep.mubr.bf16.mxu0 0
        %2638 = vmatmul.mubr.bf16.gmra.mrb[0].mxu0 %v2603
        %v2639 = vpop.f32.mrb[0].mxu0
        %v2640 = vadd.f32 0.0, %v2639
        %v2641 = vpop.f32.mrb[0].mxu0
        %v2642 = vpop.f32.mrb[0].mxu0
        %v2643 = vadd.f32 0.0, %v2642
        %v2644 = vpop.f32.mrb[0].mxu0
        %2645 = vdwg.mxu0
        %v2646 = vcombine.low %v2508, %v2596
        %v2647 = vcombine.high %v2508, %v2596
        %v2649 = vunpack.c.l.s4 1983009808
        %v2650 = vunpack.c.0.s8 %v2649
        %v2651 = vlaneseq
        %v2652 = vshrl.u32 %v2651, 7
        %v2653 = vsub.s32 %v2650, %v2652
        %v2654 = vrot.slane %v2646, %v2653
        %v2656 = vunpack.c.l.s4 1983009808
        %v2657 = vunpack.c.0.s8 %v2656
        %v2658 = vlaneseq
        %v2659 = vshrl.u32 %v2658, 7
        %v2660 = vsub.s32 %v2657, %v2659
        %v2661 = vrot.slane %v2647, %v2660
        %v2662 = vcombine.low %v2552, %v2640
        %v2663 = vcombine.high %v2552, %v2640
        %v2665 = vunpack.c.l.s4 1983009808
        %v2666 = vunpack.c.0.s8 %v2665
        %v2667 = vlaneseq
        %v2668 = vshrl.u32 %v2667, 7
        %v2669 = vsub.s32 %v2666, %v2668
        %v2670 = vrot.slane %v2662, %v2669
        %v2672 = vunpack.c.l.s4 1983009808
        %v2673 = vunpack.c.0.s8 %v2672
        %v2674 = vlaneseq
        %v2675 = vshrl.u32 %v2674, 7
        %v2676 = vsub.s32 %v2673, %v2675
        %v2677 = vrot.slane %v2663, %v2676
        %v2678 = vcombine.low %v2654, %v2670
        %v2679 = vcombine.high %v2654, %v2670
        %v2681 = vunpack.c.l.s4 1934713408
        %v2682 = vunpack.c.0.s8 %v2681
        %v2683 = vlaneseq
        %v2684 = vshrl.u32 %v2683, 7
        %v2685 = vsub.s32 %v2682, %v2684
        %v2686 = vrot.slane %v2678, %v2685
        %v2688 = vunpack.c.l.s4 1934713408
        %v2689 = vunpack.c.0.s8 %v2688
        %v2690 = vlaneseq
        %v2691 = vshrl.u32 %v2690, 7
        %v2692 = vsub.s32 %v2689, %v2691
        %v2693 = vrot.slane %v2679, %v2692
        %v2694 = vcombine.low %v2661, %v2677
        %v2695 = vcombine.high %v2661, %v2677
        %v2697 = vunpack.c.l.s4 1934713408
        %v2698 = vunpack.c.0.s8 %v2697
        %v2699 = vlaneseq
        %v2700 = vshrl.u32 %v2699, 7
        %v2701 = vsub.s32 %v2698, %v2700
        %v2702 = vrot.slane %v2694, %v2701
        %v2704 = vunpack.c.l.s4 1934713408
        %v2705 = vunpack.c.0.s8 %v2704
        %v2706 = vlaneseq
        %v2707 = vshrl.u32 %v2706, 7
        %v2708 = vsub.s32 %v2705, %v2707
        %v2709 = vrot.slane %v2695, %v2708
        %v2710 = vcombine.high %v2686, 0.0
        %v2711 = vcombine.high %v2693, 0.0
        %v2712 = vcombine.high %v2702, 0.0
        %v2713 = vcombine.high %v2709, 0.0
        %v2714 = vcombine.low %v2511, %v2599
        %v2715 = vcombine.high %v2511, %v2599
        %v2717 = vunpack.c.l.s4 1983009808
        %v2718 = vunpack.c.0.s8 %v2717
        %v2719 = vlaneseq
        %v2720 = vshrl.u32 %v2719, 7
        %v2721 = vsub.s32 %v2718, %v2720
        %v2722 = vrot.slane %v2714, %v2721
        %v2724 = vunpack.c.l.s4 1983009808
        %v2725 = vunpack.c.0.s8 %v2724
        %v2726 = vlaneseq
        %v2727 = vshrl.u32 %v2726, 7
        %v2728 = vsub.s32 %v2725, %v2727
        %v2729 = vrot.slane %v2715, %v2728
        %v2730 = vcombine.low %v2555, %v2643
        %v2731 = vcombine.high %v2555, %v2643
        %v2733 = vunpack.c.l.s4 1983009808
        %v2734 = vunpack.c.0.s8 %v2733
        %v2735 = vlaneseq
        %v2736 = vshrl.u32 %v2735, 7
        %v2737 = vsub.s32 %v2734, %v2736
        %v2738 = vrot.slane %v2730, %v2737
        %v2740 = vunpack.c.l.s4 1983009808
        %v2741 = vunpack.c.0.s8 %v2740
        %v2742 = vlaneseq
        %v2743 = vshrl.u32 %v2742, 7
        %v2744 = vsub.s32 %v2741, %v2743
        %v2745 = vrot.slane %v2731, %v2744
        %v2746 = vcombine.low %v2722, %v2738
        %v2747 = vcombine.high %v2722, %v2738
        %v2749 = vunpack.c.l.s4 1934713408
        %v2750 = vunpack.c.0.s8 %v2749
        %v2751 = vlaneseq
        %v2752 = vshrl.u32 %v2751, 7
        %v2753 = vsub.s32 %v2750, %v2752
        %v2754 = vrot.slane %v2746, %v2753
        %v2756 = vunpack.c.l.s4 1934713408
        %v2757 = vunpack.c.0.s8 %v2756
        %v2758 = vlaneseq
        %v2759 = vshrl.u32 %v2758, 7
        %v2760 = vsub.s32 %v2757, %v2759
        %v2761 = vrot.slane %v2747, %v2760
        %v2762 = vcombine.low %v2729, %v2745
        %v2763 = vcombine.high %v2729, %v2745
        %v2765 = vunpack.c.l.s4 1934713408
        %v2766 = vunpack.c.0.s8 %v2765
        %v2767 = vlaneseq
        %v2768 = vshrl.u32 %v2767, 7
        %v2769 = vsub.s32 %v2766, %v2768
        %v2770 = vrot.slane %v2762, %v2769
        %v2772 = vunpack.c.l.s4 1934713408
        %v2773 = vunpack.c.0.s8 %v2772
        %v2774 = vlaneseq
        %v2775 = vshrl.u32 %v2774, 7
        %v2776 = vsub.s32 %v2773, %v2775
        %v2777 = vrot.slane %v2763, %v2776
        %v2778 = vcombine.high %v2754, 0.0
        %v2779 = vcombine.high %v2761, 0.0
        %v2780 = vcombine.high %v2770, 0.0
        %v2781 = vcombine.high %v2777, 0.0
        %v2782 = vcombine.low %v2686, %v2693
        %v2784 = vunpack.c.l.s4 1983009808
        %v2785 = vunpack.c.0.s8 %v2784
        %v2786 = vlaneseq
        %v2787 = vshrl.u32 %v2786, 7
        %v2788 = vsub.s32 %v2785, %v2787
        %v2789 = vrot.slane %v2782, %v2788
        %v2790 = vcombine.low %v2710, %v2711
        %v2792 = vunpack.c.l.s4 1983009808
        %v2793 = vunpack.c.0.s8 %v2792
        %v2794 = vlaneseq
        %v2795 = vshrl.u32 %v2794, 7
        %v2796 = vsub.s32 %v2793, %v2795
        %v2797 = vrot.slane %v2790, %v2796
        %v2798 = vcombine.low %v2702, %v2709
        %v2800 = vunpack.c.l.s4 1983009808
        %v2801 = vunpack.c.0.s8 %v2800
        %v2802 = vlaneseq
        %v2803 = vshrl.u32 %v2802, 7
        %v2804 = vsub.s32 %v2801, %v2803
        %v2805 = vrot.slane %v2798, %v2804
        %v2806 = vcombine.low %v2712, %v2713
        %v2808 = vunpack.c.l.s4 1983009808
        %v2809 = vunpack.c.0.s8 %v2808
        %v2810 = vlaneseq
        %v2811 = vshrl.u32 %v2810, 7
        %v2812 = vsub.s32 %v2809, %v2811
        %v2813 = vrot.slane %v2806, %v2812
        %v2814 = vcombine.low %v2789, %v2797
        %v2815 = vcombine.high %v2789, %v2797
        %v2817 = vunpack.c.l.s4 1934713408
        %v2818 = vunpack.c.0.s8 %v2817
        %v2819 = vlaneseq
        %v2820 = vshrl.u32 %v2819, 7
        %v2821 = vsub.s32 %v2818, %v2820
        %v2822 = vrot.slane %v2814, %v2821
        %v2824 = vunpack.c.l.s4 1934713408
        %v2825 = vunpack.c.0.s8 %v2824
        %v2826 = vlaneseq
        %v2827 = vshrl.u32 %v2826, 7
        %v2828 = vsub.s32 %v2825, %v2827
        %v2829 = vrot.slane %v2815, %v2828
        %v2830 = vcombine.low %v2805, %v2813
        %v2831 = vcombine.high %v2805, %v2813
        %v2833 = vunpack.c.l.s4 1934713408
        %v2834 = vunpack.c.0.s8 %v2833
        %v2835 = vlaneseq
        %v2836 = vshrl.u32 %v2835, 7
        %v2837 = vsub.s32 %v2834, %v2836
        %v2838 = vrot.slane %v2830, %v2837
        %v2840 = vunpack.c.l.s4 1934713408
        %v2841 = vunpack.c.0.s8 %v2840
        %v2842 = vlaneseq
        %v2843 = vshrl.u32 %v2842, 7
        %v2844 = vsub.s32 %v2841, %v2843
        %v2845 = vrot.slane %v2831, %v2844
        %v2846 = vcombine.low %v2822, %v2838
        %v2847 = vcombine.high %v2822, %v2838
        %v2848 = vcombine.low %v2829, %v2845
        %v2849 = vcombine.high %v2829, %v2845
        %v2850 = vcombine.low %v2754, %v2761
        %v2852 = vunpack.c.l.s4 1983009808
        %v2853 = vunpack.c.0.s8 %v2852
        %v2854 = vlaneseq
        %v2855 = vshrl.u32 %v2854, 7
        %v2856 = vsub.s32 %v2853, %v2855
        %v2857 = vrot.slane %v2850, %v2856
        %v2858 = vcombine.low %v2778, %v2779
        %v2860 = vunpack.c.l.s4 1983009808
        %v2861 = vunpack.c.0.s8 %v2860
        %v2862 = vlaneseq
        %v2863 = vshrl.u32 %v2862, 7
        %v2864 = vsub.s32 %v2861, %v2863
        %v2865 = vrot.slane %v2858, %v2864
        %v2866 = vcombine.low %v2770, %v2777
        %v2868 = vunpack.c.l.s4 1983009808
        %v2869 = vunpack.c.0.s8 %v2868
        %v2870 = vlaneseq
        %v2871 = vshrl.u32 %v2870, 7
        %v2872 = vsub.s32 %v2869, %v2871
        %v2873 = vrot.slane %v2866, %v2872
        %v2874 = vcombine.low %v2780, %v2781
        %v2876 = vunpack.c.l.s4 1983009808
        %v2877 = vunpack.c.0.s8 %v2876
        %v2878 = vlaneseq
        %v2879 = vshrl.u32 %v2878, 7
        %v2880 = vsub.s32 %v2877, %v2879
        %v2881 = vrot.slane %v2874, %v2880
        %v2882 = vcombine.low %v2857, %v2865
        %v2883 = vcombine.high %v2857, %v2865
        %v2885 = vunpack.c.l.s4 1934713408
        %v2886 = vunpack.c.0.s8 %v2885
        %v2887 = vlaneseq
        %v2888 = vshrl.u32 %v2887, 7
        %v2889 = vsub.s32 %v2886, %v2888
        %v2890 = vrot.slane %v2882, %v2889
        %v2892 = vunpack.c.l.s4 1934713408
        %v2893 = vunpack.c.0.s8 %v2892
        %v2894 = vlaneseq
        %v2895 = vshrl.u32 %v2894, 7
        %v2896 = vsub.s32 %v2893, %v2895
        %v2897 = vrot.slane %v2883, %v2896
        %v2898 = vcombine.low %v2873, %v2881
        %v2899 = vcombine.high %v2873, %v2881
        %v2901 = vunpack.c.l.s4 1934713408
        %v2902 = vunpack.c.0.s8 %v2901
        %v2903 = vlaneseq
        %v2904 = vshrl.u32 %v2903, 7
        %v2905 = vsub.s32 %v2902, %v2904
        %v2906 = vrot.slane %v2898, %v2905
        %v2908 = vunpack.c.l.s4 1934713408
        %v2909 = vunpack.c.0.s8 %v2908
        %v2910 = vlaneseq
        %v2911 = vshrl.u32 %v2910, 7
        %v2912 = vsub.s32 %v2909, %v2911
        %v2913 = vrot.slane %v2899, %v2912
        %v2914 = vcombine.low %v2890, %v2906
        %v2915 = vcombine.high %v2890, %v2906
        %v2916 = vcombine.low %v2897, %v2913
        %v2917 = vcombine.high %v2897, %v2913
        %2920 = vrot.lane.b32.xlu0 %v2847, 32
        %v2921 = vpop.permute.xlu0 %2920
        %2922 = vrot.lane.b32.xlu0 %v2915, 32
        %v2923 = vpop.permute.xlu0 %2922
        %2928 = vrot.lane.b32.xlu0 %v2848, 64
        %v2929 = vpop.permute.xlu0 %2928
        %2930 = vrot.lane.b32.xlu0 %v2916, 64
        %v2931 = vpop.permute.xlu0 %2930
        %2936 = vrot.lane.b32.xlu0 %v2849, 96
        %v2937 = vpop.permute.xlu0 %2936
        %2938 = vrot.lane.b32.xlu0 %v2917, 96
        %v2939 = vpop.permute.xlu0 %2938
        %v2942 = vsel %vm2157, %v2846, %v2921
        %v2943 = vsel %vm2157, %v2914, %v2923
        %vm2944 = vcmask 523264
        %v2945 = vsel %vm2944, %v2942, %v2929
        %v2946 = vsel %vm2944, %v2943, %v2931
        %vm2947 = vcmask 785408
        %v2948 = vsel %vm2947, %v2945, %v2937
        %v2949 = vsel %vm2947, %v2946, %v2939
        %v2950 = vpack.c.bf16 %v2949, %v2948
        %v2951 = vld [vmem:[#allocation10] sm:$0xf]
        %v2952 = vld [vmem:[#allocation10 + $0x4] sm:$0xf]
        %v2953 = vld [vmem:[#allocation10 + $0x8] sm:$0xf]
        %v2954 = vld [vmem:[#allocation10 + $0xc] sm:$0xf]
        %v2955 = vld [vmem:[#allocation10 + $0x10] sm:$0xf]
        %v2956 = vld [vmem:[#allocation10 + $0x14] sm:$0xf]
        %v2957 = vld [vmem:[#allocation10 + $0x18] sm:$0xf]
        %v2958 = vld [vmem:[#allocation10 + $0x1c] sm:$0xf]
        %v2959 = vld [vmem:[#allocation10 + $0x20] sm:$0xf]
        %v2960 = vld [vmem:[#allocation10 + $0x24] sm:$0xf]
        %v2961 = vld [vmem:[#allocation10 + $0x28] sm:$0xf]
        %v2962 = vld [vmem:[#allocation10 + $0x2c] sm:$0xf]
        %v2963 = vld [vmem:[#allocation10 + $0x30] sm:$0xf]
        %v2964 = vld [vmem:[#allocation10 + $0x34] sm:$0xf]
        %v2965 = vld [vmem:[#allocation10 + $0x38] sm:$0xf]
        %v2966 = vld [vmem:[#allocation10 + $0x3c] sm:$0xf]
        %v2967 = vld [vmem:[#allocation11] sm:$0x1]
        %v2969 = vlaneseq
        %v2970 = vshrl.u32 %v2969, 7
        %v2971 = vsub.s32 0, %v2970
        %v2972 = vrot.slane %v2967, %v2971
        %v2990 = vunpack.c.l.b16 %v2951
        %v2991 = vunpack.c.l.b16 %v2952
        %v2992 = vunpack.c.l.b16 %v2953
        %v2993 = vunpack.c.l.b16 %v2954
        %v2994 = vunpack.c.l.b16 %v2955
        %v2995 = vunpack.c.l.b16 %v2956
        %v2996 = vunpack.c.l.b16 %v2957
        %v2997 = vunpack.c.l.b16 %v2958
        %v2998 = vunpack.c.l.b16 %v2959
        %v2999 = vunpack.c.l.b16 %v2960
        %v3000 = vunpack.c.l.b16 %v2961
        %v3001 = vunpack.c.l.b16 %v2962
        %v3002 = vunpack.c.l.b16 %v2963
        %v3003 = vunpack.c.l.b16 %v2964
        %v3004 = vunpack.c.l.b16 %v2965
        %v3005 = vunpack.c.l.b16 %v2966
        %v3006 = vpack.c.b16 %v2991, %v2990
        %v3007 = vpack.c.b16 %v2993, %v2992
        %v3008 = vpack.c.b16 %v2995, %v2994
        %v3009 = vpack.c.b16 %v2997, %v2996
        %v3010 = vpack.c.b16 %v2999, %v2998
        %v3011 = vpack.c.b16 %v3001, %v3000
        %v3012 = vpack.c.b16 %v3003, %v3002
        %v3013 = vpack.c.b16 %v3005, %v3004
        %3022 = vmatprep.subr.bf16.mxu0 0
        %3023 = vmatpush1.bf16.msra.mxu0 %v3006
        %3024 = vmatprep.subr.bf16.mxu0 0
        %3025 = vmatpush1.bf16.msra.mxu0 %v3007
        %3026 = vmatprep.subr.bf16.mxu0 0
        %3027 = vmatpush1.bf16.msra.mxu0 %v3008
        %3028 = vmatprep.subr.bf16.mxu0 0
        %3029 = vmatpush1.bf16.msra.mxu0 %v3009
        %3030 = vmatprep.subr.bf16.mxu0 0
        %3031 = vmatpush1.bf16.msra.mxu0 %v3010
        %3032 = vmatprep.subr.bf16.mxu0 0
        %3033 = vmatpush1.bf16.msra.mxu0 %v3011
        %3034 = vmatprep.subr.bf16.mxu0 0
        %3035 = vmatpush1.bf16.msra.mxu0 %v3012
        %3036 = vmatprep.subr.bf16.mxu0 0
        %3037 = vmatpush1.bf16.msra.mxu0 %v3013
        %3038 = vmatprep.subr.bf16.mxu0 0
        %3039 = vmatpush1.bf16.msra.mxu0 0
        %3040 = vmatprep.subr.bf16.mxu0 0
        %3041 = vmatpush1.bf16.msra.mxu0 0
        %3042 = vmatprep.subr.bf16.mxu0 0
        %3043 = vmatpush1.bf16.msra.mxu0 0
        %3044 = vmatprep.subr.bf16.mxu0 0
        %3045 = vmatpush1.bf16.msra.mxu0 0
        %3046 = vmatprep.subr.bf16.mxu0 0
        %3047 = vmatpush1.bf16.msra.mxu0 0
        %3048 = vmatprep.subr.bf16.mxu0 0
        %3049 = vmatpush1.bf16.msra.mxu0 0
        %3050 = vmatprep.subr.bf16.mxu0 0
        %3051 = vmatpush1.bf16.msra.mxu0 0
        %3052 = vmatprep.subr.bf16.mxu0 0
        %3053 = vmatpush1.bf16.msra.mxu0 0
        %3054 = vmatprep.mubr.bf16.mxu0 0
        %3055 = vmatmul.mubr.bf16.gmra.mrb[0].mxu0 %v2950
        %v3056 = vpop.f32.mrb[0].mxu0
        %v3057 = vadd.f32 %v2972, %v3056
        %v3058 = vpop.f32.mrb[0].mxu0
        %v3059 = vpop.f32.mrb[0].mxu0
        %v3060 = vadd.f32 %v2972, %v3059
        %v3061 = vpop.f32.mrb[0].mxu0
        %3062 = vdwg.mxu0
        %v3063 = vadd.f32 %v1007, %v3057
        %v3064 = vadd.f32 %v1008, %v3060
        %v3065 = vld [vmem:[#allocation28] sm:$0x1]
        %v3066 = vld [vmem:[#allocation29] sm:$0x1]
        %3067 = vadd.xlane.f32.xlu0 %v3063
        %v3068 = vpop.xlane.xlu0 %3067
        %3069 = vadd.xlane.f32.xlu0 %v3064
        %v3070 = vpop.xlane.xlu0 %3069
        %v3071 = vrcp.pop 128.0
        %v3072 = vmul.f32 %v3068, %v3071
        %v3073 = vmul.f32 %v3070, %v3071
        %v3074 = vsub.f32 %v3063, %v3072
        %v3075 = vsub.f32 %v3064, %v3073
        %v3076 = vmul.f32 %v3074, %v3074
        %v3077 = vmul.f32 %v3075, %v3075
        %3078 = vadd.xlane.f32.xlu0 %v3076
        %v3079 = vpop.xlane.xlu0 %3078
        %3080 = vadd.xlane.f32.xlu0 %v3077
        %v3081 = vpop.xlane.xlu0 %3080
        %v3082 = vmul.f32 %v3079, %v3071
        %v3083 = vmul.f32 %v3081, %v3071
        %v3084 = vadd.f32 %v3082, 1e-05
        %v3085 = vadd.f32 %v3083, 1e-05
        %v3086 = vrsqrt.pop %v3084
        %v3087 = vrsqrt.pop %v3085
        %v3088 = vmul.f32 %v3074, %v3086
        %v3089 = vmul.f32 %v3075, %v3087
        %v3091 = vlaneseq
        %v3092 = vshrl.u32 %v3091, 7
        %v3093 = vsub.s32 0, %v3092
        %v3094 = vrot.slane %v3065, %v3093
        %v3096 = vmul.f32 %v3088, %v3094
        %v3097 = vmul.f32 %v3089, %v3094
        %v3099 = vlaneseq
        %v3100 = vshrl.u32 %v3099, 7
        %v3101 = vsub.s32 0, %v3100
        %v3102 = vrot.slane %v3066, %v3101
        %v3104 = vadd.f32 %v3096, %v3102
        %v3105 = vadd.f32 %v3097, %v3102
        %v3106 = vpack.c.bf16 %v3105, %v3104
        %v3107 = vld [vmem:[#allocation13] sm:$0xf]
        %v3108 = vld [vmem:[#allocation13 + $0x4] sm:$0xf]
        %v3109 = vld [vmem:[#allocation13 + $0x8] sm:$0xf]
        %v3110 = vld [vmem:[#allocation13 + $0xc] sm:$0xf]
        %v3111 = vld [vmem:[#allocation13 + $0x10] sm:$0xf]
        %v3112 = vld [vmem:[#allocation13 + $0x14] sm:$0xf]
        %v3113 = vld [vmem:[#allocation13 + $0x18] sm:$0xf]
        %v3114 = vld [vmem:[#allocation13 + $0x1c] sm:$0xf]
        %v3115 = vld [vmem:[#allocation13 + $0x20] sm:$0xf]
        %v3116 = vld [vmem:[#allocation13 + $0x24] sm:$0xf]
        %v3117 = vld [vmem:[#allocation13 + $0x28] sm:$0xf]
        %v3118 = vld [vmem:[#allocation13 + $0x2c] sm:$0xf]
        %v3119 = vld [vmem:[#allocation13 + $0x30] sm:$0xf]
        %v3120 = vld [vmem:[#allocation13 + $0x34] sm:$0xf]
        %v3121 = vld [vmem:[#allocation13 + $0x38] sm:$0xf]
        %v3122 = vld [vmem:[#allocation13 + $0x3c] sm:$0xf]
        %v3123 = vld [vmem:[#allocation14] sm:$0x1]
        %v3125 = vlaneseq
        %v3126 = vshrl.u32 %v3125, 7
        %v3127 = vsub.s32 0, %v3126
        %v3128 = vrot.slane %v3123, %v3127
        %v3146 = vunpack.c.l.b16 %v3107
        %v3147 = vunpack.c.l.b16 %v3108
        %v3148 = vunpack.c.l.b16 %v3109
        %v3149 = vunpack.c.l.b16 %v3110
        %v3150 = vunpack.c.l.b16 %v3111
        %v3151 = vunpack.c.l.b16 %v3112
        %v3152 = vunpack.c.l.b16 %v3113
        %v3153 = vunpack.c.l.b16 %v3114
        %v3154 = vunpack.c.l.b16 %v3115
        %v3155 = vunpack.c.l.b16 %v3116
        %v3156 = vunpack.c.l.b16 %v3117
        %v3157 = vunpack.c.l.b16 %v3118
        %v3158 = vunpack.c.l.b16 %v3119
        %v3159 = vunpack.c.l.b16 %v3120
        %v3160 = vunpack.c.l.b16 %v3121
        %v3161 = vunpack.c.l.b16 %v3122
        %v3162 = vpack.c.b16 %v3147, %v3146
        %v3163 = vpack.c.b16 %v3149, %v3148
        %v3164 = vpack.c.b16 %v3151, %v3150
        %v3165 = vpack.c.b16 %v3153, %v3152
        %v3166 = vpack.c.b16 %v3155, %v3154
        %v3167 = vpack.c.b16 %v3157, %v3156
        %v3168 = vpack.c.b16 %v3159, %v3158
        %v3169 = vpack.c.b16 %v3161, %v3160
        %3178 = vmatprep.subr.bf16.mxu0 0
        %3179 = vmatpush1.bf16.msra.mxu0 %v3162
        %3180 = vmatprep.subr.bf16.mxu0 0
        %3181 = vmatpush1.bf16.msra.mxu0 %v3163
        %3182 = vmatprep.subr.bf16.mxu0 0
        %3183 = vmatpush1.bf16.msra.mxu0 %v3164
        %3184 = vmatprep.subr.bf16.mxu0 0
        %3185 = vmatpush1.bf16.msra.mxu0 %v3165
        %3186 = vmatprep.subr.bf16.mxu0 0
        %3187 = vmatpush1.bf16.msra.mxu0 %v3166
        %3188 = vmatprep.subr.bf16.mxu0 0
        %3189 = vmatpush1.bf16.msra.mxu0 %v3167
        %3190 = vmatprep.subr.bf16.mxu0 0
        %3191 = vmatpush1.bf16.msra.mxu0 %v3168
        %3192 = vmatprep.subr.bf16.mxu0 0
        %3193 = vmatpush1.bf16.msra.mxu0 %v3169
        %3194 = vmatprep.subr.bf16.mxu0 0
        %3195 = vmatpush1.bf16.msra.mxu0 0
        %3196 = vmatprep.subr.bf16.mxu0 0
        %3197 = vmatpush1.bf16.msra.mxu0 0
        %3198 = vmatprep.subr.bf16.mxu0 0
        %3199 = vmatpush1.bf16.msra.mxu0 0
        %3200 = vmatprep.subr.bf16.mxu0 0
        %3201 = vmatpush1.bf16.msra.mxu0 0
        %3202 = vmatprep.subr.bf16.mxu0 0
        %3203 = vmatpush1.bf16.msra.mxu0 0
        %3204 = vmatprep.subr.bf16.mxu0 0
        %3205 = vmatpush1.bf16.msra.mxu0 0
        %3206 = vmatprep.subr.bf16.mxu0 0
        %3207 = vmatpush1.bf16.msra.mxu0 0
        %3208 = vmatprep.subr.bf16.mxu0 0
        %3209 = vmatpush1.bf16.msra.mxu0 0
        %3210 = vmatprep.mubr.bf16.mxu0 0
        %3211 = vmatmul.mubr.bf16.gmra.mrb[0].mxu0 %v3106
        %v3212 = vpop.f32.mrb[0].mxu0
        %v3213 = vadd.f32 %v3128, %v3212
        %v3214 = vpop.f32.mrb[0].mxu0
        %v3215 = vpop.f32.mrb[0].mxu0
        %v3216 = vadd.f32 %v3128, %v3215
        %v3217 = vpop.f32.mrb[0].mxu0
        %3218 = vdwg.mxu0
        %v3219 = vpack.c.bf16 %v1010, %v1009
        %v3220 = vld [vmem:[#allocation16] sm:$0xff]
        %v3221 = vld [vmem:[#allocation16 + $0x8] sm:$0xff]
        %v3222 = vld [vmem:[#allocation16 + $0x10] sm:$0xff]
        %v3223 = vld [vmem:[#allocation16 + $0x18] sm:$0xff]
        %v3224 = vld [vmem:[#allocation16 + $0x20] sm:$0xff]
        %v3225 = vld [vmem:[#allocation16 + $0x28] sm:$0xff]
        %v3226 = vld [vmem:[#allocation16 + $0x30] sm:$0xff]
        %v3227 = vld [vmem:[#allocation16 + $0x38] sm:$0xff]
        %v3228 = vld [vmem:[#allocation16 + $0x40] sm:$0xff]
        %v3229 = vld [vmem:[#allocation16 + $0x48] sm:$0xff]
        %v3230 = vld [vmem:[#allocation16 + $0x50] sm:$0xff]
        %v3231 = vld [vmem:[#allocation16 + $0x58] sm:$0xff]
        %v3232 = vld [vmem:[#allocation16 + $0x60] sm:$0xff]
        %v3233 = vld [vmem:[#allocation16 + $0x68] sm:$0xff]
        %v3234 = vld [vmem:[#allocation16 + $0x70] sm:$0xff]
        %v3235 = vld [vmem:[#allocation16 + $0x78] sm:$0xff]
        %v3236 = vld [vmem:[#allocation17] sm:$0x3]
        %v3238 = vlaneseq
        %v3239 = vshrl.u32 %v3238, 7
        %v3240 = vsub.s32 0, %v3239
        %v3241 = vrot.slane %v3236, %v3240
        %v3242 = vlaneseq
        %v3243 = vshrl.u32 %v3242, 7
        %v3244 = vsub.s32 1, %v3243
        %v3245 = vrot.slane %v3236, %v3244
        %v3264 = vunpack.c.l.b16 %v3220
        %v3265 = vunpack.c.h.b16 %v3220
        %v3266 = vunpack.c.l.b16 %v3221
        %v3267 = vunpack.c.h.b16 %v3221
        %v3268 = vunpack.c.l.b16 %v3222
        %v3269 = vunpack.c.h.b16 %v3222
        %v3270 = vunpack.c.l.b16 %v3223
        %v3271 = vunpack.c.h.b16 %v3223
        %v3272 = vunpack.c.l.b16 %v3224
        %v3273 = vunpack.c.h.b16 %v3224
        %v3274 = vunpack.c.l.b16 %v3225
        %v3275 = vunpack.c.h.b16 %v3225
        %v3276 = vunpack.c.l.b16 %v3226
        %v3277 = vunpack.c.h.b16 %v3226
        %v3278 = vunpack.c.l.b16 %v3227
        %v3279 = vunpack.c.h.b16 %v3227
        %v3280 = vunpack.c.l.b16 %v3228
        %v3281 = vunpack.c.h.b16 %v3228
        %v3282 = vunpack.c.l.b16 %v3229
        %v3283 = vunpack.c.h.b16 %v3229
        %v3284 = vunpack.c.l.b16 %v3230
        %v3285 = vunpack.c.h.b16 %v3230
        %v3286 = vunpack.c.l.b16 %v3231
        %v3287 = vunpack.c.h.b16 %v3231
        %v3288 = vunpack.c.l.b16 %v3232
        %v3289 = vunpack.c.h.b16 %v3232
        %v3290 = vunpack.c.l.b16 %v3233
        %v3291 = vunpack.c.h.b16 %v3233
        %v3292 = vunpack.c.l.b16 %v3234
        %v3293 = vunpack.c.h.b16 %v3234
        %v3294 = vunpack.c.l.b16 %v3235
        %v3295 = vunpack.c.h.b16 %v3235
        %v3296 = vpack.c.b16 %v3266, %v3264
        %v3297 = vpack.c.b16 %v3267, %v3265
        %v3298 = vpack.c.b16 %v3270, %v3268
        %v3299 = vpack.c.b16 %v3271, %v3269
        %v3300 = vpack.c.b16 %v3274, %v3272
        %v3301 = vpack.c.b16 %v3275, %v3273
        %v3302 = vpack.c.b16 %v3278, %v3276
        %v3303 = vpack.c.b16 %v3279, %v3277
        %v3304 = vpack.c.b16 %v3282, %v3280
        %v3305 = vpack.c.b16 %v3283, %v3281
        %v3306 = vpack.c.b16 %v3286, %v3284
        %v3307 = vpack.c.b16 %v3287, %v3285
        %v3308 = vpack.c.b16 %v3290, %v3288
        %v3309 = vpack.c.b16 %v3291, %v3289
        %v3310 = vpack.c.b16 %v3294, %v3292
        %v3311 = vpack.c.b16 %v3295, %v3293
        %3328 = vmatprep.subr.bf16.mxu0 %v3297
        %3329 = vmatpush1.bf16.msra.mxu0 %v3296
        %3330 = vmatprep.subr.bf16.mxu0 %v3299
        %3331 = vmatpush1.bf16.msra.mxu0 %v3298
        %3332 = vmatprep.subr.bf16.mxu0 %v3301
        %3333 = vmatpush1.bf16.msra.mxu0 %v3300
        %3334 = vmatprep.subr.bf16.mxu0 %v3303
        %3335 = vmatpush1.bf16.msra.mxu0 %v3302
        %3336 = vmatprep.subr.bf16.mxu0 %v3305
        %3337 = vmatpush1.bf16.msra.mxu0 %v3304
        %3338 = vmatprep.subr.bf16.mxu0 %v3307
        %3339 = vmatpush1.bf16.msra.mxu0 %v3306
        %3340 = vmatprep.subr.bf16.mxu0 %v3309
        %3341 = vmatpush1.bf16.msra.mxu0 %v3308
        %3342 = vmatprep.subr.bf16.mxu0 %v3311
        %3343 = vmatpush1.bf16.msra.mxu0 %v3310
        %3344 = vmatprep.subr.bf16.mxu0 0
        %3345 = vmatpush1.bf16.msra.mxu0 0
        %3346 = vmatprep.subr.bf16.mxu0 0
        %3347 = vmatpush1.bf16.msra.mxu0 0
        %3348 = vmatprep.subr.bf16.mxu0 0
        %3349 = vmatpush1.bf16.msra.mxu0 0
        %3350 = vmatprep.subr.bf16.mxu0 0
        %3351 = vmatpush1.bf16.msra.mxu0 0
        %3352 = vmatprep.subr.bf16.mxu0 0
        %3353 = vmatpush1.bf16.msra.mxu0 0
        %3354 = vmatprep.subr.bf16.mxu0 0
        %3355 = vmatpush1.bf16.msra.mxu0 0
        %3356 = vmatprep.subr.bf16.mxu0 0
        %3357 = vmatpush1.bf16.msra.mxu0 0
        %3358 = vmatprep.subr.bf16.mxu0 0
        %3359 = vmatpush1.bf16.msra.mxu0 0
        %3360 = vmatprep.mubr.bf16.mxu0 0
        %3361 = vmatmul.mubr.bf16.gmra.mrb[0].mxu0 %v3219
        %v3362 = vpop.f32.mrb[0].mxu0
        %v3363 = vadd.f32 %v3241, %v3362
        %v3364 = vpop.f32.mrb[0].mxu0
        %v3365 = vadd.f32 %v3245, %v3364
        %v3366 = vpop.f32.mrb[0].mxu0
        %v3367 = vadd.f32 %v3241, %v3366
        %v3368 = vpop.f32.mrb[0].mxu0
        %v3369 = vadd.f32 %v3245, %v3368
        %3370 = vdwg.mxu0
        %3373 = vrot.lane.b32.xlu0 %v3213, 96
        %v3374 = vpop.permute.xlu0 %3373
        %3375 = vrot.lane.b32.xlu0 %v3216, 96
        %v3376 = vpop.permute.xlu0 %3375
        %3379 = vrot.lane.b32.xlu0 %v3213, 64
        %v3380 = vpop.permute.xlu0 %3379
        %3381 = vrot.lane.b32.xlu0 %v3216, 64
        %v3382 = vpop.permute.xlu0 %3381
        %3385 = vrot.lane.b32.xlu0 %v3213, 32
        %v3386 = vpop.permute.xlu0 %3385
        %3387 = vrot.lane.b32.xlu0 %v3216, 32
        %v3388 = vpop.permute.xlu0 %3387
        %v3391 = vcombine.low %v3213, %v3380
        %v3392 = vcombine.high %v3213, %v3380
        %v3394 = vunpack.c.l.s4 1983009808
        %v3395 = vunpack.c.0.s8 %v3394
        %v3396 = vlaneseq
        %v3397 = vshrl.u32 %v3396, 7
        %v3398 = vsub.s32 %v3395, %v3397
        %v3399 = vrot.slane %v3391, %v3398
        %v3401 = vunpack.c.l.s4 1983009808
        %v3402 = vunpack.c.0.s8 %v3401
        %v3403 = vlaneseq
        %v3404 = vshrl.u32 %v3403, 7
        %v3405 = vsub.s32 %v3402, %v3404
        %v3406 = vrot.slane %v3392, %v3405
        %v3407 = vcombine.low %v3374, %v3386
        %v3408 = vcombine.high %v3374, %v3386
        %v3410 = vunpack.c.l.s4 1983009808
        %v3411 = vunpack.c.0.s8 %v3410
        %v3412 = vlaneseq
        %v3413 = vshrl.u32 %v3412, 7
        %v3414 = vsub.s32 %v3411, %v3413
        %v3415 = vrot.slane %v3407, %v3414
        %v3417 = vunpack.c.l.s4 1983009808
        %v3418 = vunpack.c.0.s8 %v3417
        %v3419 = vlaneseq
        %v3420 = vshrl.u32 %v3419, 7
        %v3421 = vsub.s32 %v3418, %v3420
        %v3422 = vrot.slane %v3408, %v3421
        %v3423 = vcombine.low %v3399, %v3415
        %v3424 = vcombine.high %v3399, %v3415
        %v3426 = vunpack.c.l.s4 1934713408
        %v3427 = vunpack.c.0.s8 %v3426
        %v3428 = vlaneseq
        %v3429 = vshrl.u32 %v3428, 7
        %v3430 = vsub.s32 %v3427, %v3429
        %v3431 = vrot.slane %v3423, %v3430
        %v3433 = vunpack.c.l.s4 1934713408
        %v3434 = vunpack.c.0.s8 %v3433
        %v3435 = vlaneseq
        %v3436 = vshrl.u32 %v3435, 7
        %v3437 = vsub.s32 %v3434, %v3436
        %v3438 = vrot.slane %v3424, %v3437
        %v3439 = vcombine.low %v3406, %v3422
        %v3440 = vcombine.high %v3406, %v3422
        %v3442 = vunpack.c.l.s4 1934713408
        %v3443 = vunpack.c.0.s8 %v3442
        %v3444 = vlaneseq
        %v3445 = vshrl.u32 %v3444, 7
        %v3446 = vsub.s32 %v3443, %v3445
        %v3447 = vrot.slane %v3439, %v3446
        %v3449 = vunpack.c.l.s4 1934713408
        %v3450 = vunpack.c.0.s8 %v3449
        %v3451 = vlaneseq
        %v3452 = vshrl.u32 %v3451, 7
        %v3453 = vsub.s32 %v3450, %v3452
        %v3454 = vrot.slane %v3440, %v3453
        %v3455 = vcombine.high %v3431, 0.0
        %v3456 = vcombine.high %v3438, 0.0
        %v3457 = vcombine.high %v3447, 0.0
        %v3458 = vcombine.high %v3454, 0.0
        %v3459 = vcombine.low %v3216, %v3382
        %v3460 = vcombine.high %v3216, %v3382
        %v3462 = vunpack.c.l.s4 1983009808
        %v3463 = vunpack.c.0.s8 %v3462
        %v3464 = vlaneseq
        %v3465 = vshrl.u32 %v3464, 7
        %v3466 = vsub.s32 %v3463, %v3465
        %v3467 = vrot.slane %v3459, %v3466
        %v3469 = vunpack.c.l.s4 1983009808
        %v3470 = vunpack.c.0.s8 %v3469
        %v3471 = vlaneseq
        %v3472 = vshrl.u32 %v3471, 7
        %v3473 = vsub.s32 %v3470, %v3472
        %v3474 = vrot.slane %v3460, %v3473
        %v3475 = vcombine.low %v3376, %v3388
        %v3476 = vcombine.high %v3376, %v3388
        %v3478 = vunpack.c.l.s4 1983009808
        %v3479 = vunpack.c.0.s8 %v3478
        %v3480 = vlaneseq
        %v3481 = vshrl.u32 %v3480, 7
        %v3482 = vsub.s32 %v3479, %v3481
        %v3483 = vrot.slane %v3475, %v3482
        %v3485 = vunpack.c.l.s4 1983009808
        %v3486 = vunpack.c.0.s8 %v3485
        %v3487 = vlaneseq
        %v3488 = vshrl.u32 %v3487, 7
        %v3489 = vsub.s32 %v3486, %v3488
        %v3490 = vrot.slane %v3476, %v3489
        %v3491 = vcombine.low %v3467, %v3483
        %v3492 = vcombine.high %v3467, %v3483
        %v3494 = vunpack.c.l.s4 1934713408
        %v3495 = vunpack.c.0.s8 %v3494
        %v3496 = vlaneseq
        %v3497 = vshrl.u32 %v3496, 7
        %v3498 = vsub.s32 %v3495, %v3497
        %v3499 = vrot.slane %v3491, %v3498
        %v3501 = vunpack.c.l.s4 1934713408
        %v3502 = vunpack.c.0.s8 %v3501
        %v3503 = vlaneseq
        %v3504 = vshrl.u32 %v3503, 7
        %v3505 = vsub.s32 %v3502, %v3504
        %v3506 = vrot.slane %v3492, %v3505
        %v3507 = vcombine.low %v3474, %v3490
        %v3508 = vcombine.high %v3474, %v3490
        %v3510 = vunpack.c.l.s4 1934713408
        %v3511 = vunpack.c.0.s8 %v3510
        %v3512 = vlaneseq
        %v3513 = vshrl.u32 %v3512, 7
        %v3514 = vsub.s32 %v3511, %v3513
        %v3515 = vrot.slane %v3507, %v3514
        %v3517 = vunpack.c.l.s4 1934713408
        %v3518 = vunpack.c.0.s8 %v3517
        %v3519 = vlaneseq
        %v3520 = vshrl.u32 %v3519, 7
        %v3521 = vsub.s32 %v3518, %v3520
        %v3522 = vrot.slane %v3508, %v3521
        %v3523 = vcombine.high %v3499, 0.0
        %v3524 = vcombine.high %v3506, 0.0
        %v3525 = vcombine.high %v3515, 0.0
        %v3526 = vcombine.high %v3522, 0.0
        %v3527 = vcombine.low %v3431, %v3438
        %v3529 = vunpack.c.l.s4 1983009808
        %v3530 = vunpack.c.0.s8 %v3529
        %v3531 = vlaneseq
        %v3532 = vshrl.u32 %v3531, 7
        %v3533 = vsub.s32 %v3530, %v3532
        %v3534 = vrot.slane %v3527, %v3533
        %v3535 = vcombine.low %v3455, %v3456
        %v3537 = vunpack.c.l.s4 1983009808
        %v3538 = vunpack.c.0.s8 %v3537
        %v3539 = vlaneseq
        %v3540 = vshrl.u32 %v3539, 7
        %v3541 = vsub.s32 %v3538, %v3540
        %v3542 = vrot.slane %v3535, %v3541
        %v3543 = vcombine.low %v3447, %v3454
        %v3545 = vunpack.c.l.s4 1983009808
        %v3546 = vunpack.c.0.s8 %v3545
        %v3547 = vlaneseq
        %v3548 = vshrl.u32 %v3547, 7
        %v3549 = vsub.s32 %v3546, %v3548
        %v3550 = vrot.slane %v3543, %v3549
        %v3551 = vcombine.low %v3457, %v3458
        %v3553 = vunpack.c.l.s4 1983009808
        %v3554 = vunpack.c.0.s8 %v3553
        %v3555 = vlaneseq
        %v3556 = vshrl.u32 %v3555, 7
        %v3557 = vsub.s32 %v3554, %v3556
        %v3558 = vrot.slane %v3551, %v3557
        %v3559 = vcombine.low %v3534, %v3542
        %v3560 = vcombine.high %v3534, %v3542
        %v3562 = vunpack.c.l.s4 1934713408
        %v3563 = vunpack.c.0.s8 %v3562
        %v3564 = vlaneseq
        %v3565 = vshrl.u32 %v3564, 7
        %v3566 = vsub.s32 %v3563, %v3565
        %v3567 = vrot.slane %v3559, %v3566
        %v3569 = vunpack.c.l.s4 1934713408
        %v3570 = vunpack.c.0.s8 %v3569
        %v3571 = vlaneseq
        %v3572 = vshrl.u32 %v3571, 7
        %v3573 = vsub.s32 %v3570, %v3572
        %v3574 = vrot.slane %v3560, %v3573
        %v3575 = vcombine.low %v3550, %v3558
        %v3576 = vcombine.high %v3550, %v3558
        %v3578 = vunpack.c.l.s4 1934713408
        %v3579 = vunpack.c.0.s8 %v3578
        %v3580 = vlaneseq
        %v3581 = vshrl.u32 %v3580, 7
        %v3582 = vsub.s32 %v3579, %v3581
        %v3583 = vrot.slane %v3575, %v3582
        %v3585 = vunpack.c.l.s4 1934713408
        %v3586 = vunpack.c.0.s8 %v3585
        %v3587 = vlaneseq
        %v3588 = vshrl.u32 %v3587, 7
        %v3589 = vsub.s32 %v3586, %v3588
        %v3590 = vrot.slane %v3576, %v3589
        %v3591 = vcombine.low %v3567, %v3583
        %v3592 = vcombine.high %v3567, %v3583
        %v3593 = vcombine.low %v3574, %v3590
        %v3594 = vcombine.high %v3574, %v3590
        %v3595 = vcombine.low %v3499, %v3506
        %v3597 = vunpack.c.l.s4 1983009808
        %v3598 = vunpack.c.0.s8 %v3597
        %v3599 = vlaneseq
        %v3600 = vshrl.u32 %v3599, 7
        %v3601 = vsub.s32 %v3598, %v3600
        %v3602 = vrot.slane %v3595, %v3601
        %v3603 = vcombine.low %v3523, %v3524
        %v3605 = vunpack.c.l.s4 1983009808
        %v3606 = vunpack.c.0.s8 %v3605
        %v3607 = vlaneseq
        %v3608 = vshrl.u32 %v3607, 7
        %v3609 = vsub.s32 %v3606, %v3608
        %v3610 = vrot.slane %v3603, %v3609
        %v3611 = vcombine.low %v3515, %v3522
        %v3613 = vunpack.c.l.s4 1983009808
        %v3614 = vunpack.c.0.s8 %v3613
        %v3615 = vlaneseq
        %v3616 = vshrl.u32 %v3615, 7
        %v3617 = vsub.s32 %v3614, %v3616
        %v3618 = vrot.slane %v3611, %v3617
        %v3619 = vcombine.low %v3525, %v3526
        %v3621 = vunpack.c.l.s4 1983009808
        %v3622 = vunpack.c.0.s8 %v3621
        %v3623 = vlaneseq
        %v3624 = vshrl.u32 %v3623, 7
        %v3625 = vsub.s32 %v3622, %v3624
        %v3626 = vrot.slane %v3619, %v3625
        %v3627 = vcombine.low %v3602, %v3610
        %v3628 = vcombine.high %v3602, %v3610
        %v3630 = vunpack.c.l.s4 1934713408
        %v3631 = vunpack.c.0.s8 %v3630
        %v3632 = vlaneseq
        %v3633 = vshrl.u32 %v3632, 7
        %v3634 = vsub.s32 %v3631, %v3633
        %v3635 = vrot.slane %v3627, %v3634
        %v3637 = vunpack.c.l.s4 1934713408
        %v3638 = vunpack.c.0.s8 %v3637
        %v3639 = vlaneseq
        %v3640 = vshrl.u32 %v3639, 7
        %v3641 = vsub.s32 %v3638, %v3640
        %v3642 = vrot.slane %v3628, %v3641
        %v3643 = vcombine.low %v3618, %v3626
        %v3644 = vcombine.high %v3618, %v3626
        %v3646 = vunpack.c.l.s4 1934713408
        %v3647 = vunpack.c.0.s8 %v3646
        %v3648 = vlaneseq
        %v3649 = vshrl.u32 %v3648, 7
        %v3650 = vsub.s32 %v3647, %v3649
        %v3651 = vrot.slane %v3643, %v3650
        %v3653 = vunpack.c.l.s4 1934713408
        %v3654 = vunpack.c.0.s8 %v3653
        %v3655 = vlaneseq
        %v3656 = vshrl.u32 %v3655, 7
        %v3657 = vsub.s32 %v3654, %v3656
        %v3658 = vrot.slane %v3644, %v3657
        %v3659 = vcombine.low %v3635, %v3651
        %v3660 = vcombine.high %v3635, %v3651
        %v3661 = vcombine.low %v3642, %v3658
        %v3662 = vcombine.high %v3642, %v3658
        %3665 = vrot.lane.b32.xlu0 %v3363, 96
        %v3666 = vpop.permute.xlu0 %3665
        %3667 = vrot.lane.b32.xlu0 %v3367, 96
        %v3668 = vpop.permute.xlu0 %3667
        %3671 = vrot.lane.b32.xlu0 %v3363, 64
        %v3672 = vpop.permute.xlu0 %3671
        %3673 = vrot.lane.b32.xlu0 %v3367, 64
        %v3674 = vpop.permute.xlu0 %3673
        %3677 = vrot.lane.b32.xlu0 %v3363, 32
        %v3678 = vpop.permute.xlu0 %3677
        %3679 = vrot.lane.b32.xlu0 %v3367, 32
        %v3680 = vpop.permute.xlu0 %3679
        %v3683 = vcombine.low %v3363, %v3672
        %v3684 = vcombine.high %v3363, %v3672
        %v3686 = vunpack.c.l.s4 1983009808
        %v3687 = vunpack.c.0.s8 %v3686
        %v3688 = vlaneseq
        %v3689 = vshrl.u32 %v3688, 7
        %v3690 = vsub.s32 %v3687, %v3689
        %v3691 = vrot.slane %v3683, %v3690
        %v3693 = vunpack.c.l.s4 1983009808
        %v3694 = vunpack.c.0.s8 %v3693
        %v3695 = vlaneseq
        %v3696 = vshrl.u32 %v3695, 7
        %v3697 = vsub.s32 %v3694, %v3696
        %v3698 = vrot.slane %v3684, %v3697
        %v3699 = vcombine.low %v3666, %v3678
        %v3700 = vcombine.high %v3666, %v3678
        %v3702 = vunpack.c.l.s4 1983009808
        %v3703 = vunpack.c.0.s8 %v3702
        %v3704 = vlaneseq
        %v3705 = vshrl.u32 %v3704, 7
        %v3706 = vsub.s32 %v3703, %v3705
        %v3707 = vrot.slane %v3699, %v3706
        %v3709 = vunpack.c.l.s4 1983009808
        %v3710 = vunpack.c.0.s8 %v3709
        %v3711 = vlaneseq
        %v3712 = vshrl.u32 %v3711, 7
        %v3713 = vsub.s32 %v3710, %v3712
        %v3714 = vrot.slane %v3700, %v3713
        %v3715 = vcombine.low %v3691, %v3707
        %v3716 = vcombine.high %v3691, %v3707
        %v3718 = vunpack.c.l.s4 1934713408
        %v3719 = vunpack.c.0.s8 %v3718
        %v3720 = vlaneseq
        %v3721 = vshrl.u32 %v3720, 7
        %v3722 = vsub.s32 %v3719, %v3721
        %v3723 = vrot.slane %v3715, %v3722
        %v3725 = vunpack.c.l.s4 1934713408
        %v3726 = vunpack.c.0.s8 %v3725
        %v3727 = vlaneseq
        %v3728 = vshrl.u32 %v3727, 7
        %v3729 = vsub.s32 %v3726, %v3728
        %v3730 = vrot.slane %v3716, %v3729
        %v3731 = vcombine.low %v3698, %v3714
        %v3732 = vcombine.high %v3698, %v3714
        %v3734 = vunpack.c.l.s4 1934713408
        %v3735 = vunpack.c.0.s8 %v3734
        %v3736 = vlaneseq
        %v3737 = vshrl.u32 %v3736, 7
        %v3738 = vsub.s32 %v3735, %v3737
        %v3739 = vrot.slane %v3731, %v3738
        %v3741 = vunpack.c.l.s4 1934713408
        %v3742 = vunpack.c.0.s8 %v3741
        %v3743 = vlaneseq
        %v3744 = vshrl.u32 %v3743, 7
        %v3745 = vsub.s32 %v3742, %v3744
        %v3746 = vrot.slane %v3732, %v3745
        %v3747 = vcombine.high %v3723, 0.0
        %v3748 = vcombine.high %v3730, 0.0
        %v3749 = vcombine.high %v3739, 0.0
        %v3750 = vcombine.high %v3746, 0.0
        %v3751 = vcombine.low %v3367, %v3674
        %v3752 = vcombine.high %v3367, %v3674
        %v3754 = vunpack.c.l.s4 1983009808
        %v3755 = vunpack.c.0.s8 %v3754
        %v3756 = vlaneseq
        %v3757 = vshrl.u32 %v3756, 7
        %v3758 = vsub.s32 %v3755, %v3757
        %v3759 = vrot.slane %v3751, %v3758
        %v3761 = vunpack.c.l.s4 1983009808
        %v3762 = vunpack.c.0.s8 %v3761
        %v3763 = vlaneseq
        %v3764 = vshrl.u32 %v3763, 7
        %v3765 = vsub.s32 %v3762, %v3764
        %v3766 = vrot.slane %v3752, %v3765
        %v3767 = vcombine.low %v3668, %v3680
        %v3768 = vcombine.high %v3668, %v3680
        %v3770 = vunpack.c.l.s4 1983009808
        %v3771 = vunpack.c.0.s8 %v3770
        %v3772 = vlaneseq
        %v3773 = vshrl.u32 %v3772, 7
        %v3774 = vsub.s32 %v3771, %v3773
        %v3775 = vrot.slane %v3767, %v3774
        %v3777 = vunpack.c.l.s4 1983009808
        %v3778 = vunpack.c.0.s8 %v3777
        %v3779 = vlaneseq
        %v3780 = vshrl.u32 %v3779, 7
        %v3781 = vsub.s32 %v3778, %v3780
        %v3782 = vrot.slane %v3768, %v3781
        %v3783 = vcombine.low %v3759, %v3775
        %v3784 = vcombine.high %v3759, %v3775
        %v3786 = vunpack.c.l.s4 1934713408
        %v3787 = vunpack.c.0.s8 %v3786
        %v3788 = vlaneseq
        %v3789 = vshrl.u32 %v3788, 7
        %v3790 = vsub.s32 %v3787, %v3789
        %v3791 = vrot.slane %v3783, %v3790
        %v3793 = vunpack.c.l.s4 1934713408
        %v3794 = vunpack.c.0.s8 %v3793
        %v3795 = vlaneseq
        %v3796 = vshrl.u32 %v3795, 7
        %v3797 = vsub.s32 %v3794, %v3796
        %v3798 = vrot.slane %v3784, %v3797
        %v3799 = vcombine.low %v3766, %v3782
        %v3800 = vcombine.high %v3766, %v3782
        %v3802 = vunpack.c.l.s4 1934713408
        %v3803 = vunpack.c.0.s8 %v3802
        %v3804 = vlaneseq
        %v3805 = vshrl.u32 %v3804, 7
        %v3806 = vsub.s32 %v3803, %v3805
        %v3807 = vrot.slane %v3799, %v3806
        %v3809 = vunpack.c.l.s4 1934713408
        %v3810 = vunpack.c.0.s8 %v3809
        %v3811 = vlaneseq
        %v3812 = vshrl.u32 %v3811, 7
        %v3813 = vsub.s32 %v3810, %v3812
        %v3814 = vrot.slane %v3800, %v3813
        %v3815 = vcombine.high %v3791, 0.0
        %v3816 = vcombine.high %v3798, 0.0
        %v3817 = vcombine.high %v3807, 0.0
        %v3818 = vcombine.high %v3814, 0.0
        %v3819 = vcombine.low %v3723, %v3730
        %v3821 = vunpack.c.l.s4 1983009808
        %v3822 = vunpack.c.0.s8 %v3821
        %v3823 = vlaneseq
        %v3824 = vshrl.u32 %v3823, 7
        %v3825 = vsub.s32 %v3822, %v3824
        %v3826 = vrot.slane %v3819, %v3825
        %v3827 = vcombine.low %v3747, %v3748
        %v3829 = vunpack.c.l.s4 1983009808
        %v3830 = vunpack.c.0.s8 %v3829
        %v3831 = vlaneseq
        %v3832 = vshrl.u32 %v3831, 7
        %v3833 = vsub.s32 %v3830, %v3832
        %v3834 = vrot.slane %v3827, %v3833
        %v3835 = vcombine.low %v3739, %v3746
        %v3837 = vunpack.c.l.s4 1983009808
        %v3838 = vunpack.c.0.s8 %v3837
        %v3839 = vlaneseq
        %v3840 = vshrl.u32 %v3839, 7
        %v3841 = vsub.s32 %v3838, %v3840
        %v3842 = vrot.slane %v3835, %v3841
        %v3843 = vcombine.low %v3749, %v3750
        %v3845 = vunpack.c.l.s4 1983009808
        %v3846 = vunpack.c.0.s8 %v3845
        %v3847 = vlaneseq
        %v3848 = vshrl.u32 %v3847, 7
        %v3849 = vsub.s32 %v3846, %v3848
        %v3850 = vrot.slane %v3843, %v3849
        %v3851 = vcombine.low %v3826, %v3834
        %v3852 = vcombine.high %v3826, %v3834
        %v3854 = vunpack.c.l.s4 1934713408
        %v3855 = vunpack.c.0.s8 %v3854
        %v3856 = vlaneseq
        %v3857 = vshrl.u32 %v3856, 7
        %v3858 = vsub.s32 %v3855, %v3857
        %v3859 = vrot.slane %v3851, %v3858
        %v3861 = vunpack.c.l.s4 1934713408
        %v3862 = vunpack.c.0.s8 %v3861
        %v3863 = vlaneseq
        %v3864 = vshrl.u32 %v3863, 7
        %v3865 = vsub.s32 %v3862, %v3864
        %v3866 = vrot.slane %v3852, %v3865
        %v3867 = vcombine.low %v3842, %v3850
        %v3868 = vcombine.high %v3842, %v3850
        %v3870 = vunpack.c.l.s4 1934713408
        %v3871 = vunpack.c.0.s8 %v3870
        %v3872 = vlaneseq
        %v3873 = vshrl.u32 %v3872, 7
        %v3874 = vsub.s32 %v3871, %v3873
        %v3875 = vrot.slane %v3867, %v3874
        %v3877 = vunpack.c.l.s4 1934713408
        %v3878 = vunpack.c.0.s8 %v3877
        %v3879 = vlaneseq
        %v3880 = vshrl.u32 %v3879, 7
        %v3881 = vsub.s32 %v3878, %v3880
        %v3882 = vrot.slane %v3868, %v3881
        %v3883 = vcombine.low %v3859, %v3875
        %v3884 = vcombine.high %v3859, %v3875
        %v3885 = vcombine.low %v3866, %v3882
        %v3886 = vcombine.high %v3866, %v3882
        %v3887 = vcombine.low %v3791, %v3798
        %v3889 = vunpack.c.l.s4 1983009808
        %v3890 = vunpack.c.0.s8 %v3889
        %v3891 = vlaneseq
        %v3892 = vshrl.u32 %v3891, 7
        %v3893 = vsub.s32 %v3890, %v3892
        %v3894 = vrot.slane %v3887, %v3893
        %v3895 = vcombine.low %v3815, %v3816
        %v3897 = vunpack.c.l.s4 1983009808
        %v3898 = vunpack.c.0.s8 %v3897
        %v3899 = vlaneseq
        %v3900 = vshrl.u32 %v3899, 7
        %v3901 = vsub.s32 %v3898, %v3900
        %v3902 = vrot.slane %v3895, %v3901
        %v3903 = vcombine.low %v3807, %v3814
        %v3905 = vunpack.c.l.s4 1983009808
        %v3906 = vunpack.c.0.s8 %v3905
        %v3907 = vlaneseq
        %v3908 = vshrl.u32 %v3907, 7
        %v3909 = vsub.s32 %v3906, %v3908
        %v3910 = vrot.slane %v3903, %v3909
        %v3911 = vcombine.low %v3817, %v3818
        %v3913 = vunpack.c.l.s4 1983009808
        %v3914 = vunpack.c.0.s8 %v3913
        %v3915 = vlaneseq
        %v3916 = vshrl.u32 %v3915, 7
        %v3917 = vsub.s32 %v3914, %v3916
        %v3918 = vrot.slane %v3911, %v3917
        %v3919 = vcombine.low %v3894, %v3902
        %v3920 = vcombine.high %v3894, %v3902
        %v3922 = vunpack.c.l.s4 1934713408
        %v3923 = vunpack.c.0.s8 %v3922
        %v3924 = vlaneseq
        %v3925 = vshrl.u32 %v3924, 7
        %v3926 = vsub.s32 %v3923, %v3925
        %v3927 = vrot.slane %v3919, %v3926
        %v3929 = vunpack.c.l.s4 1934713408
        %v3930 = vunpack.c.0.s8 %v3929
        %v3931 = vlaneseq
        %v3932 = vshrl.u32 %v3931, 7
        %v3933 = vsub.s32 %v3930, %v3932
        %v3934 = vrot.slane %v3920, %v3933
        %v3935 = vcombine.low %v3910, %v3918
        %v3936 = vcombine.high %v3910, %v3918
        %v3938 = vunpack.c.l.s4 1934713408
        %v3939 = vunpack.c.0.s8 %v3938
        %v3940 = vlaneseq
        %v3941 = vshrl.u32 %v3940, 7
        %v3942 = vsub.s32 %v3939, %v3941
        %v3943 = vrot.slane %v3935, %v3942
        %v3945 = vunpack.c.l.s4 1934713408
        %v3946 = vunpack.c.0.s8 %v3945
        %v3947 = vlaneseq
        %v3948 = vshrl.u32 %v3947, 7
        %v3949 = vsub.s32 %v3946, %v3948
        %v3950 = vrot.slane %v3936, %v3949
        %v3951 = vcombine.low %v3927, %v3943
        %v3952 = vcombine.high %v3927, %v3943
        %v3953 = vcombine.low %v3934, %v3950
        %v3954 = vcombine.high %v3934, %v3950
        %3957 = vrot.lane.b32.xlu0 %v3365, 96
        %v3958 = vpop.permute.xlu0 %3957
        %3959 = vrot.lane.b32.xlu0 %v3369, 96
        %v3960 = vpop.permute.xlu0 %3959
        %3963 = vrot.lane.b32.xlu0 %v3365, 64
        %v3964 = vpop.permute.xlu0 %3963
        %3965 = vrot.lane.b32.xlu0 %v3369, 64
        %v3966 = vpop.permute.xlu0 %3965
        %3969 = vrot.lane.b32.xlu0 %v3365, 32
        %v3970 = vpop.permute.xlu0 %3969
        %3971 = vrot.lane.b32.xlu0 %v3369, 32
        %v3972 = vpop.permute.xlu0 %3971
        %v3975 = vcombine.low %v3365, %v3964
        %v3976 = vcombine.high %v3365, %v3964
        %v3978 = vunpack.c.l.s4 1983009808
        %v3979 = vunpack.c.0.s8 %v3978
        %v3980 = vlaneseq
        %v3981 = vshrl.u32 %v3980, 7
        %v3982 = vsub.s32 %v3979, %v3981
        %v3983 = vrot.slane %v3975, %v3982
        %v3985 = vunpack.c.l.s4 1983009808
        %v3986 = vunpack.c.0.s8 %v3985
        %v3987 = vlaneseq
        %v3988 = vshrl.u32 %v3987, 7
        %v3989 = vsub.s32 %v3986, %v3988
        %v3990 = vrot.slane %v3976, %v3989
        %v3991 = vcombine.low %v3958, %v3970
        %v3992 = vcombine.high %v3958, %v3970
        %v3994 = vunpack.c.l.s4 1983009808
        %v3995 = vunpack.c.0.s8 %v3994
        %v3996 = vlaneseq
        %v3997 = vshrl.u32 %v3996, 7
        %v3998 = vsub.s32 %v3995, %v3997
        %v3999 = vrot.slane %v3991, %v3998
        %v4001 = vunpack.c.l.s4 1983009808
        %v4002 = vunpack.c.0.s8 %v4001
        %v4003 = vlaneseq
        %v4004 = vshrl.u32 %v4003, 7
        %v4005 = vsub.s32 %v4002, %v4004
        %v4006 = vrot.slane %v3992, %v4005
        %v4007 = vcombine.low %v3983, %v3999
        %v4008 = vcombine.high %v3983, %v3999
        %v4010 = vunpack.c.l.s4 1934713408
        %v4011 = vunpack.c.0.s8 %v4010
        %v4012 = vlaneseq
        %v4013 = vshrl.u32 %v4012, 7
        %v4014 = vsub.s32 %v4011, %v4013
        %v4015 = vrot.slane %v4007, %v4014
        %v4017 = vunpack.c.l.s4 1934713408
        %v4018 = vunpack.c.0.s8 %v4017
        %v4019 = vlaneseq
        %v4020 = vshrl.u32 %v4019, 7
        %v4021 = vsub.s32 %v4018, %v4020
        %v4022 = vrot.slane %v4008, %v4021
        %v4023 = vcombine.low %v3990, %v4006
        %v4024 = vcombine.high %v3990, %v4006
        %v4026 = vunpack.c.l.s4 1934713408
        %v4027 = vunpack.c.0.s8 %v4026
        %v4028 = vlaneseq
        %v4029 = vshrl.u32 %v4028, 7
        %v4030 = vsub.s32 %v4027, %v4029
        %v4031 = vrot.slane %v4023, %v4030
        %v4033 = vunpack.c.l.s4 1934713408
        %v4034 = vunpack.c.0.s8 %v4033
        %v4035 = vlaneseq
        %v4036 = vshrl.u32 %v4035, 7
        %v4037 = vsub.s32 %v4034, %v4036
        %v4038 = vrot.slane %v4024, %v4037
        %v4039 = vcombine.high %v4015, 0.0
        %v4040 = vcombine.high %v4022, 0.0
        %v4041 = vcombine.high %v4031, 0.0
        %v4042 = vcombine.high %v4038, 0.0
        %v4043 = vcombine.low %v3369, %v3966
        %v4044 = vcombine.high %v3369, %v3966
        %v4046 = vunpack.c.l.s4 1983009808
        %v4047 = vunpack.c.0.s8 %v4046
        %v4048 = vlaneseq
        %v4049 = vshrl.u32 %v4048, 7
        %v4050 = vsub.s32 %v4047, %v4049
        %v4051 = vrot.slane %v4043, %v4050
        %v4053 = vunpack.c.l.s4 1983009808
        %v4054 = vunpack.c.0.s8 %v4053
        %v4055 = vlaneseq
        %v4056 = vshrl.u32 %v4055, 7
        %v4057 = vsub.s32 %v4054, %v4056
        %v4058 = vrot.slane %v4044, %v4057
        %v4059 = vcombine.low %v3960, %v3972
        %v4060 = vcombine.high %v3960, %v3972
        %v4062 = vunpack.c.l.s4 1983009808
        %v4063 = vunpack.c.0.s8 %v4062
        %v4064 = vlaneseq
        %v4065 = vshrl.u32 %v4064, 7
        %v4066 = vsub.s32 %v4063, %v4065
        %v4067 = vrot.slane %v4059, %v4066
        %v4069 = vunpack.c.l.s4 1983009808
        %v4070 = vunpack.c.0.s8 %v4069
        %v4071 = vlaneseq
        %v4072 = vshrl.u32 %v4071, 7
        %v4073 = vsub.s32 %v4070, %v4072
        %v4074 = vrot.slane %v4060, %v4073
        %v4075 = vcombine.low %v4051, %v4067
        %v4076 = vcombine.high %v4051, %v4067
        %v4078 = vunpack.c.l.s4 1934713408
        %v4079 = vunpack.c.0.s8 %v4078
        %v4080 = vlaneseq
        %v4081 = vshrl.u32 %v4080, 7
        %v4082 = vsub.s32 %v4079, %v4081
        %v4083 = vrot.slane %v4075, %v4082
        %v4085 = vunpack.c.l.s4 1934713408
        %v4086 = vunpack.c.0.s8 %v4085
        %v4087 = vlaneseq
        %v4088 = vshrl.u32 %v4087, 7
        %v4089 = vsub.s32 %v4086, %v4088
        %v4090 = vrot.slane %v4076, %v4089
        %v4091 = vcombine.low %v4058, %v4074
        %v4092 = vcombine.high %v4058, %v4074
        %v4094 = vunpack.c.l.s4 1934713408
        %v4095 = vunpack.c.0.s8 %v4094
        %v4096 = vlaneseq
        %v4097 = vshrl.u32 %v4096, 7
        %v4098 = vsub.s32 %v4095, %v4097
        %v4099 = vrot.slane %v4091, %v4098
        %v4101 = vunpack.c.l.s4 1934713408
        %v4102 = vunpack.c.0.s8 %v4101
        %v4103 = vlaneseq
        %v4104 = vshrl.u32 %v4103, 7
        %v4105 = vsub.s32 %v4102, %v4104
        %v4106 = vrot.slane %v4092, %v4105
        %v4107 = vcombine.high %v4083, 0.0
        %v4108 = vcombine.high %v4090, 0.0
        %v4109 = vcombine.high %v4099, 0.0
        %v4110 = vcombine.high %v4106, 0.0
        %v4111 = vcombine.low %v4015, %v4022
        %v4113 = vunpack.c.l.s4 1983009808
        %v4114 = vunpack.c.0.s8 %v4113
        %v4115 = vlaneseq
        %v4116 = vshrl.u32 %v4115, 7
        %v4117 = vsub.s32 %v4114, %v4116
        %v4118 = vrot.slane %v4111, %v4117
        %v4119 = vcombine.low %v4039, %v4040
        %v4121 = vunpack.c.l.s4 1983009808
        %v4122 = vunpack.c.0.s8 %v4121
        %v4123 = vlaneseq
        %v4124 = vshrl.u32 %v4123, 7
        %v4125 = vsub.s32 %v4122, %v4124
        %v4126 = vrot.slane %v4119, %v4125
        %v4127 = vcombine.low %v4031, %v4038
        %v4129 = vunpack.c.l.s4 1983009808
        %v4130 = vunpack.c.0.s8 %v4129
        %v4131 = vlaneseq
        %v4132 = vshrl.u32 %v4131, 7
        %v4133 = vsub.s32 %v4130, %v4132
        %v4134 = vrot.slane %v4127, %v4133
        %v4135 = vcombine.low %v4041, %v4042
        %v4137 = vunpack.c.l.s4 1983009808
        %v4138 = vunpack.c.0.s8 %v4137
        %v4139 = vlaneseq
        %v4140 = vshrl.u32 %v4139, 7
        %v4141 = vsub.s32 %v4138, %v4140
        %v4142 = vrot.slane %v4135, %v4141
        %v4143 = vcombine.low %v4118, %v4126
        %v4144 = vcombine.high %v4118, %v4126
        %v4146 = vunpack.c.l.s4 1934713408
        %v4147 = vunpack.c.0.s8 %v4146
        %v4148 = vlaneseq
        %v4149 = vshrl.u32 %v4148, 7
        %v4150 = vsub.s32 %v4147, %v4149
        %v4151 = vrot.slane %v4143, %v4150
        %v4153 = vunpack.c.l.s4 1934713408
        %v4154 = vunpack.c.0.s8 %v4153
        %v4155 = vlaneseq
        %v4156 = vshrl.u32 %v4155, 7
        %v4157 = vsub.s32 %v4154, %v4156
        %v4158 = vrot.slane %v4144, %v4157
        %v4159 = vcombine.low %v4134, %v4142
        %v4160 = vcombine.high %v4134, %v4142
        %v4162 = vunpack.c.l.s4 1934713408
        %v4163 = vunpack.c.0.s8 %v4162
        %v4164 = vlaneseq
        %v4165 = vshrl.u32 %v4164, 7
        %v4166 = vsub.s32 %v4163, %v4165
        %v4167 = vrot.slane %v4159, %v4166
        %v4169 = vunpack.c.l.s4 1934713408
        %v4170 = vunpack.c.0.s8 %v4169
        %v4171 = vlaneseq
        %v4172 = vshrl.u32 %v4171, 7
        %v4173 = vsub.s32 %v4170, %v4172
        %v4174 = vrot.slane %v4160, %v4173
        %v4175 = vcombine.low %v4151, %v4167
        %v4176 = vcombine.high %v4151, %v4167
        %v4177 = vcombine.low %v4158, %v4174
        %v4178 = vcombine.high %v4158, %v4174
        %v4179 = vcombine.low %v4083, %v4090
        %v4181 = vunpack.c.l.s4 1983009808
        %v4182 = vunpack.c.0.s8 %v4181
        %v4183 = vlaneseq
        %v4184 = vshrl.u32 %v4183, 7
        %v4185 = vsub.s32 %v4182, %v4184
        %v4186 = vrot.slane %v4179, %v4185
        %v4187 = vcombine.low %v4107, %v4108
        %v4189 = vunpack.c.l.s4 1983009808
        %v4190 = vunpack.c.0.s8 %v4189
        %v4191 = vlaneseq
        %v4192 = vshrl.u32 %v4191, 7
        %v4193 = vsub.s32 %v4190, %v4192
        %v4194 = vrot.slane %v4187, %v4193
        %v4195 = vcombine.low %v4099, %v4106
        %v4197 = vunpack.c.l.s4 1983009808
        %v4198 = vunpack.c.0.s8 %v4197
        %v4199 = vlaneseq
        %v4200 = vshrl.u32 %v4199, 7
        %v4201 = vsub.s32 %v4198, %v4200
        %v4202 = vrot.slane %v4195, %v4201
        %v4203 = vcombine.low %v4109, %v4110
        %v4205 = vunpack.c.l.s4 1983009808
        %v4206 = vunpack.c.0.s8 %v4205
        %v4207 = vlaneseq
        %v4208 = vshrl.u32 %v4207, 7
        %v4209 = vsub.s32 %v4206, %v4208
        %v4210 = vrot.slane %v4203, %v4209
        %v4211 = vcombine.low %v4186, %v4194
        %v4212 = vcombine.high %v4186, %v4194
        %v4214 = vunpack.c.l.s4 1934713408
        %v4215 = vunpack.c.0.s8 %v4214
        %v4216 = vlaneseq
        %v4217 = vshrl.u32 %v4216, 7
        %v4218 = vsub.s32 %v4215, %v4217
        %v4219 = vrot.slane %v4211, %v4218
        %v4221 = vunpack.c.l.s4 1934713408
        %v4222 = vunpack.c.0.s8 %v4221
        %v4223 = vlaneseq
        %v4224 = vshrl.u32 %v4223, 7
        %v4225 = vsub.s32 %v4222, %v4224
        %v4226 = vrot.slane %v4212, %v4225
        %v4227 = vcombine.low %v4202, %v4210
        %v4228 = vcombine.high %v4202, %v4210
        %v4230 = vunpack.c.l.s4 1934713408
        %v4231 = vunpack.c.0.s8 %v4230
        %v4232 = vlaneseq
        %v4233 = vshrl.u32 %v4232, 7
        %v4234 = vsub.s32 %v4231, %v4233
        %v4235 = vrot.slane %v4227, %v4234
        %v4237 = vunpack.c.l.s4 1934713408
        %v4238 = vunpack.c.0.s8 %v4237
        %v4239 = vlaneseq
        %v4240 = vshrl.u32 %v4239, 7
        %v4241 = vsub.s32 %v4238, %v4240
        %v4242 = vrot.slane %v4228, %v4241
        %v4243 = vcombine.low %v4219, %v4235
        %v4244 = vcombine.high %v4219, %v4235
        %v4245 = vcombine.low %v4226, %v4242
        %v4246 = vcombine.high %v4226, %v4242
        %v4247 = vpack.c.bf16 %v3659, %v3591
        %v4248 = vpack.c.bf16 %v3660, %v3592
        %v4249 = vpack.c.bf16 %v3661, %v3593
        %v4250 = vpack.c.bf16 %v3662, %v3594
        %v4251 = vpack.c.bf16 %v3951, %v3883
        %v4252 = vpack.c.bf16 %v3952, %v3884
        %v4253 = vpack.c.bf16 %v3953, %v3885
        %v4254 = vpack.c.bf16 %v3954, %v3886
        %v4256 = vsel %vm2157, %v4247, 0
        %v4259 = vsel %vm2157, %v4251, 0
        %4261 = vmatprep.subr.bf16.mxu0 0
        %4262 = vmatpush1.bf16.xpose.msra.mxu0 %v4259
        %4263 = vmatprep.subr.bf16.mxu0 0
        %4264 = vmatpush1.bf16.xpose.msra.mxu0 0
        %4265 = vmatprep.subr.bf16.mxu0 0
        %4266 = vmatpush1.bf16.xpose.msra.mxu0 0
        %4267 = vmatprep.subr.bf16.mxu0 0
        %4268 = vmatpush1.bf16.xpose.msra.mxu0 0
        %4269 = vmatprep.subr.bf16.mxu0 0
        %4270 = vmatpush1.bf16.xpose.msra.mxu0 0
        %4271 = vmatprep.subr.bf16.mxu0 0
        %4272 = vmatpush1.bf16.xpose.msra.mxu0 0
        %4273 = vmatprep.subr.bf16.mxu0 0
        %4274 = vmatpush1.bf16.xpose.msra.mxu0 0
        %4275 = vmatprep.subr.bf16.mxu0 0
        %4276 = vmatpush1.bf16.xpose.msra.mxu0 0
        %4277 = vmatprep.subr.bf16.mxu0 0
        %4278 = vmatpush1.bf16.xpose.msra.mxu0 0
        %4279 = vmatprep.subr.bf16.mxu0 0
        %4280 = vmatpush1.bf16.xpose.msra.mxu0 0
        %4281 = vmatprep.subr.bf16.mxu0 0
        %4282 = vmatpush1.bf16.xpose.msra.mxu0 0
        %4283 = vmatprep.subr.bf16.mxu0 0
        %4284 = vmatpush1.bf16.xpose.msra.mxu0 0
        %4285 = vmatprep.subr.bf16.mxu0 0
        %4286 = vmatpush1.bf16.xpose.msra.mxu0 0
        %4287 = vmatprep.subr.bf16.mxu0 0
        %4288 = vmatpush1.bf16.xpose.msra.mxu0 0
        %4289 = vmatprep.subr.bf16.mxu0 0
        %4290 = vmatpush1.bf16.xpose.msra.mxu0 0
        %4291 = vmatprep.subr.bf16.mxu0 0
        %4292 = vmatpush1.bf16.xpose.msra.mxu0 0
        %4293 = vmatprep.mubr.bf16.mxu0 0
        %4294 = vmatmul.mubr.bf16.gmra.mrb[0].mxu0 %v4256
        %v4295 = vpop.f32.mrb[0].mxu0
        %v4296 = vadd.f32 0.0, %v4295
        %v4297 = vpop.f32.mrb[0].mxu0
        %v4298 = vpop.f32.mrb[0].mxu0
        %v4299 = vadd.f32 0.0, %v4298
        %v4300 = vpop.f32.mrb[0].mxu0
        %4301 = vdwg.mxu0
        %v4303 = vsel %vm2157, %v4248, 0
        %v4306 = vsel %vm2157, %v4252, 0
        %4308 = vmatprep.subr.bf16.mxu0 0
        %4309 = vmatpush1.bf16.xpose.msra.mxu0 %v4306
        %4310 = vmatprep.subr.bf16.mxu0 0
        %4311 = vmatpush1.bf16.xpose.msra.mxu0 0
        %4312 = vmatprep.subr.bf16.mxu0 0
        %4313 = vmatpush1.bf16.xpose.msra.mxu0 0
        %4314 = vmatprep.subr.bf16.mxu0 0
        %4315 = vmatpush1.bf16.xpose.msra.mxu0 0
        %4316 = vmatprep.subr.bf16.mxu0 0
        %4317 = vmatpush1.bf16.xpose.msra.mxu0 0
        %4318 = vmatprep.subr.bf16.mxu0 0
        %4319 = vmatpush1.bf16.xpose.msra.mxu0 0
        %4320 = vmatprep.subr.bf16.mxu0 0
        %4321 = vmatpush1.bf16.xpose.msra.mxu0 0
        %4322 = vmatprep.subr.bf16.mxu0 0
        %4323 = vmatpush1.bf16.xpose.msra.mxu0 0
        %4324 = vmatprep.subr.bf16.mxu0 0
        %4325 = vmatpush1.bf16.xpose.msra.mxu0 0
        %4326 = vmatprep.subr.bf16.mxu0 0
        %4327 = vmatpush1.bf16.xpose.msra.mxu0 0
        %4328 = vmatprep.subr.bf16.mxu0 0
        %4329 = vmatpush1.bf16.xpose.msra.mxu0 0
        %4330 = vmatprep.subr.bf16.mxu0 0
        %4331 = vmatpush1.bf16.xpose.msra.mxu0 0
        %4332 = vmatprep.subr.bf16.mxu0 0
        %4333 = vmatpush1.bf16.xpose.msra.mxu0 0
        %4334 = vmatprep.subr.bf16.mxu0 0
        %4335 = vmatpush1.bf16.xpose.msra.mxu0 0
        %4336 = vmatprep.subr.bf16.mxu0 0
        %4337 = vmatpush1.bf16.xpose.msra.mxu0 0
        %4338 = vmatprep.subr.bf16.mxu0 0
        %4339 = vmatpush1.bf16.xpose.msra.mxu0 0
        %4340 = vmatprep.mubr.bf16.mxu0 0
        %4341 = vmatmul.mubr.bf16.gmra.mrb[0].mxu0 %v4303
        %v4342 = vpop.f32.mrb[0].mxu0
        %v4343 = vadd.f32 0.0, %v4342
        %v4344 = vpop.f32.mrb[0].mxu0
        %v4345 = vpop.f32.mrb[0].mxu0
        %v4346 = vadd.f32 0.0, %v4345
        %v4347 = vpop.f32.mrb[0].mxu0
        %4348 = vdwg.mxu0
        %v4350 = vsel %vm2157, %v4249, 0
        %v4353 = vsel %vm2157, %v4253, 0
        %4355 = vmatprep.subr.bf16.mxu0 0
        %4356 = vmatpush1.bf16.xpose.msra.mxu0 %v4353
        %4357 = vmatprep.subr.bf16.mxu0 0
        %4358 = vmatpush1.bf16.xpose.msra.mxu0 0
        %4359 = vmatprep.subr.bf16.mxu0 0
        %4360 = vmatpush1.bf16.xpose.msra.mxu0 0
        %4361 = vmatprep.subr.bf16.mxu0 0
        %4362 = vmatpush1.bf16.xpose.msra.mxu0 0
        %4363 = vmatprep.subr.bf16.mxu0 0
        %4364 = vmatpush1.bf16.xpose.msra.mxu0 0
        %4365 = vmatprep.subr.bf16.mxu0 0
        %4366 = vmatpush1.bf16.xpose.msra.mxu0 0
        %4367 = vmatprep.subr.bf16.mxu0 0
        %4368 = vmatpush1.bf16.xpose.msra.mxu0 0
        %4369 = vmatprep.subr.bf16.mxu0 0
        %4370 = vmatpush1.bf16.xpose.msra.mxu0 0
        %4371 = vmatprep.subr.bf16.mxu0 0
        %4372 = vmatpush1.bf16.xpose.msra.mxu0 0
        %4373 = vmatprep.subr.bf16.mxu0 0
        %4374 = vmatpush1.bf16.xpose.msra.mxu0 0
        %4375 = vmatprep.subr.bf16.mxu0 0
        %4376 = vmatpush1.bf16.xpose.msra.mxu0 0
        %4377 = vmatprep.subr.bf16.mxu0 0
        %4378 = vmatpush1.bf16.xpose.msra.mxu0 0
        %4379 = vmatprep.subr.bf16.mxu0 0
        %4380 = vmatpush1.bf16.xpose.msra.mxu0 0
        %4381 = vmatprep.subr.bf16.mxu0 0
        %4382 = vmatpush1.bf16.xpose.msra.mxu0 0
        %4383 = vmatprep.subr.bf16.mxu0 0
        %4384 = vmatpush1.bf16.xpose.msra.mxu0 0
        %4385 = vmatprep.subr.bf16.mxu0 0
        %4386 = vmatpush1.bf16.xpose.msra.mxu0 0
        %4387 = vmatprep.mubr.bf16.mxu0 0
        %4388 = vmatmul.mubr.bf16.gmra.mrb[0].mxu0 %v4350
        %v4389 = vpop.f32.mrb[0].mxu0
        %v4390 = vadd.f32 0.0, %v4389
        %v4391 = vpop.f32.mrb[0].mxu0
        %v4392 = vpop.f32.mrb[0].mxu0
        %v4393 = vadd.f32 0.0, %v4392
        %v4394 = vpop.f32.mrb[0].mxu0
        %4395 = vdwg.mxu0
        %v4397 = vsel %vm2157, %v4250, 0
        %v4400 = vsel %vm2157, %v4254, 0
        %4402 = vmatprep.subr.bf16.mxu0 0
        %4403 = vmatpush1.bf16.xpose.msra.mxu0 %v4400
        %4404 = vmatprep.subr.bf16.mxu0 0
        %4405 = vmatpush1.bf16.xpose.msra.mxu0 0
        %4406 = vmatprep.subr.bf16.mxu0 0
        %4407 = vmatpush1.bf16.xpose.msra.mxu0 0
        %4408 = vmatprep.subr.bf16.mxu0 0
        %4409 = vmatpush1.bf16.xpose.msra.mxu0 0
        %4410 = vmatprep.subr.bf16.mxu0 0
        %4411 = vmatpush1.bf16.xpose.msra.mxu0 0
        %4412 = vmatprep.subr.bf16.mxu0 0
        %4413 = vmatpush1.bf16.xpose.msra.mxu0 0
        %4414 = vmatprep.subr.bf16.mxu0 0
        %4415 = vmatpush1.bf16.xpose.msra.mxu0 0
        %4416 = vmatprep.subr.bf16.mxu0 0
        %4417 = vmatpush1.bf16.xpose.msra.mxu0 0
        %4418 = vmatprep.subr.bf16.mxu0 0
        %4419 = vmatpush1.bf16.xpose.msra.mxu0 0
        %4420 = vmatprep.subr.bf16.mxu0 0
        %4421 = vmatpush1.bf16.xpose.msra.mxu0 0
        %4422 = vmatprep.subr.bf16.mxu0 0
        %4423 = vmatpush1.bf16.xpose.msra.mxu0 0
        %4424 = vmatprep.subr.bf16.mxu0 0
        %4425 = vmatpush1.bf16.xpose.msra.mxu0 0
        %4426 = vmatprep.subr.bf16.mxu0 0
        %4427 = vmatpush1.bf16.xpose.msra.mxu0 0
        %4428 = vmatprep.subr.bf16.mxu0 0
        %4429 = vmatpush1.bf16.xpose.msra.mxu0 0
        %4430 = vmatprep.subr.bf16.mxu0 0
        %4431 = vmatpush1.bf16.xpose.msra.mxu0 0
        %4432 = vmatprep.subr.bf16.mxu0 0
        %4433 = vmatpush1.bf16.xpose.msra.mxu0 0
        %4434 = vmatprep.mubr.bf16.mxu0 0
        %4435 = vmatmul.mubr.bf16.gmra.mrb[0].mxu0 %v4397
        %v4436 = vpop.f32.mrb[0].mxu0
        %v4437 = vadd.f32 0.0, %v4436
        %v4438 = vpop.f32.mrb[0].mxu0
        %v4439 = vpop.f32.mrb[0].mxu0
        %v4440 = vadd.f32 0.0, %v4439
        %v4441 = vpop.f32.mrb[0].mxu0
        %4442 = vdwg.mxu0
        %v4443 = vmul.f32 %v4296, 0.17677669
        %v4444 = vmul.f32 %v4299, 0.17677669
        %v4445 = vmul.f32 %v4343, 0.17677669
        %v4446 = vmul.f32 %v4346, 0.17677669
        %v4447 = vmul.f32 %v4390, 0.17677669
        %v4448 = vmul.f32 %v4393, 0.17677669
        %v4449 = vmul.f32 %v4437, 0.17677669
        %v4450 = vmul.f32 %v4440, 0.17677669
        %v4451 = vsel %vm2373, %v4443, -inf
        %4452 = vmax.xlane.f32.xlu0 %v4451
        %v4453 = vpop.xlane.xlu0 %4452
        %v4454 = vsel %vm2373, %v4444, -inf
        %4455 = vmax.xlane.f32.xlu0 %v4454
        %v4456 = vpop.xlane.xlu0 %4455
        %v4457 = vsel %vm2373, %v4445, -inf
        %4458 = vmax.xlane.f32.xlu0 %v4457
        %v4459 = vpop.xlane.xlu0 %4458
        %v4460 = vsel %vm2373, %v4446, -inf
        %4461 = vmax.xlane.f32.xlu0 %v4460
        %v4462 = vpop.xlane.xlu0 %4461
        %v4463 = vsel %vm2373, %v4447, -inf
        %4464 = vmax.xlane.f32.xlu0 %v4463
        %v4465 = vpop.xlane.xlu0 %4464
        %v4466 = vsel %vm2373, %v4448, -inf
        %4467 = vmax.xlane.f32.xlu0 %v4466
        %v4468 = vpop.xlane.xlu0 %4467
        %v4469 = vsel %vm2373, %v4449, -inf
        %4470 = vmax.xlane.f32.xlu0 %v4469
        %v4471 = vpop.xlane.xlu0 %4470
        %v4472 = vsel %vm2373, %v4450, -inf
        %4473 = vmax.xlane.f32.xlu0 %v4472
        %v4474 = vpop.xlane.xlu0 %4473
        %v4475 = vsub.f32 %v4443, %v4453
        %v4476 = vsub.f32 %v4444, %v4456
        %v4477 = vsub.f32 %v4445, %v4459
        %v4478 = vsub.f32 %v4446, %v4462
        %v4479 = vsub.f32 %v4447, %v4465
        %v4480 = vsub.f32 %v4448, %v4468
        %v4481 = vsub.f32 %v4449, %v4471
        %v4482 = vsub.f32 %v4450, %v4474
        %v4483 = vmul.f32 %v4475, 1.442695
        %v4484 = vpow.pop %v4483
        %v4485 = vmul.f32 %v4476, 1.442695
        %v4486 = vpow.pop %v4485
        %v4487 = vmul.f32 %v4477, 1.442695
        %v4488 = vpow.pop %v4487
        %v4489 = vmul.f32 %v4478, 1.442695
        %v4490 = vpow.pop %v4489
        %v4491 = vmul.f32 %v4479, 1.442695
        %v4492 = vpow.pop %v4491
        %v4493 = vmul.f32 %v4480, 1.442695
        %v4494 = vpow.pop %v4493
        %v4495 = vmul.f32 %v4481, 1.442695
        %v4496 = vpow.pop %v4495
        %v4497 = vmul.f32 %v4482, 1.442695
        %v4498 = vpow.pop %v4497
        %v4499 = vsel %vm2373, %v4484, 0.0
        %4500 = vadd.xlane.f32.xlu0 %v4499
        %v4501 = vpop.xlane.xlu0 %4500
        %v4502 = vsel %vm2373, %v4486, 0.0
        %4503 = vadd.xlane.f32.xlu0 %v4502
        %v4504 = vpop.xlane.xlu0 %4503
        %v4505 = vsel %vm2373, %v4488, 0.0
        %4506 = vadd.xlane.f32.xlu0 %v4505
        %v4507 = vpop.xlane.xlu0 %4506
        %v4508 = vsel %vm2373, %v4490, 0.0
        %4509 = vadd.xlane.f32.xlu0 %v4508
        %v4510 = vpop.xlane.xlu0 %4509
        %v4511 = vsel %vm2373, %v4492, 0.0
        %4512 = vadd.xlane.f32.xlu0 %v4511
        %v4513 = vpop.xlane.xlu0 %4512
        %v4514 = vsel %vm2373, %v4494, 0.0
        %4515 = vadd.xlane.f32.xlu0 %v4514
        %v4516 = vpop.xlane.xlu0 %4515
        %v4517 = vsel %vm2373, %v4496, 0.0
        %4518 = vadd.xlane.f32.xlu0 %v4517
        %v4519 = vpop.xlane.xlu0 %4518
        %v4520 = vsel %vm2373, %v4498, 0.0
        %4521 = vadd.xlane.f32.xlu0 %v4520
        %v4522 = vpop.xlane.xlu0 %4521
        %v4523 = vrcp.pop %v4501
        %v4524 = vrcp.pop %v4504
        %v4525 = vrcp.pop %v4507
        %v4526 = vrcp.pop %v4510
        %v4527 = vrcp.pop %v4513
        %v4528 = vrcp.pop %v4516
        %v4529 = vrcp.pop %v4519
        %v4530 = vrcp.pop %v4522
        %v4531 = vmul.f32 %v4484, %v4523
        %v4532 = vmul.f32 %v4486, %v4524
        %v4533 = vmul.f32 %v4488, %v4525
        %v4534 = vmul.f32 %v4490, %v4526
        %v4535 = vmul.f32 %v4492, %v4527
        %v4536 = vmul.f32 %v4494, %v4528
        %v4537 = vmul.f32 %v4496, %v4529
        %v4538 = vmul.f32 %v4498, %v4530
        %v4539 = vpack.c.bf16 %v4532, %v4531
        %v4540 = vpack.c.bf16 %v4534, %v4533
        %v4541 = vpack.c.bf16 %v4536, %v4535
        %v4542 = vpack.c.bf16 %v4538, %v4537
        %v4543 = vpack.c.bf16 %v4243, %v4175
        %v4544 = vpack.c.bf16 %v4244, %v4176
        %v4545 = vpack.c.bf16 %v4245, %v4177
        %v4546 = vpack.c.bf16 %v4246, %v4178
        %v4548 = vsel %vm2373, %v4539, 0
        %4550 = vmatprep.subr.bf16.mxu0 0
        %4551 = vmatpush1.bf16.msra.mxu0 %v4543
        %4552 = vmatprep.subr.bf16.mxu0 0
        %4553 = vmatpush1.bf16.msra.mxu0 0
        %4554 = vmatprep.subr.bf16.mxu0 0
        %4555 = vmatpush1.bf16.msra.mxu0 0
        %4556 = vmatprep.subr.bf16.mxu0 0
        %4557 = vmatpush1.bf16.msra.mxu0 0
        %4558 = vmatprep.subr.bf16.mxu0 0
        %4559 = vmatpush1.bf16.msra.mxu0 0
        %4560 = vmatprep.subr.bf16.mxu0 0
        %4561 = vmatpush1.bf16.msra.mxu0 0
        %4562 = vmatprep.subr.bf16.mxu0 0
        %4563 = vmatpush1.bf16.msra.mxu0 0
        %4564 = vmatprep.subr.bf16.mxu0 0
        %4565 = vmatpush1.bf16.msra.mxu0 0
        %4566 = vmatprep.subr.bf16.mxu0 0
        %4567 = vmatpush1.bf16.msra.mxu0 0
        %4568 = vmatprep.subr.bf16.mxu0 0
        %4569 = vmatpush1.bf16.msra.mxu0 0
        %4570 = vmatprep.subr.bf16.mxu0 0
        %4571 = vmatpush1.bf16.msra.mxu0 0
        %4572 = vmatprep.subr.bf16.mxu0 0
        %4573 = vmatpush1.bf16.msra.mxu0 0
        %4574 = vmatprep.subr.bf16.mxu0 0
        %4575 = vmatpush1.bf16.msra.mxu0 0
        %4576 = vmatprep.subr.bf16.mxu0 0
        %4577 = vmatpush1.bf16.msra.mxu0 0
        %4578 = vmatprep.subr.bf16.mxu0 0
        %4579 = vmatpush1.bf16.msra.mxu0 0
        %4580 = vmatprep.subr.bf16.mxu0 0
        %4581 = vmatpush1.bf16.msra.mxu0 0
        %4582 = vmatprep.mubr.bf16.mxu0 0
        %4583 = vmatmul.mubr.bf16.gmra.mrb[0].mxu0 %v4548
        %v4584 = vpop.f32.mrb[0].mxu0
        %v4585 = vadd.f32 0.0, %v4584
        %v4586 = vpop.f32.mrb[0].mxu0
        %v4587 = vpop.f32.mrb[0].mxu0
        %v4588 = vadd.f32 0.0, %v4587
        %v4589 = vpop.f32.mrb[0].mxu0
        %4590 = vdwg.mxu0
        %v4592 = vsel %vm2373, %v4540, 0
        %4594 = vmatprep.subr.bf16.mxu0 0
        %4595 = vmatpush1.bf16.msra.mxu0 %v4544
        %4596 = vmatprep.subr.bf16.mxu0 0
        %4597 = vmatpush1.bf16.msra.mxu0 0
        %4598 = vmatprep.subr.bf16.mxu0 0
        %4599 = vmatpush1.bf16.msra.mxu0 0
        %4600 = vmatprep.subr.bf16.mxu0 0
        %4601 = vmatpush1.bf16.msra.mxu0 0
        %4602 = vmatprep.subr.bf16.mxu0 0
        %4603 = vmatpush1.bf16.msra.mxu0 0
        %4604 = vmatprep.subr.bf16.mxu0 0
        %4605 = vmatpush1.bf16.msra.mxu0 0
        %4606 = vmatprep.subr.bf16.mxu0 0
        %4607 = vmatpush1.bf16.msra.mxu0 0
        %4608 = vmatprep.subr.bf16.mxu0 0
        %4609 = vmatpush1.bf16.msra.mxu0 0
        %4610 = vmatprep.subr.bf16.mxu0 0
        %4611 = vmatpush1.bf16.msra.mxu0 0
        %4612 = vmatprep.subr.bf16.mxu0 0
        %4613 = vmatpush1.bf16.msra.mxu0 0
        %4614 = vmatprep.subr.bf16.mxu0 0
        %4615 = vmatpush1.bf16.msra.mxu0 0
        %4616 = vmatprep.subr.bf16.mxu0 0
        %4617 = vmatpush1.bf16.msra.mxu0 0
        %4618 = vmatprep.subr.bf16.mxu0 0
        %4619 = vmatpush1.bf16.msra.mxu0 0
        %4620 = vmatprep.subr.bf16.mxu0 0
        %4621 = vmatpush1.bf16.msra.mxu0 0
        %4622 = vmatprep.subr.bf16.mxu0 0
        %4623 = vmatpush1.bf16.msra.mxu0 0
        %4624 = vmatprep.subr.bf16.mxu0 0
        %4625 = vmatpush1.bf16.msra.mxu0 0
        %4626 = vmatprep.mubr.bf16.mxu0 0
        %4627 = vmatmul.mubr.bf16.gmra.mrb[0].mxu0 %v4592
        %v4628 = vpop.f32.mrb[0].mxu0
        %v4629 = vadd.f32 0.0, %v4628
        %v4630 = vpop.f32.mrb[0].mxu0
        %v4631 = vpop.f32.mrb[0].mxu0
        %v4632 = vadd.f32 0.0, %v4631
        %v4633 = vpop.f32.mrb[0].mxu0
        %4634 = vdwg.mxu0
        %v4636 = vsel %vm2373, %v4541, 0
        %4638 = vmatprep.subr.bf16.mxu0 0
        %4639 = vmatpush1.bf16.msra.mxu0 %v4545
        %4640 = vmatprep.subr.bf16.mxu0 0
        %4641 = vmatpush1.bf16.msra.mxu0 0
        %4642 = vmatprep.subr.bf16.mxu0 0
        %4643 = vmatpush1.bf16.msra.mxu0 0
        %4644 = vmatprep.subr.bf16.mxu0 0
        %4645 = vmatpush1.bf16.msra.mxu0 0
        %4646 = vmatprep.subr.bf16.mxu0 0
        %4647 = vmatpush1.bf16.msra.mxu0 0
        %4648 = vmatprep.subr.bf16.mxu0 0
        %4649 = vmatpush1.bf16.msra.mxu0 0
        %4650 = vmatprep.subr.bf16.mxu0 0
        %4651 = vmatpush1.bf16.msra.mxu0 0
        %4652 = vmatprep.subr.bf16.mxu0 0
        %4653 = vmatpush1.bf16.msra.mxu0 0
        %4654 = vmatprep.subr.bf16.mxu0 0
        %4655 = vmatpush1.bf16.msra.mxu0 0
        %4656 = vmatprep.subr.bf16.mxu0 0
        %4657 = vmatpush1.bf16.msra.mxu0 0
        %4658 = vmatprep.subr.bf16.mxu0 0
        %4659 = vmatpush1.bf16.msra.mxu0 0
        %4660 = vmatprep.subr.bf16.mxu0 0
        %4661 = vmatpush1.bf16.msra.mxu0 0
        %4662 = vmatprep.subr.bf16.mxu0 0
        %4663 = vmatpush1.bf16.msra.mxu0 0
        %4664 = vmatprep.subr.bf16.mxu0 0
        %4665 = vmatpush1.bf16.msra.mxu0 0
        %4666 = vmatprep.subr.bf16.mxu0 0
        %4667 = vmatpush1.bf16.msra.mxu0 0
        %4668 = vmatprep.subr.bf16.mxu0 0
        %4669 = vmatpush1.bf16.msra.mxu0 0
        %4670 = vmatprep.mubr.bf16.mxu0 0
        %4671 = vmatmul.mubr.bf16.gmra.mrb[0].mxu0 %v4636
        %v4672 = vpop.f32.mrb[0].mxu0
        %v4673 = vadd.f32 0.0, %v4672
        %v4674 = vpop.f32.mrb[0].mxu0
        %v4675 = vpop.f32.mrb[0].mxu0
        %v4676 = vadd.f32 0.0, %v4675
        %v4677 = vpop.f32.mrb[0].mxu0
        %4678 = vdwg.mxu0
        %v4680 = vsel %vm2373, %v4542, 0
        %4682 = vmatprep.subr.bf16.mxu0 0
        %4683 = vmatpush1.bf16.msra.mxu0 %v4546
        %4684 = vmatprep.subr.bf16.mxu0 0
        %4685 = vmatpush1.bf16.msra.mxu0 0
        %4686 = vmatprep.subr.bf16.mxu0 0
        %4687 = vmatpush1.bf16.msra.mxu0 0
        %4688 = vmatprep.subr.bf16.mxu0 0
        %4689 = vmatpush1.bf16.msra.mxu0 0
        %4690 = vmatprep.subr.bf16.mxu0 0
        %4691 = vmatpush1.bf16.msra.mxu0 0
        %4692 = vmatprep.subr.bf16.mxu0 0
        %4693 = vmatpush1.bf16.msra.mxu0 0
        %4694 = vmatprep.subr.bf16.mxu0 0
        %4695 = vmatpush1.bf16.msra.mxu0 0
        %4696 = vmatprep.subr.bf16.mxu0 0
        %4697 = vmatpush1.bf16.msra.mxu0 0
        %4698 = vmatprep.subr.bf16.mxu0 0
        %4699 = vmatpush1.bf16.msra.mxu0 0
        %4700 = vmatprep.subr.bf16.mxu0 0
        %4701 = vmatpush1.bf16.msra.mxu0 0
        %4702 = vmatprep.subr.bf16.mxu0 0
        %4703 = vmatpush1.bf16.msra.mxu0 0
        %4704 = vmatprep.subr.bf16.mxu0 0
        %4705 = vmatpush1.bf16.msra.mxu0 0
        %4706 = vmatprep.subr.bf16.mxu0 0
        %4707 = vmatpush1.bf16.msra.mxu0 0
        %4708 = vmatprep.subr.bf16.mxu0 0
        %4709 = vmatpush1.bf16.msra.mxu0 0
        %4710 = vmatprep.subr.bf16.mxu0 0
        %4711 = vmatpush1.bf16.msra.mxu0 0
        %4712 = vmatprep.subr.bf16.mxu0 0
        %4713 = vmatpush1.bf16.msra.mxu0 0
        %4714 = vmatprep.mubr.bf16.mxu0 0
        %4715 = vmatmul.mubr.bf16.gmra.mrb[0].mxu0 %v4680
        %v4716 = vpop.f32.mrb[0].mxu0
        %v4717 = vadd.f32 0.0, %v4716
        %v4718 = vpop.f32.mrb[0].mxu0
        %v4719 = vpop.f32.mrb[0].mxu0
        %v4720 = vadd.f32 0.0, %v4719
        %v4721 = vpop.f32.mrb[0].mxu0
        %4722 = vdwg.mxu0
        %v4723 = vcombine.low %v4585, %v4673
        %v4724 = vcombine.high %v4585, %v4673
        %v4726 = vunpack.c.l.s4 1983009808
        %v4727 = vunpack.c.0.s8 %v4726
        %v4728 = vlaneseq
        %v4729 = vshrl.u32 %v4728, 7
        %v4730 = vsub.s32 %v4727, %v4729
        %v4731 = vrot.slane %v4723, %v4730
        %v4733 = vunpack.c.l.s4 1983009808
        %v4734 = vunpack.c.0.s8 %v4733
        %v4735 = vlaneseq
        %v4736 = vshrl.u32 %v4735, 7
        %v4737 = vsub.s32 %v4734, %v4736
        %v4738 = vrot.slane %v4724, %v4737
        %v4739 = vcombine.low %v4629, %v4717
        %v4740 = vcombine.high %v4629, %v4717
        %v4742 = vunpack.c.l.s4 1983009808
        %v4743 = vunpack.c.0.s8 %v4742
        %v4744 = vlaneseq
        %v4745 = vshrl.u32 %v4744, 7
        %v4746 = vsub.s32 %v4743, %v4745
        %v4747 = vrot.slane %v4739, %v4746
        %v4749 = vunpack.c.l.s4 1983009808
        %v4750 = vunpack.c.0.s8 %v4749
        %v4751 = vlaneseq
        %v4752 = vshrl.u32 %v4751, 7
        %v4753 = vsub.s32 %v4750, %v4752
        %v4754 = vrot.slane %v4740, %v4753
        %v4755 = vcombine.low %v4731, %v4747
        %v4756 = vcombine.high %v4731, %v4747
        %v4758 = vunpack.c.l.s4 1934713408
        %v4759 = vunpack.c.0.s8 %v4758
        %v4760 = vlaneseq
        %v4761 = vshrl.u32 %v4760, 7
        %v4762 = vsub.s32 %v4759, %v4761
        %v4763 = vrot.slane %v4755, %v4762
        %v4765 = vunpack.c.l.s4 1934713408
        %v4766 = vunpack.c.0.s8 %v4765
        %v4767 = vlaneseq
        %v4768 = vshrl.u32 %v4767, 7
        %v4769 = vsub.s32 %v4766, %v4768
        %v4770 = vrot.slane %v4756, %v4769
        %v4771 = vcombine.low %v4738, %v4754
        %v4772 = vcombine.high %v4738, %v4754
        %v4774 = vunpack.c.l.s4 1934713408
        %v4775 = vunpack.c.0.s8 %v4774
        %v4776 = vlaneseq
        %v4777 = vshrl.u32 %v4776, 7
        %v4778 = vsub.s32 %v4775, %v4777
        %v4779 = vrot.slane %v4771, %v4778
        %v4781 = vunpack.c.l.s4 1934713408
        %v4782 = vunpack.c.0.s8 %v4781
        %v4783 = vlaneseq
        %v4784 = vshrl.u32 %v4783, 7
        %v4785 = vsub.s32 %v4782, %v4784
        %v4786 = vrot.slane %v4772, %v4785
        %v4787 = vcombine.high %v4763, 0.0
        %v4788 = vcombine.high %v4770, 0.0
        %v4789 = vcombine.high %v4779, 0.0
        %v4790 = vcombine.high %v4786, 0.0
        %v4791 = vcombine.low %v4588, %v4676
        %v4792 = vcombine.high %v4588, %v4676
        %v4794 = vunpack.c.l.s4 1983009808
        %v4795 = vunpack.c.0.s8 %v4794
        %v4796 = vlaneseq
        %v4797 = vshrl.u32 %v4796, 7
        %v4798 = vsub.s32 %v4795, %v4797
        %v4799 = vrot.slane %v4791, %v4798
        %v4801 = vunpack.c.l.s4 1983009808
        %v4802 = vunpack.c.0.s8 %v4801
        %v4803 = vlaneseq
        %v4804 = vshrl.u32 %v4803, 7
        %v4805 = vsub.s32 %v4802, %v4804
        %v4806 = vrot.slane %v4792, %v4805
        %v4807 = vcombine.low %v4632, %v4720
        %v4808 = vcombine.high %v4632, %v4720
        %v4810 = vunpack.c.l.s4 1983009808
        %v4811 = vunpack.c.0.s8 %v4810
        %v4812 = vlaneseq
        %v4813 = vshrl.u32 %v4812, 7
        %v4814 = vsub.s32 %v4811, %v4813
        %v4815 = vrot.slane %v4807, %v4814
        %v4817 = vunpack.c.l.s4 1983009808
        %v4818 = vunpack.c.0.s8 %v4817
        %v4819 = vlaneseq
        %v4820 = vshrl.u32 %v4819, 7
        %v4821 = vsub.s32 %v4818, %v4820
        %v4822 = vrot.slane %v4808, %v4821
        %v4823 = vcombine.low %v4799, %v4815
        %v4824 = vcombine.high %v4799, %v4815
        %v4826 = vunpack.c.l.s4 1934713408
        %v4827 = vunpack.c.0.s8 %v4826
        %v4828 = vlaneseq
        %v4829 = vshrl.u32 %v4828, 7
        %v4830 = vsub.s32 %v4827, %v4829
        %v4831 = vrot.slane %v4823, %v4830
        %v4833 = vunpack.c.l.s4 1934713408
        %v4834 = vunpack.c.0.s8 %v4833
        %v4835 = vlaneseq
        %v4836 = vshrl.u32 %v4835, 7
        %v4837 = vsub.s32 %v4834, %v4836
        %v4838 = vrot.slane %v4824, %v4837
        %v4839 = vcombine.low %v4806, %v4822
        %v4840 = vcombine.high %v4806, %v4822
        %v4842 = vunpack.c.l.s4 1934713408
        %v4843 = vunpack.c.0.s8 %v4842
        %v4844 = vlaneseq
        %v4845 = vshrl.u32 %v4844, 7
        %v4846 = vsub.s32 %v4843, %v4845
        %v4847 = vrot.slane %v4839, %v4846
        %v4849 = vunpack.c.l.s4 1934713408
        %v4850 = vunpack.c.0.s8 %v4849
        %v4851 = vlaneseq
        %v4852 = vshrl.u32 %v4851, 7
        %v4853 = vsub.s32 %v4850, %v4852
        %v4854 = vrot.slane %v4840, %v4853
        %v4855 = vcombine.high %v4831, 0.0
        %v4856 = vcombine.high %v4838, 0.0
        %v4857 = vcombine.high %v4847, 0.0
        %v4858 = vcombine.high %v4854, 0.0
        %v4859 = vcombine.low %v4763, %v4770
        %v4861 = vunpack.c.l.s4 1983009808
        %v4862 = vunpack.c.0.s8 %v4861
        %v4863 = vlaneseq
        %v4864 = vshrl.u32 %v4863, 7
        %v4865 = vsub.s32 %v4862, %v4864
        %v4866 = vrot.slane %v4859, %v4865
        %v4867 = vcombine.low %v4787, %v4788
        %v4869 = vunpack.c.l.s4 1983009808
        %v4870 = vunpack.c.0.s8 %v4869
        %v4871 = vlaneseq
        %v4872 = vshrl.u32 %v4871, 7
        %v4873 = vsub.s32 %v4870, %v4872
        %v4874 = vrot.slane %v4867, %v4873
        %v4875 = vcombine.low %v4779, %v4786
        %v4877 = vunpack.c.l.s4 1983009808
        %v4878 = vunpack.c.0.s8 %v4877
        %v4879 = vlaneseq
        %v4880 = vshrl.u32 %v4879, 7
        %v4881 = vsub.s32 %v4878, %v4880
        %v4882 = vrot.slane %v4875, %v4881
        %v4883 = vcombine.low %v4789, %v4790
        %v4885 = vunpack.c.l.s4 1983009808
        %v4886 = vunpack.c.0.s8 %v4885
        %v4887 = vlaneseq
        %v4888 = vshrl.u32 %v4887, 7
        %v4889 = vsub.s32 %v4886, %v4888
        %v4890 = vrot.slane %v4883, %v4889
        %v4891 = vcombine.low %v4866, %v4874
        %v4892 = vcombine.high %v4866, %v4874
        %v4894 = vunpack.c.l.s4 1934713408
        %v4895 = vunpack.c.0.s8 %v4894
        %v4896 = vlaneseq
        %v4897 = vshrl.u32 %v4896, 7
        %v4898 = vsub.s32 %v4895, %v4897
        %v4899 = vrot.slane %v4891, %v4898
        %v4901 = vunpack.c.l.s4 1934713408
        %v4902 = vunpack.c.0.s8 %v4901
        %v4903 = vlaneseq
        %v4904 = vshrl.u32 %v4903, 7
        %v4905 = vsub.s32 %v4902, %v4904
        %v4906 = vrot.slane %v4892, %v4905
        %v4907 = vcombine.low %v4882, %v4890
        %v4908 = vcombine.high %v4882, %v4890
        %v4910 = vunpack.c.l.s4 1934713408
        %v4911 = vunpack.c.0.s8 %v4910
        %v4912 = vlaneseq
        %v4913 = vshrl.u32 %v4912, 7
        %v4914 = vsub.s32 %v4911, %v4913
        %v4915 = vrot.slane %v4907, %v4914
        %v4917 = vunpack.c.l.s4 1934713408
        %v4918 = vunpack.c.0.s8 %v4917
        %v4919 = vlaneseq
        %v4920 = vshrl.u32 %v4919, 7
        %v4921 = vsub.s32 %v4918, %v4920
        %v4922 = vrot.slane %v4908, %v4921
        %v4923 = vcombine.low %v4899, %v4915
        %v4924 = vcombine.high %v4899, %v4915
        %v4925 = vcombine.low %v4906, %v4922
        %v4926 = vcombine.high %v4906, %v4922
        %v4927 = vcombine.low %v4831, %v4838
        %v4929 = vunpack.c.l.s4 1983009808
        %v4930 = vunpack.c.0.s8 %v4929
        %v4931 = vlaneseq
        %v4932 = vshrl.u32 %v4931, 7
        %v4933 = vsub.s32 %v4930, %v4932
        %v4934 = vrot.slane %v4927, %v4933
        %v4935 = vcombine.low %v4855, %v4856
        %v4937 = vunpack.c.l.s4 1983009808
        %v4938 = vunpack.c.0.s8 %v4937
        %v4939 = vlaneseq
        %v4940 = vshrl.u32 %v4939, 7
        %v4941 = vsub.s32 %v4938, %v4940
        %v4942 = vrot.slane %v4935, %v4941
        %v4943 = vcombine.low %v4847, %v4854
        %v4945 = vunpack.c.l.s4 1983009808
        %v4946 = vunpack.c.0.s8 %v4945
        %v4947 = vlaneseq
        %v4948 = vshrl.u32 %v4947, 7
        %v4949 = vsub.s32 %v4946, %v4948
        %v4950 = vrot.slane %v4943, %v4949
        %v4951 = vcombine.low %v4857, %v4858
        %v4953 = vunpack.c.l.s4 1983009808
        %v4954 = vunpack.c.0.s8 %v4953
        %v4955 = vlaneseq
        %v4956 = vshrl.u32 %v4955, 7
        %v4957 = vsub.s32 %v4954, %v4956
        %v4958 = vrot.slane %v4951, %v4957
        %v4959 = vcombine.low %v4934, %v4942
        %v4960 = vcombine.high %v4934, %v4942
        %v4962 = vunpack.c.l.s4 1934713408
        %v4963 = vunpack.c.0.s8 %v4962
        %v4964 = vlaneseq
        %v4965 = vshrl.u32 %v4964, 7
        %v4966 = vsub.s32 %v4963, %v4965
        %v4967 = vrot.slane %v4959, %v4966
        %v4969 = vunpack.c.l.s4 1934713408
        %v4970 = vunpack.c.0.s8 %v4969
        %v4971 = vlaneseq
        %v4972 = vshrl.u32 %v4971, 7
        %v4973 = vsub.s32 %v4970, %v4972
        %v4974 = vrot.slane %v4960, %v4973
        %v4975 = vcombine.low %v4950, %v4958
        %v4976 = vcombine.high %v4950, %v4958
        %v4978 = vunpack.c.l.s4 1934713408
        %v4979 = vunpack.c.0.s8 %v4978
        %v4980 = vlaneseq
        %v4981 = vshrl.u32 %v4980, 7
        %v4982 = vsub.s32 %v4979, %v4981
        %v4983 = vrot.slane %v4975, %v4982
        %v4985 = vunpack.c.l.s4 1934713408
        %v4986 = vunpack.c.0.s8 %v4985
        %v4987 = vlaneseq
        %v4988 = vshrl.u32 %v4987, 7
        %v4989 = vsub.s32 %v4986, %v4988
        %v4990 = vrot.slane %v4976, %v4989
        %v4991 = vcombine.low %v4967, %v4983
        %v4992 = vcombine.high %v4967, %v4983
        %v4993 = vcombine.low %v4974, %v4990
        %v4994 = vcombine.high %v4974, %v4990
        %4997 = vrot.lane.b32.xlu0 %v4924, 32
        %v4998 = vpop.permute.xlu0 %4997
        %4999 = vrot.lane.b32.xlu0 %v4992, 32
        %v5000 = vpop.permute.xlu0 %4999
        %5005 = vrot.lane.b32.xlu0 %v4925, 64
        %v5006 = vpop.permute.xlu0 %5005
        %5007 = vrot.lane.b32.xlu0 %v4993, 64
        %v5008 = vpop.permute.xlu0 %5007
        %5013 = vrot.lane.b32.xlu0 %v4926, 96
        %v5014 = vpop.permute.xlu0 %5013
        %5015 = vrot.lane.b32.xlu0 %v4994, 96
        %v5016 = vpop.permute.xlu0 %5015
        %v5019 = vsel %vm2157, %v4923, %v4998
        %v5020 = vsel %vm2157, %v4991, %v5000
        %v5021 = vsel %vm2944, %v5019, %v5006
        %v5022 = vsel %vm2944, %v5020, %v5008
        %v5023 = vsel %vm2947, %v5021, %v5014
        %v5024 = vsel %vm2947, %v5022, %v5016
        %v5025 = vpack.c.bf16 %v5024, %v5023
        %v5026 = vld [vmem:[#allocation19] sm:$0xf]
        %v5027 = vld [vmem:[#allocation19 + $0x4] sm:$0xf]
        %v5028 = vld [vmem:[#allocation19 + $0x8] sm:$0xf]
        %v5029 = vld [vmem:[#allocation19 + $0xc] sm:$0xf]
        %v5030 = vld [vmem:[#allocation19 + $0x10] sm:$0xf]
        %v5031 = vld [vmem:[#allocation19 + $0x14] sm:$0xf]
        %v5032 = vld [vmem:[#allocation19 + $0x18] sm:$0xf]
        %v5033 = vld [vmem:[#allocation19 + $0x1c] sm:$0xf]
        %v5034 = vld [vmem:[#allocation19 + $0x20] sm:$0xf]
        %v5035 = vld [vmem:[#allocation19 + $0x24] sm:$0xf]
        %v5036 = vld [vmem:[#allocation19 + $0x28] sm:$0xf]
        %v5037 = vld [vmem:[#allocation19 + $0x2c] sm:$0xf]
        %v5038 = vld [vmem:[#allocation19 + $0x30] sm:$0xf]
        %v5039 = vld [vmem:[#allocation19 + $0x34] sm:$0xf]
        %v5040 = vld [vmem:[#allocation19 + $0x38] sm:$0xf]
        %v5041 = vld [vmem:[#allocation19 + $0x3c] sm:$0xf]
        %v5042 = vld [vmem:[#allocation20] sm:$0x1]
        %v5044 = vlaneseq
        %v5045 = vshrl.u32 %v5044, 7
        %v5046 = vsub.s32 0, %v5045
        %v5047 = vrot.slane %v5042, %v5046
        %v5065 = vunpack.c.l.b16 %v5026
        %v5066 = vunpack.c.l.b16 %v5027
        %v5067 = vunpack.c.l.b16 %v5028
        %v5068 = vunpack.c.l.b16 %v5029
        %v5069 = vunpack.c.l.b16 %v5030
        %v5070 = vunpack.c.l.b16 %v5031
        %v5071 = vunpack.c.l.b16 %v5032
        %v5072 = vunpack.c.l.b16 %v5033
        %v5073 = vunpack.c.l.b16 %v5034
        %v5074 = vunpack.c.l.b16 %v5035
        %v5075 = vunpack.c.l.b16 %v5036
        %v5076 = vunpack.c.l.b16 %v5037
        %v5077 = vunpack.c.l.b16 %v5038
        %v5078 = vunpack.c.l.b16 %v5039
        %v5079 = vunpack.c.l.b16 %v5040
        %v5080 = vunpack.c.l.b16 %v5041
        %v5081 = vpack.c.b16 %v5066, %v5065
        %v5082 = vpack.c.b16 %v5068, %v5067
        %v5083 = vpack.c.b16 %v5070, %v5069
        %v5084 = vpack.c.b16 %v5072, %v5071
        %v5085 = vpack.c.b16 %v5074, %v5073
        %v5086 = vpack.c.b16 %v5076, %v5075
        %v5087 = vpack.c.b16 %v5078, %v5077
        %v5088 = vpack.c.b16 %v5080, %v5079
        %5097 = vmatprep.subr.bf16.mxu0 0
        %5098 = vmatpush1.bf16.msra.mxu0 %v5081
        %5099 = vmatprep.subr.bf16.mxu0 0
        %5100 = vmatpush1.bf16.msra.mxu0 %v5082
        %5101 = vmatprep.subr.bf16.mxu0 0
        %5102 = vmatpush1.bf16.msra.mxu0 %v5083
        %5103 = vmatprep.subr.bf16.mxu0 0
        %5104 = vmatpush1.bf16.msra.mxu0 %v5084
        %5105 = vmatprep.subr.bf16.mxu0 0
        %5106 = vmatpush1.bf16.msra.mxu0 %v5085
        %5107 = vmatprep.subr.bf16.mxu0 0
        %5108 = vmatpush1.bf16.msra.mxu0 %v5086
        %5109 = vmatprep.subr.bf16.mxu0 0
        %5110 = vmatpush1.bf16.msra.mxu0 %v5087
        %5111 = vmatprep.subr.bf16.mxu0 0
        %5112 = vmatpush1.bf16.msra.mxu0 %v5088
        %5113 = vmatprep.subr.bf16.mxu0 0
        %5114 = vmatpush1.bf16.msra.mxu0 0
        %5115 = vmatprep.subr.bf16.mxu0 0
        %5116 = vmatpush1.bf16.msra.mxu0 0
        %5117 = vmatprep.subr.bf16.mxu0 0
        %5118 = vmatpush1.bf16.msra.mxu0 0
        %5119 = vmatprep.subr.bf16.mxu0 0
        %5120 = vmatpush1.bf16.msra.mxu0 0
        %5121 = vmatprep.subr.bf16.mxu0 0
        %5122 = vmatpush1.bf16.msra.mxu0 0
        %5123 = vmatprep.subr.bf16.mxu0 0
        %5124 = vmatpush1.bf16.msra.mxu0 0
        %5125 = vmatprep.subr.bf16.mxu0 0
        %5126 = vmatpush1.bf16.msra.mxu0 0
        %5127 = vmatprep.subr.bf16.mxu0 0
        %5128 = vmatpush1.bf16.msra.mxu0 0
        %5129 = vmatprep.mubr.bf16.mxu0 0
        %5130 = vmatmul.mubr.bf16.gmra.mrb[0].mxu0 %v5025
        %v5131 = vpop.f32.mrb[0].mxu0
        %v5132 = vadd.f32 %v5047, %v5131
        %v5133 = vpop.f32.mrb[0].mxu0
        %v5134 = vpop.f32.mrb[0].mxu0
        %v5135 = vadd.f32 %v5047, %v5134
        %v5136 = vpop.f32.mrb[0].mxu0
        %5137 = vdwg.mxu0
        %v5138 = vadd.f32 %v3104, %v5132
        %v5139 = vadd.f32 %v3105, %v5135
        %v5140 = vld [vmem:[#allocation31] sm:$0x1]
        %v5141 = vld [vmem:[#allocation32] sm:$0x1]
        %5142 = vadd.xlane.f32.xlu0 %v5138
        %v5143 = vpop.xlane.xlu0 %5142
        %5144 = vadd.xlane.f32.xlu0 %v5139
        %v5145 = vpop.xlane.xlu0 %5144
        %v5146 = vmul.f32 %v5143, %v3071
        %v5147 = vmul.f32 %v5145, %v3071
        %v5148 = vsub.f32 %v5138, %v5146
        %v5149 = vsub.f32 %v5139, %v5147
        %v5150 = vmul.f32 %v5148, %v5148
        %v5151 = vmul.f32 %v5149, %v5149
        %5152 = vadd.xlane.f32.xlu0 %v5150
        %v5153 = vpop.xlane.xlu0 %5152
        %5154 = vadd.xlane.f32.xlu0 %v5151
        %v5155 = vpop.xlane.xlu0 %5154
        %v5156 = vmul.f32 %v5153, %v3071
        %v5157 = vmul.f32 %v5155, %v3071
        %v5158 = vadd.f32 %v5156, 1e-05
        %v5159 = vadd.f32 %v5157, 1e-05
        %v5160 = vrsqrt.pop %v5158
        %v5161 = vrsqrt.pop %v5159
        %v5162 = vmul.f32 %v5148, %v5160
        %v5163 = vmul.f32 %v5149, %v5161
        %v5165 = vlaneseq
        %v5166 = vshrl.u32 %v5165, 7
        %v5167 = vsub.s32 0, %v5166
        %v5168 = vrot.slane %v5140, %v5167
        %v5170 = vmul.f32 %v5162, %v5168
        %v5171 = vmul.f32 %v5163, %v5168
        %v5173 = vlaneseq
        %v5174 = vshrl.u32 %v5173, 7
        %v5175 = vsub.s32 0, %v5174
        %v5176 = vrot.slane %v5141, %v5175
        %v5178 = vadd.f32 %v5170, %v5176
        %v5179 = vadd.f32 %v5171, %v5176
        %v5180 = vpack.c.bf16 %v5179, %v5178
        %v5181 = vld [vmem:[#allocation22] sm:$0xff]
        %v5182 = vld [vmem:[#allocation22 + $0x8] sm:$0xff]
        %v5183 = vld [vmem:[#allocation22 + $0x10] sm:$0xff]
        %v5184 = vld [vmem:[#allocation22 + $0x18] sm:$0xff]
        %v5185 = vld [vmem:[#allocation22 + $0x20] sm:$0xff]
        %v5186 = vld [vmem:[#allocation22 + $0x28] sm:$0xff]
        %v5187 = vld [vmem:[#allocation22 + $0x30] sm:$0xff]
        %v5188 = vld [vmem:[#allocation22 + $0x38] sm:$0xff]
        %v5189 = vld [vmem:[#allocation22 + $0x40] sm:$0xff]
        %v5190 = vld [vmem:[#allocation22 + $0x48] sm:$0xff]
        %v5191 = vld [vmem:[#allocation22 + $0x50] sm:$0xff]
        %v5192 = vld [vmem:[#allocation22 + $0x58] sm:$0xff]
        %v5193 = vld [vmem:[#allocation22 + $0x60] sm:$0xff]
        %v5194 = vld [vmem:[#allocation22 + $0x68] sm:$0xff]
        %v5195 = vld [vmem:[#allocation22 + $0x70] sm:$0xff]
        %v5196 = vld [vmem:[#allocation22 + $0x78] sm:$0xff]
        %v5197 = vld [vmem:[#allocation23] sm:$0x3]
        %v5199 = vlaneseq
        %v5200 = vshrl.u32 %v5199, 7
        %v5201 = vsub.s32 0, %v5200
        %v5202 = vrot.slane %v5197, %v5201
        %v5203 = vlaneseq
        %v5204 = vshrl.u32 %v5203, 7
        %v5205 = vsub.s32 1, %v5204
        %v5206 = vrot.slane %v5197, %v5205
        %v5225 = vunpack.c.l.b16 %v5181
        %v5226 = vunpack.c.h.b16 %v5181
        %v5227 = vunpack.c.l.b16 %v5182
        %v5228 = vunpack.c.h.b16 %v5182
        %v5229 = vunpack.c.l.b16 %v5183
        %v5230 = vunpack.c.h.b16 %v5183
        %v5231 = vunpack.c.l.b16 %v5184
        %v5232 = vunpack.c.h.b16 %v5184
        %v5233 = vunpack.c.l.b16 %v5185
        %v5234 = vunpack.c.h.b16 %v5185
        %v5235 = vunpack.c.l.b16 %v5186
        %v5236 = vunpack.c.h.b16 %v5186
        %v5237 = vunpack.c.l.b16 %v5187
        %v5238 = vunpack.c.h.b16 %v5187
        %v5239 = vunpack.c.l.b16 %v5188
        %v5240 = vunpack.c.h.b16 %v5188
        %v5241 = vunpack.c.l.b16 %v5189
        %v5242 = vunpack.c.h.b16 %v5189
        %v5243 = vunpack.c.l.b16 %v5190
        %v5244 = vunpack.c.h.b16 %v5190
        %v5245 = vunpack.c.l.b16 %v5191
        %v5246 = vunpack.c.h.b16 %v5191
        %v5247 = vunpack.c.l.b16 %v5192
        %v5248 = vunpack.c.h.b16 %v5192
        %v5249 = vunpack.c.l.b16 %v5193
        %v5250 = vunpack.c.h.b16 %v5193
        %v5251 = vunpack.c.l.b16 %v5194
        %v5252 = vunpack.c.h.b16 %v5194
        %v5253 = vunpack.c.l.b16 %v5195
        %v5254 = vunpack.c.h.b16 %v5195
        %v5255 = vunpack.c.l.b16 %v5196
        %v5256 = vunpack.c.h.b16 %v5196
        %v5257 = vpack.c.b16 %v5227, %v5225
        %v5258 = vpack.c.b16 %v5228, %v5226
        %v5259 = vpack.c.b16 %v5231, %v5229
        %v5260 = vpack.c.b16 %v5232, %v5230
        %v5261 = vpack.c.b16 %v5235, %v5233
        %v5262 = vpack.c.b16 %v5236, %v5234
        %v5263 = vpack.c.b16 %v5239, %v5237
        %v5264 = vpack.c.b16 %v5240, %v5238
        %v5265 = vpack.c.b16 %v5243, %v5241
        %v5266 = vpack.c.b16 %v5244, %v5242
        %v5267 = vpack.c.b16 %v5247, %v5245
        %v5268 = vpack.c.b16 %v5248, %v5246
        %v5269 = vpack.c.b16 %v5251, %v5249
        %v5270 = vpack.c.b16 %v5252, %v5250
        %v5271 = vpack.c.b16 %v5255, %v5253
        %v5272 = vpack.c.b16 %v5256, %v5254
        %5289 = vmatprep.subr.bf16.mxu0 %v5258
        %5290 = vmatpush1.bf16.msra.mxu0 %v5257
        %5291 = vmatprep.subr.bf16.mxu0 %v5260
        %5292 = vmatpush1.bf16.msra.mxu0 %v5259
        %5293 = vmatprep.subr.bf16.mxu0 %v5262
        %5294 = vmatpush1.bf16.msra.mxu0 %v5261
        %5295 = vmatprep.subr.bf16.mxu0 %v5264
        %5296 = vmatpush1.bf16.msra.mxu0 %v5263
        %5297 = vmatprep.subr.bf16.mxu0 %v5266
        %5298 = vmatpush1.bf16.msra.mxu0 %v5265
        %5299 = vmatprep.subr.bf16.mxu0 %v5268
        %5300 = vmatpush1.bf16.msra.mxu0 %v5267
        %5301 = vmatprep.subr.bf16.mxu0 %v5270
        %5302 = vmatpush1.bf16.msra.mxu0 %v5269
        %5303 = vmatprep.subr.bf16.mxu0 %v5272
        %5304 = vmatpush1.bf16.msra.mxu0 %v5271
        %5305 = vmatprep.subr.bf16.mxu0 0
        %5306 = vmatpush1.bf16.msra.mxu0 0
        %5307 = vmatprep.subr.bf16.mxu0 0
        %5308 = vmatpush1.bf16.msra.mxu0 0
        %5309 = vmatprep.subr.bf16.mxu0 0
        %5310 = vmatpush1.bf16.msra.mxu0 0
        %5311 = vmatprep.subr.bf16.mxu0 0
        %5312 = vmatpush1.bf16.msra.mxu0 0
        %5313 = vmatprep.subr.bf16.mxu0 0
        %5314 = vmatpush1.bf16.msra.mxu0 0
        %5315 = vmatprep.subr.bf16.mxu0 0
        %5316 = vmatpush1.bf16.msra.mxu0 0
        %5317 = vmatprep.subr.bf16.mxu0 0
        %5318 = vmatpush1.bf16.msra.mxu0 0
        %5319 = vmatprep.subr.bf16.mxu0 0
        %5320 = vmatpush1.bf16.msra.mxu0 0
        %5321 = vmatprep.mubr.bf16.mxu0 0
        %5322 = vmatmul.mubr.bf16.gmra.mrb[0].mxu0 %v5180
        %v5323 = vpop.f32.mrb[0].mxu0
        %v5324 = vadd.f32 %v5202, %v5323
        %v5325 = vpop.f32.mrb[0].mxu0
        %v5326 = vadd.f32 %v5206, %v5325
        %v5327 = vpop.f32.mrb[0].mxu0
        %v5328 = vadd.f32 %v5202, %v5327
        %v5329 = vpop.f32.mrb[0].mxu0
        %v5330 = vadd.f32 %v5206, %v5329
        %5331 = vdwg.mxu0
        %v5332 = vmax.f32 %v5324, 0.0
        %v5333 = vmax.f32 %v5326, 0.0
        %v5334 = vmax.f32 %v5328, 0.0
        %v5335 = vmax.f32 %v5330, 0.0
        %v5336 = vpack.c.bf16 %v5334, %v5332
        %v5337 = vpack.c.bf16 %v5335, %v5333
        %v5338 = vld [vmem:[#allocation25] sm:$0xf]
        %v5339 = vld [vmem:[#allocation25 + $0x4] sm:$0xf]
        %v5340 = vld [vmem:[#allocation25 + $0x8] sm:$0xf]
        %v5341 = vld [vmem:[#allocation25 + $0xc] sm:$0xf]
        %v5342 = vld [vmem:[#allocation25 + $0x10] sm:$0xf]
        %v5343 = vld [vmem:[#allocation25 + $0x14] sm:$0xf]
        %v5344 = vld [vmem:[#allocation25 + $0x18] sm:$0xf]
        %v5345 = vld [vmem:[#allocation25 + $0x1c] sm:$0xf]
        %v5346 = vld [vmem:[#allocation25 + $0x20] sm:$0xf]
        %v5347 = vld [vmem:[#allocation25 + $0x24] sm:$0xf]
        %v5348 = vld [vmem:[#allocation25 + $0x28] sm:$0xf]
        %v5349 = vld [vmem:[#allocation25 + $0x2c] sm:$0xf]
        %v5350 = vld [vmem:[#allocation25 + $0x30] sm:$0xf]
        %v5351 = vld [vmem:[#allocation25 + $0x34] sm:$0xf]
        %v5352 = vld [vmem:[#allocation25 + $0x38] sm:$0xf]
        %v5353 = vld [vmem:[#allocation25 + $0x3c] sm:$0xf]
        %v5354 = vld [vmem:[#allocation25 + $0x40] sm:$0xf]
        %v5355 = vld [vmem:[#allocation25 + $0x44] sm:$0xf]
        %v5356 = vld [vmem:[#allocation25 + $0x48] sm:$0xf]
        %v5357 = vld [vmem:[#allocation25 + $0x4c] sm:$0xf]
        %v5358 = vld [vmem:[#allocation25 + $0x50] sm:$0xf]
        %v5359 = vld [vmem:[#allocation25 + $0x54] sm:$0xf]
        %v5360 = vld [vmem:[#allocation25 + $0x58] sm:$0xf]
        %v5361 = vld [vmem:[#allocation25 + $0x5c] sm:$0xf]
        %v5362 = vld [vmem:[#allocation25 + $0x60] sm:$0xf]
        %v5363 = vld [vmem:[#allocation25 + $0x64] sm:$0xf]
        %v5364 = vld [vmem:[#allocation25 + $0x68] sm:$0xf]
        %v5365 = vld [vmem:[#allocation25 + $0x6c] sm:$0xf]
        %v5366 = vld [vmem:[#allocation25 + $0x70] sm:$0xf]
        %v5367 = vld [vmem:[#allocation25 + $0x74] sm:$0xf]
        %v5368 = vld [vmem:[#allocation25 + $0x78] sm:$0xf]
        %v5369 = vld [vmem:[#allocation25 + $0x7c] sm:$0xf]
        %v5370 = vld [vmem:[#allocation26] sm:$0x1]
        %v5372 = vlaneseq
        %v5373 = vshrl.u32 %v5372, 7
        %v5374 = vsub.s32 0, %v5373
        %v5375 = vrot.slane %v5370, %v5374
        %v5409 = vunpack.c.l.b16 %v5338
        %v5410 = vunpack.c.l.b16 %v5339
        %v5411 = vunpack.c.l.b16 %v5340
        %v5412 = vunpack.c.l.b16 %v5341
        %v5413 = vunpack.c.l.b16 %v5342
        %v5414 = vunpack.c.l.b16 %v5343
        %v5415 = vunpack.c.l.b16 %v5344
        %v5416 = vunpack.c.l.b16 %v5345
        %v5417 = vunpack.c.l.b16 %v5346
        %v5418 = vunpack.c.l.b16 %v5347
        %v5419 = vunpack.c.l.b16 %v5348
        %v5420 = vunpack.c.l.b16 %v5349
        %v5421 = vunpack.c.l.b16 %v5350
        %v5422 = vunpack.c.l.b16 %v5351
        %v5423 = vunpack.c.l.b16 %v5352
        %v5424 = vunpack.c.l.b16 %v5353
        %v5425 = vunpack.c.l.b16 %v5354
        %v5426 = vunpack.c.l.b16 %v5355
        %v5427 = vunpack.c.l.b16 %v5356
        %v5428 = vunpack.c.l.b16 %v5357
        %v5429 = vunpack.c.l.b16 %v5358
        %v5430 = vunpack.c.l.b16 %v5359
        %v5431 = vunpack.c.l.b16 %v5360
        %v5432 = vunpack.c.l.b16 %v5361
        %v5433 = vunpack.c.l.b16 %v5362
        %v5434 = vunpack.c.l.b16 %v5363
        %v5435 = vunpack.c.l.b16 %v5364
        %v5436 = vunpack.c.l.b16 %v5365
        %v5437 = vunpack.c.l.b16 %v5366
        %v5438 = vunpack.c.l.b16 %v5367
        %v5439 = vunpack.c.l.b16 %v5368
        %v5440 = vunpack.c.l.b16 %v5369
        %v5441 = vpack.c.b16 %v5410, %v5409
        %v5442 = vpack.c.b16 %v5412, %v5411
        %v5443 = vpack.c.b16 %v5414, %v5413
        %v5444 = vpack.c.b16 %v5416, %v5415
        %v5445 = vpack.c.b16 %v5418, %v5417
        %v5446 = vpack.c.b16 %v5420, %v5419
        %v5447 = vpack.c.b16 %v5422, %v5421
        %v5448 = vpack.c.b16 %v5424, %v5423
        %v5449 = vpack.c.b16 %v5426, %v5425
        %v5450 = vpack.c.b16 %v5428, %v5427
        %v5451 = vpack.c.b16 %v5430, %v5429
        %v5452 = vpack.c.b16 %v5432, %v5431
        %v5453 = vpack.c.b16 %v5434, %v5433
        %v5454 = vpack.c.b16 %v5436, %v5435
        %v5455 = vpack.c.b16 %v5438, %v5437
        %v5456 = vpack.c.b16 %v5440, %v5439
        %5473 = vmatprep.subr.bf16.mxu0 0
        %5474 = vmatpush1.bf16.msra.mxu0 %v5441
        %5475 = vmatprep.subr.bf16.mxu0 0
        %5476 = vmatpush1.bf16.msra.mxu0 %v5442
        %5477 = vmatprep.subr.bf16.mxu0 0
        %5478 = vmatpush1.bf16.msra.mxu0 %v5443
        %5479 = vmatprep.subr.bf16.mxu0 0
        %5480 = vmatpush1.bf16.msra.mxu0 %v5444
        %5481 = vmatprep.subr.bf16.mxu0 0
        %5482 = vmatpush1.bf16.msra.mxu0 %v5445
        %5483 = vmatprep.subr.bf16.mxu0 0
        %5484 = vmatpush1.bf16.msra.mxu0 %v5446
        %5485 = vmatprep.subr.bf16.mxu0 0
        %5486 = vmatpush1.bf16.msra.mxu0 %v5447
        %5487 = vmatprep.subr.bf16.mxu0 0
        %5488 = vmatpush1.bf16.msra.mxu0 %v5448
        %5489 = vmatprep.subr.bf16.mxu0 0
        %5490 = vmatpush1.bf16.msra.mxu0 %v5449
        %5491 = vmatprep.subr.bf16.mxu0 0
        %5492 = vmatpush1.bf16.msra.mxu0 %v5450
        %5493 = vmatprep.subr.bf16.mxu0 0
        %5494 = vmatpush1.bf16.msra.mxu0 %v5451
        %5495 = vmatprep.subr.bf16.mxu0 0
        %5496 = vmatpush1.bf16.msra.mxu0 %v5452
        %5497 = vmatprep.subr.bf16.mxu0 0
        %5498 = vmatpush1.bf16.msra.mxu0 %v5453
        %5499 = vmatprep.subr.bf16.mxu0 0
        %5500 = vmatpush1.bf16.msra.mxu0 %v5454
        %5501 = vmatprep.subr.bf16.mxu0 0
        %5502 = vmatpush1.bf16.msra.mxu0 %v5455
        %5503 = vmatprep.subr.bf16.mxu0 0
        %5504 = vmatpush1.bf16.msra.mxu0 %v5456
        %5505 = vmatprep.mubr.bf16.mxu0 %v5337
        %5506 = vmatmul.mubr.bf16.gmra.mrb[0].mxu0 %v5336
        %v5507 = vpop.f32.mrb[0].mxu0
        %v5508 = vadd.f32 %v5375, %v5507
        %v5509 = vpop.f32.mrb[0].mxu0
        %v5510 = vpop.f32.mrb[0].mxu0
        %v5511 = vadd.f32 %v5375, %v5510
        %v5512 = vpop.f32.mrb[0].mxu0
        %5513 = vdwg.mxu0
        %v5514 = vadd.f32 %v5178, %v5508
        %v5515 = vadd.f32 %v5179, %v5511
        %v5516 = vld [vmem:[#allocation34] sm:$0x1]
        %v5517 = vld [vmem:[#allocation35] sm:$0x1]
        %5518 = vadd.xlane.f32.xlu0 %v5514
        %v5519 = vpop.xlane.xlu0 %5518
        %5520 = vadd.xlane.f32.xlu0 %v5515
        %v5521 = vpop.xlane.xlu0 %5520
        %v5522 = vmul.f32 %v5519, %v3071
        %v5523 = vmul.f32 %v5521, %v3071
        %v5524 = vsub.f32 %v5514, %v5522
        %v5525 = vsub.f32 %v5515, %v5523
        %v5526 = vmul.f32 %v5524, %v5524
        %v5527 = vmul.f32 %v5525, %v5525
        %5528 = vadd.xlane.f32.xlu0 %v5526
        %v5529 = vpop.xlane.xlu0 %5528
        %5530 = vadd.xlane.f32.xlu0 %v5527
        %v5531 = vpop.xlane.xlu0 %5530
        %v5532 = vmul.f32 %v5529, %v3071
        %v5533 = vmul.f32 %v5531, %v3071
        %v5534 = vadd.f32 %v5532, 1e-05
        %v5535 = vadd.f32 %v5533, 1e-05
        %v5536 = vrsqrt.pop %v5534
        %v5537 = vrsqrt.pop %v5535
        %v5538 = vmul.f32 %v5524, %v5536
        %v5539 = vmul.f32 %v5525, %v5537
        %v5541 = vlaneseq
        %v5542 = vshrl.u32 %v5541, 7
        %v5543 = vsub.s32 0, %v5542
        %v5544 = vrot.slane %v5516, %v5543
        %v5546 = vmul.f32 %v5538, %v5544
        %v5547 = vmul.f32 %v5539, %v5544
        %v5549 = vlaneseq
        %v5550 = vshrl.u32 %v5549, 7
        %v5551 = vsub.s32 0, %v5550
        %v5552 = vrot.slane %v5517, %v5551
        %v5554 = vadd.f32 %v5546, %v5552
        %v5555 = vadd.f32 %v5547, %v5552
        %5556 = vst [vmem:[%s1005] sm:$0xff] %v5554
        %5557 = vst [vmem:[%s1005 + $0x8] sm:$0xff] %v5555
        %s5558 = sand.u32 %s532, 1
        %s5559 = scalar_lea.sflag [#allocation4], %s5558
        %s5560 = sand.u32 %s532, 1
        %s5561 = smul.addr %s5560, 16
        %s5562 = scalar_lea.vmem [#allocation37], %s5561
        // Predicated region
        $region197: #{my_transformer_decoder.3} parent=107 // pred_check
          %p5563 = pneg %p542
        $region198: #{my_transformer_decoder.3} parent=107 // pred_check_branch
          %5565 = sbr.rel (%p5563) target = $region200
        $region199: #{my_transformer_decoder.3} parent=107 // pred_region
          %s5567 = ssub.s32 256, 256
          %5568 = vsyncadd %s5559, %s5567
          %s5569 = smul.addr %s52, 2
          %s5570 = smul.addr %s5569, 128
          %s5571 = scalar_lea.hbm %s22, %s5570
          %s5572 = sshll.u32 %s5562, 4
          %s5573 = int_to_ptr.vmem [resolvable:$true] %s5572
          %5578 = dma.vmem_to_hbm [thread:$0]  %s5573, 256, %s5571, %s5559, 128, 128, 8
        $region200: #{my_transformer_decoder.3} parent=107 // pred_fallthru
          _
      $region108: #{my_transformer_decoder.3} parent=5 // pred_fallthru
        _
      %p5579 = scmp.le.s32.totalorder 2, %s47
      // Predicated region
      $region201: #{my_transformer_decoder.3} parent=5 // pred_check
        %p5580 = pneg %p5579
      $region202: #{my_transformer_decoder.3} parent=5 // pred_check_branch
        %5582 = sbr.rel (%p5580) target = $region204
      $region203: #{my_transformer_decoder.3} parent=5 // pred_region
        %s5583 = ssub.s32 %s47, 2
        // Predicated region
        $region205: #{my_transformer_decoder.3} parent=203 // pred_check
          %p5584 = pneg %p548
        $region206: #{my_transformer_decoder.3} parent=203 // pred_check_branch
          %5586 = sbr.rel (%p5584) target = $region208
        $region207: #{my_transformer_decoder.3} parent=203 // pred_region
          %s5587 = sand.u32 %s533, 1
          %s5588 = scalar_lea.sflag [#allocation4], %s5587
          %s5589 = sand.u32 %s533, 1
          %s5590 = smul.addr %s5589, 16
          %s5591 = scalar_lea.vmem [#allocation37], %s5590
          %5592 = dma.done %s5588, 256
        $region208: #{my_transformer_decoder.3} parent=203 // pred_fallthru
          _
      $region204: #{my_transformer_decoder.3} parent=5 // pred_fallthru
        _
    $region6: #{my_transformer_decoder.3} parent=1 // loop_footer
      %s51 = sadd.s32 1, %s47
    $region7: #{my_transformer_decoder.3} parent=1 // loop_footer_branch
      %46 = sbr.rel target = $region3
    $region8: #{my_transformer_decoder.3} parent=1 // loop_exit
      _
    %5593 = vsyncpa [#allocation3], 1
    %s5594 = scalar_lea.sflag [#allocation3], 1
    %5595 = vsyncpa %s5594, 1
    %5596 = vsyncpa [#allocation6], 1
    %s5597 = scalar_lea.sflag [#allocation6], 1
    %5598 = vsyncpa %s5597, 1
    %5599 = vsyncpa [#allocation9], 1
    %5600 = vsyncpa [#allocation12], 1
    %5601 = vsyncpa [#allocation15], 1
    %5602 = vsyncpa [#allocation18], 1
    %5603 = vsyncpa [#allocation21], 1
    %5604 = vsyncpa [#allocation24], 1
    %5605 = vsyncpa [#allocation27], 1
    %5606 = vsyncpa [#allocation30], 1
    %5607 = vsyncpa [#allocation33], 1
    %5608 = vsyncpa [#allocation36], 1
    %5609 = vsyncpa [#allocation4], 1
    %s5610 = scalar_lea.sflag [#allocation4], 1
    %5611 = vsyncpa %s5610, 1

</llo_original>
